<compile_context>
chip_gen: v7x
topology: tpu7x:2x2x1
jax: 0.10.0
libtpu: 0.0.40
codegen_flags: <defaults>
</compile_context>

<pallas_src>
import functools

import jax
import jax.numpy as jnp
from jax.experimental import pallas as pl
from jax.experimental.pallas import tpu as pltpu


# ---------------------------------------------------------------------------
# Host-side constant builders (tiny, layout prep only).
# ---------------------------------------------------------------------------
def _conv_masks(H, W, m_pad):
    """(9, 1, m_pad) float masks. Tap t=(dy+1)*3+(dx+1) is valid at flat
    position p = h*W + w iff (h+dy, w+dx) is inside the HxW image."""
    idx = jnp.arange(m_pad)
    h = idx // W
    w = idx % W
    in_data = idx < H * W
    rows = []
    for dy in (-1, 0, 1):
        for dx in (-1, 0, 1):
            valid = ((h + dy >= 0) & (h + dy < H) &
                     (w + dx >= 0) & (w + dx < W) & in_data)
            rows.append(valid.astype(jnp.float32))
    return jnp.stack(rows).reshape(9, 1, m_pad)


def _pool_select(H, W, m_in, m_out):
    """(m_in, m_out) 0/1 matrix. Column q = ho*Wo + wo selects flat input
    position p = (2*ho)*W + 2*wo (top-left corner of each 2x2 window);
    columns beyond Ho*Wo are zero (lane padding)."""
    Ho, Wo = H // 2, W // 2
    q = jnp.arange(m_out)
    ho = q // Wo
    wo = q % Wo
    p_of_q = 2 * ho * W + 2 * wo
    valid_q = q < Ho * Wo
    src = jnp.arange(m_in)
    sel = (src[:, None] == p_of_q[None, :]) & valid_q[None, :]
    return sel.astype(jnp.float32)


# ---------------------------------------------------------------------------
# The fused kernel: one grid step = one sample of the batch.
# ---------------------------------------------------------------------------
def _vgg_fused_kernel(x_ref,
                      cw1_ref, cs1_ref, ct1_ref,
                      cw2_ref, cs2_ref, ct2_ref,
                      m16_ref, sel1_ref,
                      cw3_ref, cs3_ref, ct3_ref,
                      m8_ref, sel2_ref,
                      fw1_ref, fb1_ref, fw2_ref, fb2_ref, fw3_ref, fb3_ref,
                      o_ref,
                      *, H1, W1, H2, W2):
    f32 = jnp.float32

    def conv3x3_bn_relu(act, w_ref, m_ref, scale, shift, H, W):
        # act: (Cin, M), flat spatial index p = h*W + w on lanes (M may be
        # lane-padded; padded lanes are masked / never consumed downstream).
        cin, M = act.shape
        cout = w_ref.shape[1]
        acc = jnp.zeros((cout, M), f32)
        t = 0
        for dy in (-1, 0, 1):
            for dx in (-1, 0, 1):
                off = dy * W + dx
                if off == 0:
                    shifted = act
                else:
                    # shifted[p] = act[p + off]  (zero-padded borders via mask)
                    shifted = pltpu.roll(act, shift=(-off) % M, axis=1) * m_ref[t]
                acc = acc + jnp.dot(w_ref[t], shifted, preferred_element_type=f32)
                t += 1
        # Folded conv-bias + BatchNorm (inference) + ReLU epilogue.
        return jnp.maximum(acc * scale + shift, 0.0)

    def maxpool2x2(act, sel, W):
        # Pair-max along w, then along h, then compact the top-left corner of
        # every 2x2 window with a 0/1 selection matmul (stays lane-dense).
        M = act.shape[1]
        p = jnp.maximum(act, pltpu.roll(act, shift=M - 1, axis=1))   # p[i]=max(a[i],a[i+1])
        p = jnp.maximum(p, pltpu.roll(p, shift=M - W, axis=1))       # + rows i, i+W
        return jnp.dot(p, sel, preferred_element_type=f32)

    act = x_ref[0].astype(f32)                                        # (Cin, H1*W1)
    act = conv3x3_bn_relu(act, cw1_ref, m16_ref, cs1_ref[...], ct1_ref[...], H1, W1)
    act = conv3x3_bn_relu(act, cw2_ref, m16_ref, cs2_ref[...], ct2_ref[...], H1, W1)
    act = maxpool2x2(act, sel1_ref[...], W1)                          # (C, 128) lane-padded
    act = conv3x3_bn_relu(act, cw3_ref, m8_ref, cs3_ref[...], ct3_ref[...], H2, W2)
    act = maxpool2x2(act, sel2_ref[...], W2)                          # (C_last, Ho*Wo)

    # Flatten (torch NCHW order) folded into FC1 as per-channel weight blocks.
    h = fb1_ref[...]                                                  # (1, hidden)
    for c in range(act.shape[0]):
        h = h + jnp.dot(act[c:c + 1, :], fw1_ref[c], preferred_element_type=f32)
    h = jnp.maximum(h, 0.0)
    # TODO(synk): Dropout(0.5) is identity in inference mode.
    h = jnp.maximum(jnp.dot(h, fw2_ref[...], preferred_element_type=f32) + fb2_ref[...], 0.0)
    o = jnp.dot(h, fw3_ref[...], preferred_element_type=f32) + fb3_ref[...]
    o_ref[0] = o.astype(o_ref.dtype)


# ---------------------------------------------------------------------------
# Wrapper: layout prep + single pallas_call.
# ---------------------------------------------------------------------------
def vgg_forward(x_nhwc, params):
    """x_nhwc: (N, H, W, Cin) — same input the torch module's forward takes
    (its permute to NCHW is folded into the layout prep here)."""
    assert params["n_blocks"] == (2, 1) and len(params["convs"]) == 3, \
        "fused kernel is specialized to the (2,1)-block VGG instantiation"

    N, H, W, Cin = x_nhwc.shape
    c1, c2, c3 = params["convs"]
    f1, f2, f3 = params["fcs"]

    H2, W2 = H // 2, W // 2
    M1 = H * W                      # 256 (multiple of 128 already)
    M2 = max(H2 * W2, 128)          # lane-pad stage 2 to a full vreg width
    S = (H2 // 2) * (W2 // 2)       # spatial positions entering the FC stack
    C_last = c3["w"].shape[-1]
    n_classes = f3["w"].shape[-1]

    # --- layout prep (tiny one-time host/XLA work) --------------------------
    x_arr = x_nhwc.astype(jnp.float32).transpose(0, 3, 1, 2).reshape(N, Cin, M1)

    def conv_args(c):
        w = c["w"]                                            # (3, 3, cin, cout)
        cin, cout = w.shape[2], w.shape[3]
        w9 = w.transpose(0, 1, 3, 2).reshape(9, cout, cin).astype(jnp.float32)
        return w9, c["scale"].reshape(cout, 1), c["shift"].reshape(cout, 1)

    cw1, cs1, ct1 = conv_args(c1)
    cw2, cs2, ct2 = conv_args(c2)
    cw3, cs3, ct3 = conv_args(c3)

    m16 = _conv_masks(H, W, M1)
    m8 = _conv_masks(H2, W2, M2)
    sel1 = _pool_select(H, W, M1, M2)
    sel2 = _pool_select(H2, W2, M2, S)

    fw1 = f1["w"].reshape(C_last, S, -1).astype(jnp.float32)  # flatten folded into FC1
    fb1 = f1["b"].reshape(1, -1)
    fw2, fb2 = f2["w"], f2["b"].reshape(1, -1)
    fw3, fb3 = f3["w"], f3["b"].reshape(1, -1)

    kernel = functools.partial(_vgg_fused_kernel, H1=H, W1=W, H2=H2, W2=W2)

    def full(arr):
        nd = arr.ndim
        return pl.BlockSpec(arr.shape, lambda n, _nd=nd: (0,) * _nd)

    args = (x_arr,
            cw1, cs1, ct1, cw2, cs2, ct2, m16, sel1,
            cw3, cs3, ct3, m8, sel2,
            fw1, fb1, fw2, fb2, fw3, fb3)

    out = pl.pallas_call(
        kernel,
        out_shape=jax.ShapeDtypeStruct((N, 1, n_classes), jnp.float32),
        grid=(N,),
        in_specs=[pl.BlockSpec((1, Cin, M1), lambda n: (n, 0, 0))]
                 + [full(a) for a in args[1:]],
        out_specs=pl.BlockSpec((1, 1, n_classes), lambda n: (n, 0, 0)),
        compiler_params=pltpu.CompilerParams(dimension_semantics=("parallel",)),
    )(*args)
    return out.reshape(N, n_classes)


# ---------------------------------------------------------------------------
# Parameter construction (deterministic, synthetic).
# Mirrors: VGG(channel=4, n_classes=5, n_blocks=(2,1), muls=(1,2),
#              strides=(1,1), image_size=(16,16), in_channel=3, bn=True,
#              activation='relu')
# ---------------------------------------------------------------------------
def make_params(key):
    channel, n_classes = 4, 5
    n_blocks, muls = (2, 1), (1, 2)
    image_size, in_channel = (16, 16), 3
    flat_channel = image_size[0] * image_size[1]

    conv_cfg = []
    for n_block, mul in zip(n_blocks, muls):
        c_out = channel * mul
        for _ in range(n_block):
            conv_cfg.append((in_channel, c_out))
            in_channel = c_out
        flat_channel //= 4
    last_channel = in_channel

    fc_hidden = channel * muls[-1] * 4
    fc_cfg = [
        (last_channel * flat_channel, fc_hidden, True),
        (fc_hidden, fc_hidden, True),
        (fc_hidden, n_classes, False),
    ]

    params = {"convs": [], "fcs": []}
    eps = 1e-5
    for (cin, cout) in conv_cfg:
        key, k1, k2, k3, k4 = jax.random.split(key, 5)
        w = jax.random.normal(k1, (3, 3, cin, cout), jnp.float32) * 0.1
        b = jax.random.normal(k2, (cout,), jnp.float32) * 0.1
        gamma = 1.0 + jax.random.normal(k3, (cout,), jnp.float32) * 0.1
        beta = jax.random.normal(k4, (cout,), jnp.float32) * 0.1
        run_mean = jnp.zeros((cout,), jnp.float32)
        run_var = jnp.ones((cout,), jnp.float32)
        scale = gamma / jnp.sqrt(run_var + eps)
        shift = beta - run_mean * scale + b * scale
        params["convs"].append({"w": w, "scale": scale, "shift": shift})

    for (fin, fout, relu) in fc_cfg:
        key, k1, k2 = jax.random.split(key, 3)
        w = jax.random.normal(k1, (fin, fout), jnp.float32) * 0.1
        b = jax.random.normal(k2, (fout,), jnp.float32) * 0.1
        params["fcs"].append({"w": w, "b": b, "relu": relu})

    params["n_blocks"] = n_blocks
    return params


if __name__ == "__main__":
    key = jax.random.PRNGKey(0)
    key, kx = jax.random.split(key)
    x = jax.random.normal(kx, (2, 16, 16, 3), jnp.float32)  # NHWC input

    params = make_params(key)
    out = vgg_forward(x, params)
    out = jax.block_until_ready(out)

    assert out.shape == (2, 5), out.shape
    assert bool(jnp.all(jnp.isfinite(out)))
    print("KERNEL_OK")
</pallas_src>

<mosaic_0001>
module attributes {stable_mosaic.version = 11 : i64} {
  func.func @_vgg_fused_kernel(%arg0: i32, %arg1: memref<1x3x256xf32, #tpu.memory_space<vmem>>, %arg2: memref<9x4x3xf32, #tpu.memory_space<vmem>>, %arg3: memref<4x1xf32, #tpu.memory_space<vmem>>, %arg4: memref<4x1xf32, #tpu.memory_space<vmem>>, %arg5: memref<9x4x4xf32, #tpu.memory_space<vmem>>, %arg6: memref<4x1xf32, #tpu.memory_space<vmem>>, %arg7: memref<4x1xf32, #tpu.memory_space<vmem>>, %arg8: memref<9x1x256xf32, #tpu.memory_space<vmem>>, %arg9: memref<256x128xf32, #tpu.memory_space<vmem>>, %arg10: memref<9x8x4xf32, #tpu.memory_space<vmem>>, %arg11: memref<8x1xf32, #tpu.memory_space<vmem>>, %arg12: memref<8x1xf32, #tpu.memory_space<vmem>>, %arg13: memref<9x1x128xf32, #tpu.memory_space<vmem>>, %arg14: memref<128x16xf32, #tpu.memory_space<vmem>>, %arg15: memref<8x16x32xf32, #tpu.memory_space<vmem>>, %arg16: memref<1x32xf32, #tpu.memory_space<vmem>>, %arg17: memref<32x32xf32, #tpu.memory_space<vmem>>, %arg18: memref<1x32xf32, #tpu.memory_space<vmem>>, %arg19: memref<32x5xf32, #tpu.memory_space<vmem>>, %arg20: memref<1x5xf32, #tpu.memory_space<vmem>>, %arg21: memref<1x1x5xf32, #tpu.memory_space<vmem>>) attributes {dimension_semantics = [#tpu.dimension_semantics<parallel>], iteration_bounds = array<i64: 2>, scalar_prefetch = 0 : i64, scratch_operands = 0 : i64, tpu.core_type = #tpu.core_type<tc>, window_params = [{transform_indices = @transform_0, window_bounds = array<i64: 1, 3, 256>}, {pipeline_mode = #tpu.pipeline_mode<synchronous>, transform_indices = @transform_1, window_bounds = array<i64: 9, 4, 3>}, {pipeline_mode = #tpu.pipeline_mode<synchronous>, transform_indices = @transform_2, window_bounds = array<i64: 4, 1>}, {pipeline_mode = #tpu.pipeline_mode<synchronous>, transform_indices = @transform_3, window_bounds = array<i64: 4, 1>}, {pipeline_mode = #tpu.pipeline_mode<synchronous>, transform_indices = @transform_4, window_bounds = array<i64: 9, 4, 4>}, {pipeline_mode = #tpu.pipeline_mode<synchronous>, transform_indices = @transform_5, window_bounds = array<i64: 4, 1>}, {pipeline_mode = #tpu.pipeline_mode<synchronous>, transform_indices = @transform_6, window_bounds = array<i64: 4, 1>}, {pipeline_mode = #tpu.pipeline_mode<synchronous>, transform_indices = @transform_7, window_bounds = array<i64: 9, 1, 256>}, {pipeline_mode = #tpu.pipeline_mode<synchronous>, transform_indices = @transform_8, window_bounds = array<i64: 256, 128>}, {pipeline_mode = #tpu.pipeline_mode<synchronous>, transform_indices = @transform_9, window_bounds = array<i64: 9, 8, 4>}, {pipeline_mode = #tpu.pipeline_mode<synchronous>, transform_indices = @transform_10, window_bounds = array<i64: 8, 1>}, {pipeline_mode = #tpu.pipeline_mode<synchronous>, transform_indices = @transform_11, window_bounds = array<i64: 8, 1>}, {pipeline_mode = #tpu.pipeline_mode<synchronous>, transform_indices = @transform_12, window_bounds = array<i64: 9, 1, 128>}, {pipeline_mode = #tpu.pipeline_mode<synchronous>, transform_indices = @transform_13, window_bounds = array<i64: 128, 16>}, {pipeline_mode = #tpu.pipeline_mode<synchronous>, transform_indices = @transform_14, window_bounds = array<i64: 8, 16, 32>}, {pipeline_mode = #tpu.pipeline_mode<synchronous>, transform_indices = @transform_15, window_bounds = array<i64: 1, 32>}, {pipeline_mode = #tpu.pipeline_mode<synchronous>, transform_indices = @transform_16, window_bounds = array<i64: 32, 32>}, {pipeline_mode = #tpu.pipeline_mode<synchronous>, transform_indices = @transform_17, window_bounds = array<i64: 1, 32>}, {pipeline_mode = #tpu.pipeline_mode<synchronous>, transform_indices = @transform_18, window_bounds = array<i64: 32, 5>}, {pipeline_mode = #tpu.pipeline_mode<synchronous>, transform_indices = @transform_19, window_bounds = array<i64: 1, 5>}, {transform_indices = @transform_20, window_bounds = array<i64: 1, 1, 5>}]} {
    %c0 = arith.constant 0 : index
    %c0_0 = arith.constant 0 : index
    %c0_1 = arith.constant 0 : index
    %0 = vector.load %arg1[%c0, %c0_0, %c0_1] : memref<1x3x256xf32, #tpu.memory_space<vmem>>, vector<1x3x256xf32>
    %1 = vector.shape_cast %0 : vector<1x3x256xf32> to vector<3x256xf32>
    %c0_2 = arith.constant 0 : index
    %c0_3 = arith.constant 0 : index
    %2 = vector.load %arg3[%c0_2, %c0_3] : memref<4x1xf32, #tpu.memory_space<vmem>>, vector<4x1xf32>
    %c0_4 = arith.constant 0 : index
    %c0_5 = arith.constant 0 : index
    %3 = vector.load %arg4[%c0_4, %c0_5] : memref<4x1xf32, #tpu.memory_space<vmem>>, vector<4x1xf32>
    %cst = arith.constant 0.000000e+00 : f32
    %4 = vector.broadcast %cst : f32 to vector<4x256xf32>
    %c17_i32 = arith.constant 17 : i32
    %5 = tpu.dynamic_rotate %1 by %c17_i32 dim 1 : vector<3x256xf32>, i32 -> vector<3x256xf32>
    %c0_6 = arith.constant 0 : index
    %c0_7 = arith.constant 0 : index
    %c0_8 = arith.constant 0 : index
    %6 = vector.load %arg8[%c0_6, %c0_7, %c0_8] : memref<9x1x256xf32, #tpu.memory_space<vmem>>, vector<1x1x256xf32>
    %7 = vector.shape_cast %6 : vector<1x1x256xf32> to vector<1x256xf32>
    %8 = vector.broadcast %7 : vector<1x256xf32> to vector<3x256xf32>
    %9 = arith.mulf %5, %8 : vector<3x256xf32>
    %c0_9 = arith.constant 0 : index
    %c0_10 = arith.constant 0 : index
    %c0_11 = arith.constant 0 : index
    %10 = vector.load %arg2[%c0_9, %c0_10, %c0_11] : memref<9x4x3xf32, #tpu.memory_space<vmem>>, vector<1x4x3xf32>
    %11 = vector.shape_cast %10 : vector<1x4x3xf32> to vector<4x3xf32>
    %cst_12 = arith.constant dense<0.000000e+00> : vector<4x256xf32>
    %12 = tpu.matmul %11, %9, %cst_12 {dimension_numbers = #tpu.dot_dimension_numbers<[1], [0], [0], [1], [0, 0, 1, 1], [], []>} : vector<4x3xf32>, vector<3x256xf32>, vector<4x256xf32> -> vector<4x256xf32>
    %13 = arith.addf %4, %12 : vector<4x256xf32>
    %c16_i32 = arith.constant 16 : i32
    %14 = tpu.dynamic_rotate %1 by %c16_i32 dim 1 : vector<3x256xf32>, i32 -> vector<3x256xf32>
    %c1 = arith.constant 1 : index
    %c0_13 = arith.constant 0 : index
    %c0_14 = arith.constant 0 : index
    %15 = vector.load %arg8[%c1, %c0_13, %c0_14] : memref<9x1x256xf32, #tpu.memory_space<vmem>>, vector<1x1x256xf32>
    %16 = vector.shape_cast %15 : vector<1x1x256xf32> to vector<1x256xf32>
    %17 = vector.broadcast %16 : vector<1x256xf32> to vector<3x256xf32>
    %18 = arith.mulf %14, %17 : vector<3x256xf32>
    %c1_15 = arith.constant 1 : index
    %c0_16 = arith.constant 0 : index
    %c0_17 = arith.constant 0 : index
    %19 = vector.load %arg2[%c1_15, %c0_16, %c0_17] : memref<9x4x3xf32, #tpu.memory_space<vmem>>, vector<1x4x3xf32>
    %20 = vector.shape_cast %19 : vector<1x4x3xf32> to vector<4x3xf32>
    %cst_18 = arith.constant dense<0.000000e+00> : vector<4x256xf32>
    %21 = tpu.matmul %20, %18, %cst_18 {dimension_numbers = #tpu.dot_dimension_numbers<[1], [0], [0], [1], [0, 0, 1, 1], [], []>} : vector<4x3xf32>, vector<3x256xf32>, vector<4x256xf32> -> vector<4x256xf32>
    %22 = arith.addf %13, %21 : vector<4x256xf32>
    %c15_i32 = arith.constant 15 : i32
    %23 = tpu.dynamic_rotate %1 by %c15_i32 dim 1 : vector<3x256xf32>, i32 -> vector<3x256xf32>
    %c2 = arith.constant 2 : index
    %c0_19 = arith.constant 0 : index
    %c0_20 = arith.constant 0 : index
    %24 = vector.load %arg8[%c2, %c0_19, %c0_20] : memref<9x1x256xf32, #tpu.memory_space<vmem>>, vector<1x1x256xf32>
    %25 = vector.shape_cast %24 : vector<1x1x256xf32> to vector<1x256xf32>
    %26 = vector.broadcast %25 : vector<1x256xf32> to vector<3x256xf32>
    %27 = arith.mulf %23, %26 : vector<3x256xf32>
    %c2_21 = arith.constant 2 : index
    %c0_22 = arith.constant 0 : index
    %c0_23 = arith.constant 0 : index
    %28 = vector.load %arg2[%c2_21, %c0_22, %c0_23] : memref<9x4x3xf32, #tpu.memory_space<vmem>>, vector<1x4x3xf32>
    %29 = vector.shape_cast %28 : vector<1x4x3xf32> to vector<4x3xf32>
    %cst_24 = arith.constant dense<0.000000e+00> : vector<4x256xf32>
    %30 = tpu.matmul %29, %27, %cst_24 {dimension_numbers = #tpu.dot_dimension_numbers<[1], [0], [0], [1], [0, 0, 1, 1], [], []>} : vector<4x3xf32>, vector<3x256xf32>, vector<4x256xf32> -> vector<4x256xf32>
    %31 = arith.addf %22, %30 : vector<4x256xf32>
    %c1_i32 = arith.constant 1 : i32
    %32 = tpu.dynamic_rotate %1 by %c1_i32 dim 1 : vector<3x256xf32>, i32 -> vector<3x256xf32>
    %c3 = arith.constant 3 : index
    %c0_25 = arith.constant 0 : index
    %c0_26 = arith.constant 0 : index
    %33 = vector.load %arg8[%c3, %c0_25, %c0_26] : memref<9x1x256xf32, #tpu.memory_space<vmem>>, vector<1x1x256xf32>
    %34 = vector.shape_cast %33 : vector<1x1x256xf32> to vector<1x256xf32>
    %35 = vector.broadcast %34 : vector<1x256xf32> to vector<3x256xf32>
    %36 = arith.mulf %32, %35 : vector<3x256xf32>
    %c3_27 = arith.constant 3 : index
    %c0_28 = arith.constant 0 : index
    %c0_29 = arith.constant 0 : index
    %37 = vector.load %arg2[%c3_27, %c0_28, %c0_29] : memref<9x4x3xf32, #tpu.memory_space<vmem>>, vector<1x4x3xf32>
    %38 = vector.shape_cast %37 : vector<1x4x3xf32> to vector<4x3xf32>
    %cst_30 = arith.constant dense<0.000000e+00> : vector<4x256xf32>
    %39 = tpu.matmul %38, %36, %cst_30 {dimension_numbers = #tpu.dot_dimension_numbers<[1], [0], [0], [1], [0, 0, 1, 1], [], []>} : vector<4x3xf32>, vector<3x256xf32>, vector<4x256xf32> -> vector<4x256xf32>
    %40 = arith.addf %31, %39 : vector<4x256xf32>
    %c4 = arith.constant 4 : index
    %c0_31 = arith.constant 0 : index
    %c0_32 = arith.constant 0 : index
    %41 = vector.load %arg2[%c4, %c0_31, %c0_32] : memref<9x4x3xf32, #tpu.memory_space<vmem>>, vector<1x4x3xf32>
    %42 = vector.shape_cast %41 : vector<1x4x3xf32> to vector<4x3xf32>
    %cst_33 = arith.constant dense<0.000000e+00> : vector<4x256xf32>
    %43 = tpu.matmul %42, %1, %cst_33 {dimension_numbers = #tpu.dot_dimension_numbers<[1], [0], [0], [1], [0, 0, 1, 1], [], []>} : vector<4x3xf32>, vector<3x256xf32>, vector<4x256xf32> -> vector<4x256xf32>
    %44 = arith.addf %40, %43 : vector<4x256xf32>
    %c255_i32 = arith.constant 255 : i32
    %45 = tpu.dynamic_rotate %1 by %c255_i32 dim 1 : vector<3x256xf32>, i32 -> vector<3x256xf32>
    %c5 = arith.constant 5 : index
    %c0_34 = arith.constant 0 : index
    %c0_35 = arith.constant 0 : index
    %46 = vector.load %arg8[%c5, %c0_34, %c0_35] : memref<9x1x256xf32, #tpu.memory_space<vmem>>, vector<1x1x256xf32>
    %47 = vector.shape_cast %46 : vector<1x1x256xf32> to vector<1x256xf32>
    %48 = vector.broadcast %47 : vector<1x256xf32> to vector<3x256xf32>
    %49 = arith.mulf %45, %48 : vector<3x256xf32>
    %c5_36 = arith.constant 5 : index
    %c0_37 = arith.constant 0 : index
    %c0_38 = arith.constant 0 : index
    %50 = vector.load %arg2[%c5_36, %c0_37, %c0_38] : memref<9x4x3xf32, #tpu.memory_space<vmem>>, vector<1x4x3xf32>
    %51 = vector.shape_cast %50 : vector<1x4x3xf32> to vector<4x3xf32>
    %cst_39 = arith.constant dense<0.000000e+00> : vector<4x256xf32>
    %52 = tpu.matmul %51, %49, %cst_39 {dimension_numbers = #tpu.dot_dimension_numbers<[1], [0], [0], [1], [0, 0, 1, 1], [], []>} : vector<4x3xf32>, vector<3x256xf32>, vector<4x256xf32> -> vector<4x256xf32>
    %53 = arith.addf %44, %52 : vector<4x256xf32>
    %c241_i32 = arith.constant 241 : i32
    %54 = tpu.dynamic_rotate %1 by %c241_i32 dim 1 : vector<3x256xf32>, i32 -> vector<3x256xf32>
    %c6 = arith.constant 6 : index
    %c0_40 = arith.constant 0 : index
    %c0_41 = arith.constant 0 : index
    %55 = vector.load %arg8[%c6, %c0_40, %c0_41] : memref<9x1x256xf32, #tpu.memory_space<vmem>>, vector<1x1x256xf32>
    %56 = vector.shape_cast %55 : vector<1x1x256xf32> to vector<1x256xf32>
    %57 = vector.broadcast %56 : vector<1x256xf32> to vector<3x256xf32>
    %58 = arith.mulf %54, %57 : vector<3x256xf32>
    %c6_42 = arith.constant 6 : index
    %c0_43 = arith.constant 0 : index
    %c0_44 = arith.constant 0 : index
    %59 = vector.load %arg2[%c6_42, %c0_43, %c0_44] : memref<9x4x3xf32, #tpu.memory_space<vmem>>, vector<1x4x3xf32>
    %60 = vector.shape_cast %59 : vector<1x4x3xf32> to vector<4x3xf32>
    %cst_45 = arith.constant dense<0.000000e+00> : vector<4x256xf32>
    %61 = tpu.matmul %60, %58, %cst_45 {dimension_numbers = #tpu.dot_dimension_numbers<[1], [0], [0], [1], [0, 0, 1, 1], [], []>} : vector<4x3xf32>, vector<3x256xf32>, vector<4x256xf32> -> vector<4x256xf32>
    %62 = arith.addf %53, %61 : vector<4x256xf32>
    %c240_i32 = arith.constant 240 : i32
    %63 = tpu.dynamic_rotate %1 by %c240_i32 dim 1 : vector<3x256xf32>, i32 -> vector<3x256xf32>
    %c7 = arith.constant 7 : index
    %c0_46 = arith.constant 0 : index
    %c0_47 = arith.constant 0 : index
    %64 = vector.load %arg8[%c7, %c0_46, %c0_47] : memref<9x1x256xf32, #tpu.memory_space<vmem>>, vector<1x1x256xf32>
    %65 = vector.shape_cast %64 : vector<1x1x256xf32> to vector<1x256xf32>
    %66 = vector.broadcast %65 : vector<1x256xf32> to vector<3x256xf32>
    %67 = arith.mulf %63, %66 : vector<3x256xf32>
    %c7_48 = arith.constant 7 : index
    %c0_49 = arith.constant 0 : index
    %c0_50 = arith.constant 0 : index
    %68 = vector.load %arg2[%c7_48, %c0_49, %c0_50] : memref<9x4x3xf32, #tpu.memory_space<vmem>>, vector<1x4x3xf32>
    %69 = vector.shape_cast %68 : vector<1x4x3xf32> to vector<4x3xf32>
    %cst_51 = arith.constant dense<0.000000e+00> : vector<4x256xf32>
    %70 = tpu.matmul %69, %67, %cst_51 {dimension_numbers = #tpu.dot_dimension_numbers<[1], [0], [0], [1], [0, 0, 1, 1], [], []>} : vector<4x3xf32>, vector<3x256xf32>, vector<4x256xf32> -> vector<4x256xf32>
    %71 = arith.addf %62, %70 : vector<4x256xf32>
    %c239_i32 = arith.constant 239 : i32
    %72 = tpu.dynamic_rotate %1 by %c239_i32 dim 1 : vector<3x256xf32>, i32 -> vector<3x256xf32>
    %c8 = arith.constant 8 : index
    %c0_52 = arith.constant 0 : index
    %c0_53 = arith.constant 0 : index
    %73 = vector.load %arg8[%c8, %c0_52, %c0_53] : memref<9x1x256xf32, #tpu.memory_space<vmem>>, vector<1x1x256xf32>
    %74 = vector.shape_cast %73 : vector<1x1x256xf32> to vector<1x256xf32>
    %75 = vector.broadcast %74 : vector<1x256xf32> to vector<3x256xf32>
    %76 = arith.mulf %72, %75 : vector<3x256xf32>
    %c8_54 = arith.constant 8 : index
    %c0_55 = arith.constant 0 : index
    %c0_56 = arith.constant 0 : index
    %77 = vector.load %arg2[%c8_54, %c0_55, %c0_56] : memref<9x4x3xf32, #tpu.memory_space<vmem>>, vector<1x4x3xf32>
    %78 = vector.shape_cast %77 : vector<1x4x3xf32> to vector<4x3xf32>
    %cst_57 = arith.constant dense<0.000000e+00> : vector<4x256xf32>
    %79 = tpu.matmul %78, %76, %cst_57 {dimension_numbers = #tpu.dot_dimension_numbers<[1], [0], [0], [1], [0, 0, 1, 1], [], []>} : vector<4x3xf32>, vector<3x256xf32>, vector<4x256xf32> -> vector<4x256xf32>
    %80 = arith.addf %71, %79 : vector<4x256xf32>
    %81 = vector.broadcast %2 : vector<4x1xf32> to vector<4x256xf32>
    %82 = arith.mulf %80, %81 : vector<4x256xf32>
    %83 = vector.broadcast %3 : vector<4x1xf32> to vector<4x256xf32>
    %84 = arith.addf %82, %83 : vector<4x256xf32>
    %cst_58 = arith.constant 0.000000e+00 : f32
    %85 = vector.broadcast %cst_58 : f32 to vector<4x256xf32>
    %86 = arith.maximumf %84, %85 : vector<4x256xf32>
    %c0_59 = arith.constant 0 : index
    %c0_60 = arith.constant 0 : index
    %87 = vector.load %arg6[%c0_59, %c0_60] : memref<4x1xf32, #tpu.memory_space<vmem>>, vector<4x1xf32>
    %c0_61 = arith.constant 0 : index
    %c0_62 = arith.constant 0 : index
    %88 = vector.load %arg7[%c0_61, %c0_62] : memref<4x1xf32, #tpu.memory_space<vmem>>, vector<4x1xf32>
    %cst_63 = arith.constant 0.000000e+00 : f32
    %89 = vector.broadcast %cst_63 : f32 to vector<4x256xf32>
    %c17_i32_64 = arith.constant 17 : i32
    %90 = tpu.dynamic_rotate %86 by %c17_i32_64 dim 1 : vector<4x256xf32>, i32 -> vector<4x256xf32>
    %c0_65 = arith.constant 0 : index
    %c0_66 = arith.constant 0 : index
    %c0_67 = arith.constant 0 : index
    %91 = vector.load %arg8[%c0_65, %c0_66, %c0_67] : memref<9x1x256xf32, #tpu.memory_space<vmem>>, vector<1x1x256xf32>
    %92 = vector.shape_cast %91 : vector<1x1x256xf32> to vector<1x256xf32>
    %93 = vector.broadcast %92 : vector<1x256xf32> to vector<4x256xf32>
    %94 = arith.mulf %90, %93 : vector<4x256xf32>
    %c0_68 = arith.constant 0 : index
    %c0_69 = arith.constant 0 : index
    %c0_70 = arith.constant 0 : index
    %95 = vector.load %arg5[%c0_68, %c0_69, %c0_70] : memref<9x4x4xf32, #tpu.memory_space<vmem>>, vector<1x4x4xf32>
    %96 = vector.shape_cast %95 : vector<1x4x4xf32> to vector<4x4xf32>
    %cst_71 = arith.constant dense<0.000000e+00> : vector<4x256xf32>
    %97 = tpu.matmul %96, %94, %cst_71 {dimension_numbers = #tpu.dot_dimension_numbers<[1], [0], [0], [1], [0, 0, 1, 1], [], []>} : vector<4x4xf32>, vector<4x256xf32>, vector<4x256xf32> -> vector<4x256xf32>
    %98 = arith.addf %89, %97 : vector<4x256xf32>
    %c16_i32_72 = arith.constant 16 : i32
    %99 = tpu.dynamic_rotate %86 by %c16_i32_72 dim 1 : vector<4x256xf32>, i32 -> vector<4x256xf32>
    %c1_73 = arith.constant 1 : index
    %c0_74 = arith.constant 0 : index
    %c0_75 = arith.constant 0 : index
    %100 = vector.load %arg8[%c1_73, %c0_74, %c0_75] : memref<9x1x256xf32, #tpu.memory_space<vmem>>, vector<1x1x256xf32>
    %101 = vector.shape_cast %100 : vector<1x1x256xf32> to vector<1x256xf32>
    %102 = vector.broadcast %101 : vector<1x256xf32> to vector<4x256xf32>
    %103 = arith.mulf %99, %102 : vector<4x256xf32>
    %c1_76 = arith.constant 1 : index
    %c0_77 = arith.constant 0 : index
    %c0_78 = arith.constant 0 : index
    %104 = vector.load %arg5[%c1_76, %c0_77, %c0_78] : memref<9x4x4xf32, #tpu.memory_space<vmem>>, vector<1x4x4xf32>
    %105 = vector.shape_cast %104 : vector<1x4x4xf32> to vector<4x4xf32>
    %cst_79 = arith.constant dense<0.000000e+00> : vector<4x256xf32>
    %106 = tpu.matmul %105, %103, %cst_79 {dimension_numbers = #tpu.dot_dimension_numbers<[1], [0], [0], [1], [0, 0, 1, 1], [], []>} : vector<4x4xf32>, vector<4x256xf32>, vector<4x256xf32> -> vector<4x256xf32>
    %107 = arith.addf %98, %106 : vector<4x256xf32>
    %c15_i32_80 = arith.constant 15 : i32
    %108 = tpu.dynamic_rotate %86 by %c15_i32_80 dim 1 : vector<4x256xf32>, i32 -> vector<4x256xf32>
    %c2_81 = arith.constant 2 : index
    %c0_82 = arith.constant 0 : index
    %c0_83 = arith.constant 0 : index
    %109 = vector.load %arg8[%c2_81, %c0_82, %c0_83] : memref<9x1x256xf32, #tpu.memory_space<vmem>>, vector<1x1x256xf32>
    %110 = vector.shape_cast %109 : vector<1x1x256xf32> to vector<1x256xf32>
    %111 = vector.broadcast %110 : vector<1x256xf32> to vector<4x256xf32>
    %112 = arith.mulf %108, %111 : vector<4x256xf32>
    %c2_84 = arith.constant 2 : index
    %c0_85 = arith.constant 0 : index
    %c0_86 = arith.constant 0 : index
    %113 = vector.load %arg5[%c2_84, %c0_85, %c0_86] : memref<9x4x4xf32, #tpu.memory_space<vmem>>, vector<1x4x4xf32>
    %114 = vector.shape_cast %113 : vector<1x4x4xf32> to vector<4x4xf32>
    %cst_87 = arith.constant dense<0.000000e+00> : vector<4x256xf32>
    %115 = tpu.matmul %114, %112, %cst_87 {dimension_numbers = #tpu.dot_dimension_numbers<[1], [0], [0], [1], [0, 0, 1, 1], [], []>} : vector<4x4xf32>, vector<4x256xf32>, vector<4x256xf32> -> vector<4x256xf32>
    %116 = arith.addf %107, %115 : vector<4x256xf32>
    %c1_i32_88 = arith.constant 1 : i32
    %117 = tpu.dynamic_rotate %86 by %c1_i32_88 dim 1 : vector<4x256xf32>, i32 -> vector<4x256xf32>
    %c3_89 = arith.constant 3 : index
    %c0_90 = arith.constant 0 : index
    %c0_91 = arith.constant 0 : index
    %118 = vector.load %arg8[%c3_89, %c0_90, %c0_91] : memref<9x1x256xf32, #tpu.memory_space<vmem>>, vector<1x1x256xf32>
    %119 = vector.shape_cast %118 : vector<1x1x256xf32> to vector<1x256xf32>
    %120 = vector.broadcast %119 : vector<1x256xf32> to vector<4x256xf32>
    %121 = arith.mulf %117, %120 : vector<4x256xf32>
    %c3_92 = arith.constant 3 : index
    %c0_93 = arith.constant 0 : index
    %c0_94 = arith.constant 0 : index
    %122 = vector.load %arg5[%c3_92, %c0_93, %c0_94] : memref<9x4x4xf32, #tpu.memory_space<vmem>>, vector<1x4x4xf32>
    %123 = vector.shape_cast %122 : vector<1x4x4xf32> to vector<4x4xf32>
    %cst_95 = arith.constant dense<0.000000e+00> : vector<4x256xf32>
    %124 = tpu.matmul %123, %121, %cst_95 {dimension_numbers = #tpu.dot_dimension_numbers<[1], [0], [0], [1], [0, 0, 1, 1], [], []>} : vector<4x4xf32>, vector<4x256xf32>, vector<4x256xf32> -> vector<4x256xf32>
    %125 = arith.addf %116, %124 : vector<4x256xf32>
    %c4_96 = arith.constant 4 : index
    %c0_97 = arith.constant 0 : index
    %c0_98 = arith.constant 0 : index
    %126 = vector.load %arg5[%c4_96, %c0_97, %c0_98] : memref<9x4x4xf32, #tpu.memory_space<vmem>>, vector<1x4x4xf32>
    %127 = vector.shape_cast %126 : vector<1x4x4xf32> to vector<4x4xf32>
    %cst_99 = arith.constant dense<0.000000e+00> : vector<4x256xf32>
    %128 = tpu.matmul %127, %86, %cst_99 {dimension_numbers = #tpu.dot_dimension_numbers<[1], [0], [0], [1], [0, 0, 1, 1], [], []>} : vector<4x4xf32>, vector<4x256xf32>, vector<4x256xf32> -> vector<4x256xf32>
    %129 = arith.addf %125, %128 : vector<4x256xf32>
    %c255_i32_100 = arith.constant 255 : i32
    %130 = tpu.dynamic_rotate %86 by %c255_i32_100 dim 1 : vector<4x256xf32>, i32 -> vector<4x256xf32>
    %c5_101 = arith.constant 5 : index
    %c0_102 = arith.constant 0 : index
    %c0_103 = arith.constant 0 : index
    %131 = vector.load %arg8[%c5_101, %c0_102, %c0_103] : memref<9x1x256xf32, #tpu.memory_space<vmem>>, vector<1x1x256xf32>
    %132 = vector.shape_cast %131 : vector<1x1x256xf32> to vector<1x256xf32>
    %133 = vector.broadcast %132 : vector<1x256xf32> to vector<4x256xf32>
    %134 = arith.mulf %130, %133 : vector<4x256xf32>
    %c5_104 = arith.constant 5 : index
    %c0_105 = arith.constant 0 : index
    %c0_106 = arith.constant 0 : index
    %135 = vector.load %arg5[%c5_104, %c0_105, %c0_106] : memref<9x4x4xf32, #tpu.memory_space<vmem>>, vector<1x4x4xf32>
    %136 = vector.shape_cast %135 : vector<1x4x4xf32> to vector<4x4xf32>
    %cst_107 = arith.constant dense<0.000000e+00> : vector<4x256xf32>
    %137 = tpu.matmul %136, %134, %cst_107 {dimension_numbers = #tpu.dot_dimension_numbers<[1], [0], [0], [1], [0, 0, 1, 1], [], []>} : vector<4x4xf32>, vector<4x256xf32>, vector<4x256xf32> -> vector<4x256xf32>
    %138 = arith.addf %129, %137 : vector<4x256xf32>
    %c241_i32_108 = arith.constant 241 : i32
    %139 = tpu.dynamic_rotate %86 by %c241_i32_108 dim 1 : vector<4x256xf32>, i32 -> vector<4x256xf32>
    %c6_109 = arith.constant 6 : index
    %c0_110 = arith.constant 0 : index
    %c0_111 = arith.constant 0 : index
    %140 = vector.load %arg8[%c6_109, %c0_110, %c0_111] : memref<9x1x256xf32, #tpu.memory_space<vmem>>, vector<1x1x256xf32>
    %141 = vector.shape_cast %140 : vector<1x1x256xf32> to vector<1x256xf32>
    %142 = vector.broadcast %141 : vector<1x256xf32> to vector<4x256xf32>
    %143 = arith.mulf %139, %142 : vector<4x256xf32>
    %c6_112 = arith.constant 6 : index
    %c0_113 = arith.constant 0 : index
    %c0_114 = arith.constant 0 : index
    %144 = vector.load %arg5[%c6_112, %c0_113, %c0_114] : memref<9x4x4xf32, #tpu.memory_space<vmem>>, vector<1x4x4xf32>
    %145 = vector.shape_cast %144 : vector<1x4x4xf32> to vector<4x4xf32>
    %cst_115 = arith.constant dense<0.000000e+00> : vector<4x256xf32>
    %146 = tpu.matmul %145, %143, %cst_115 {dimension_numbers = #tpu.dot_dimension_numbers<[1], [0], [0], [1], [0, 0, 1, 1], [], []>} : vector<4x4xf32>, vector<4x256xf32>, vector<4x256xf32> -> vector<4x256xf32>
    %147 = arith.addf %138, %146 : vector<4x256xf32>
    %c240_i32_116 = arith.constant 240 : i32
    %148 = tpu.dynamic_rotate %86 by %c240_i32_116 dim 1 : vector<4x256xf32>, i32 -> vector<4x256xf32>
    %c7_117 = arith.constant 7 : index
    %c0_118 = arith.constant 0 : index
    %c0_119 = arith.constant 0 : index
    %149 = vector.load %arg8[%c7_117, %c0_118, %c0_119] : memref<9x1x256xf32, #tpu.memory_space<vmem>>, vector<1x1x256xf32>
    %150 = vector.shape_cast %149 : vector<1x1x256xf32> to vector<1x256xf32>
    %151 = vector.broadcast %150 : vector<1x256xf32> to vector<4x256xf32>
    %152 = arith.mulf %148, %151 : vector<4x256xf32>
    %c7_120 = arith.constant 7 : index
    %c0_121 = arith.constant 0 : index
    %c0_122 = arith.constant 0 : index
    %153 = vector.load %arg5[%c7_120, %c0_121, %c0_122] : memref<9x4x4xf32, #tpu.memory_space<vmem>>, vector<1x4x4xf32>
    %154 = vector.shape_cast %153 : vector<1x4x4xf32> to vector<4x4xf32>
    %cst_123 = arith.constant dense<0.000000e+00> : vector<4x256xf32>
    %155 = tpu.matmul %154, %152, %cst_123 {dimension_numbers = #tpu.dot_dimension_numbers<[1], [0], [0], [1], [0, 0, 1, 1], [], []>} : vector<4x4xf32>, vector<4x256xf32>, vector<4x256xf32> -> vector<4x256xf32>
    %156 = arith.addf %147, %155 : vector<4x256xf32>
    %c239_i32_124 = arith.constant 239 : i32
    %157 = tpu.dynamic_rotate %86 by %c239_i32_124 dim 1 : vector<4x256xf32>, i32 -> vector<4x256xf32>
    %c8_125 = arith.constant 8 : index
    %c0_126 = arith.constant 0 : index
    %c0_127 = arith.constant 0 : index
    %158 = vector.load %arg8[%c8_125, %c0_126, %c0_127] : memref<9x1x256xf32, #tpu.memory_space<vmem>>, vector<1x1x256xf32>
    %159 = vector.shape_cast %158 : vector<1x1x256xf32> to vector<1x256xf32>
    %160 = vector.broadcast %159 : vector<1x256xf32> to vector<4x256xf32>
    %161 = arith.mulf %157, %160 : vector<4x256xf32>
    %c8_128 = arith.constant 8 : index
    %c0_129 = arith.constant 0 : index
    %c0_130 = arith.constant 0 : index
    %162 = vector.load %arg5[%c8_128, %c0_129, %c0_130] : memref<9x4x4xf32, #tpu.memory_space<vmem>>, vector<1x4x4xf32>
    %163 = vector.shape_cast %162 : vector<1x4x4xf32> to vector<4x4xf32>
    %cst_131 = arith.constant dense<0.000000e+00> : vector<4x256xf32>
    %164 = tpu.matmul %163, %161, %cst_131 {dimension_numbers = #tpu.dot_dimension_numbers<[1], [0], [0], [1], [0, 0, 1, 1], [], []>} : vector<4x4xf32>, vector<4x256xf32>, vector<4x256xf32> -> vector<4x256xf32>
    %165 = arith.addf %156, %164 : vector<4x256xf32>
    %166 = vector.broadcast %87 : vector<4x1xf32> to vector<4x256xf32>
    %167 = arith.mulf %165, %166 : vector<4x256xf32>
    %168 = vector.broadcast %88 : vector<4x1xf32> to vector<4x256xf32>
    %169 = arith.addf %167, %168 : vector<4x256xf32>
    %cst_132 = arith.constant 0.000000e+00 : f32
    %170 = vector.broadcast %cst_132 : f32 to vector<4x256xf32>
    %171 = arith.maximumf %169, %170 : vector<4x256xf32>
    %c0_133 = arith.constant 0 : index
    %c0_134 = arith.constant 0 : index
    %172 = vector.load %arg9[%c0_133, %c0_134] : memref<256x128xf32, #tpu.memory_space<vmem>>, vector<256x128xf32>
    %c255_i32_135 = arith.constant 255 : i32
    %173 = tpu.dynamic_rotate %171 by %c255_i32_135 dim 1 : vector<4x256xf32>, i32 -> vector<4x256xf32>
    %174 = arith.maximumf %171, %173 : vector<4x256xf32>
    %c240_i32_136 = arith.constant 240 : i32
    %175 = tpu.dynamic_rotate %174 by %c240_i32_136 dim 1 : vector<4x256xf32>, i32 -> vector<4x256xf32>
    %176 = arith.maximumf %174, %175 : vector<4x256xf32>
    %cst_137 = arith.constant dense<0.000000e+00> : vector<4x128xf32>
    %177 = tpu.matmul %176, %172, %cst_137 {dimension_numbers = #tpu.dot_dimension_numbers<[1], [0], [0], [1], [0, 0, 1, 1], [], []>} : vector<4x256xf32>, vector<256x128xf32>, vector<4x128xf32> -> vector<4x128xf32>
    %c0_138 = arith.constant 0 : index
    %c0_139 = arith.constant 0 : index
    %178 = vector.load %arg11[%c0_138, %c0_139] : memref<8x1xf32, #tpu.memory_space<vmem>>, vector<8x1xf32>
    %c0_140 = arith.constant 0 : index
    %c0_141 = arith.constant 0 : index
    %179 = vector.load %arg12[%c0_140, %c0_141] : memref<8x1xf32, #tpu.memory_space<vmem>>, vector<8x1xf32>
    %cst_142 = arith.constant 0.000000e+00 : f32
    %180 = vector.broadcast %cst_142 : f32 to vector<8x128xf32>
    %c9_i32 = arith.constant 9 : i32
    %181 = tpu.dynamic_rotate %177 by %c9_i32 dim 1 : vector<4x128xf32>, i32 -> vector<4x128xf32>
    %c0_143 = arith.constant 0 : index
    %c0_144 = arith.constant 0 : index
    %c0_145 = arith.constant 0 : index
    %182 = vector.load %arg13[%c0_143, %c0_144, %c0_145] : memref<9x1x128xf32, #tpu.memory_space<vmem>>, vector<1x1x128xf32>
    %183 = vector.shape_cast %182 : vector<1x1x128xf32> to vector<1x128xf32>
    %184 = vector.broadcast %183 : vector<1x128xf32> to vector<4x128xf32>
    %185 = arith.mulf %181, %184 : vector<4x128xf32>
    %c0_146 = arith.constant 0 : index
    %c0_147 = arith.constant 0 : index
    %c0_148 = arith.constant 0 : index
    %186 = vector.load %arg10[%c0_146, %c0_147, %c0_148] : memref<9x8x4xf32, #tpu.memory_space<vmem>>, vector<1x8x4xf32>
    %187 = vector.shape_cast %186 : vector<1x8x4xf32> to vector<8x4xf32>
    %cst_149 = arith.constant dense<0.000000e+00> : vector<8x128xf32>
    %188 = tpu.matmul %187, %185, %cst_149 {dimension_numbers = #tpu.dot_dimension_numbers<[1], [0], [0], [1], [0, 0, 1, 1], [], []>} : vector<8x4xf32>, vector<4x128xf32>, vector<8x128xf32> -> vector<8x128xf32>
    %189 = arith.addf %180, %188 : vector<8x128xf32>
    %c8_i32 = arith.constant 8 : i32
    %190 = tpu.dynamic_rotate %177 by %c8_i32 dim 1 : vector<4x128xf32>, i32 -> vector<4x128xf32>
    %c1_150 = arith.constant 1 : index
    %c0_151 = arith.constant 0 : index
    %c0_152 = arith.constant 0 : index
    %191 = vector.load %arg13[%c1_150, %c0_151, %c0_152] : memref<9x1x128xf32, #tpu.memory_space<vmem>>, vector<1x1x128xf32>
    %192 = vector.shape_cast %191 : vector<1x1x128xf32> to vector<1x128xf32>
    %193 = vector.broadcast %192 : vector<1x128xf32> to vector<4x128xf32>
    %194 = arith.mulf %190, %193 : vector<4x128xf32>
    %c1_153 = arith.constant 1 : index
    %c0_154 = arith.constant 0 : index
    %c0_155 = arith.constant 0 : index
    %195 = vector.load %arg10[%c1_153, %c0_154, %c0_155] : memref<9x8x4xf32, #tpu.memory_space<vmem>>, vector<1x8x4xf32>
    %196 = vector.shape_cast %195 : vector<1x8x4xf32> to vector<8x4xf32>
    %cst_156 = arith.constant dense<0.000000e+00> : vector<8x128xf32>
    %197 = tpu.matmul %196, %194, %cst_156 {dimension_numbers = #tpu.dot_dimension_numbers<[1], [0], [0], [1], [0, 0, 1, 1], [], []>} : vector<8x4xf32>, vector<4x128xf32>, vector<8x128xf32> -> vector<8x128xf32>
    %198 = arith.addf %189, %197 : vector<8x128xf32>
    %c7_i32 = arith.constant 7 : i32
    %199 = tpu.dynamic_rotate %177 by %c7_i32 dim 1 : vector<4x128xf32>, i32 -> vector<4x128xf32>
    %c2_157 = arith.constant 2 : index
    %c0_158 = arith.constant 0 : index
    %c0_159 = arith.constant 0 : index
    %200 = vector.load %arg13[%c2_157, %c0_158, %c0_159] : memref<9x1x128xf32, #tpu.memory_space<vmem>>, vector<1x1x128xf32>
    %201 = vector.shape_cast %200 : vector<1x1x128xf32> to vector<1x128xf32>
    %202 = vector.broadcast %201 : vector<1x128xf32> to vector<4x128xf32>
    %203 = arith.mulf %199, %202 : vector<4x128xf32>
    %c2_160 = arith.constant 2 : index
    %c0_161 = arith.constant 0 : index
    %c0_162 = arith.constant 0 : index
    %204 = vector.load %arg10[%c2_160, %c0_161, %c0_162] : memref<9x8x4xf32, #tpu.memory_space<vmem>>, vector<1x8x4xf32>
    %205 = vector.shape_cast %204 : vector<1x8x4xf32> to vector<8x4xf32>
    %cst_163 = arith.constant dense<0.000000e+00> : vector<8x128xf32>
    %206 = tpu.matmul %205, %203, %cst_163 {dimension_numbers = #tpu.dot_dimension_numbers<[1], [0], [0], [1], [0, 0, 1, 1], [], []>} : vector<8x4xf32>, vector<4x128xf32>, vector<8x128xf32> -> vector<8x128xf32>
    %207 = arith.addf %198, %206 : vector<8x128xf32>
    %c1_i32_164 = arith.constant 1 : i32
    %208 = tpu.dynamic_rotate %177 by %c1_i32_164 dim 1 : vector<4x128xf32>, i32 -> vector<4x128xf32>
    %c3_165 = arith.constant 3 : index
    %c0_166 = arith.constant 0 : index
    %c0_167 = arith.constant 0 : index
    %209 = vector.load %arg13[%c3_165, %c0_166, %c0_167] : memref<9x1x128xf32, #tpu.memory_space<vmem>>, vector<1x1x128xf32>
    %210 = vector.shape_cast %209 : vector<1x1x128xf32> to vector<1x128xf32>
    %211 = vector.broadcast %210 : vector<1x128xf32> to vector<4x128xf32>
    %212 = arith.mulf %208, %211 : vector<4x128xf32>
    %c3_168 = arith.constant 3 : index
    %c0_169 = arith.constant 0 : index
    %c0_170 = arith.constant 0 : index
    %213 = vector.load %arg10[%c3_168, %c0_169, %c0_170] : memref<9x8x4xf32, #tpu.memory_space<vmem>>, vector<1x8x4xf32>
    %214 = vector.shape_cast %213 : vector<1x8x4xf32> to vector<8x4xf32>
    %cst_171 = arith.constant dense<0.000000e+00> : vector<8x128xf32>
    %215 = tpu.matmul %214, %212, %cst_171 {dimension_numbers = #tpu.dot_dimension_numbers<[1], [0], [0], [1], [0, 0, 1, 1], [], []>} : vector<8x4xf32>, vector<4x128xf32>, vector<8x128xf32> -> vector<8x128xf32>
    %216 = arith.addf %207, %215 : vector<8x128xf32>
    %c4_172 = arith.constant 4 : index
    %c0_173 = arith.constant 0 : index
    %c0_174 = arith.constant 0 : index
    %217 = vector.load %arg10[%c4_172, %c0_173, %c0_174] : memref<9x8x4xf32, #tpu.memory_space<vmem>>, vector<1x8x4xf32>
    %218 = vector.shape_cast %217 : vector<1x8x4xf32> to vector<8x4xf32>
    %cst_175 = arith.constant dense<0.000000e+00> : vector<8x128xf32>
    %219 = tpu.matmul %218, %177, %cst_175 {dimension_numbers = #tpu.dot_dimension_numbers<[1], [0], [0], [1], [0, 0, 1, 1], [], []>} : vector<8x4xf32>, vector<4x128xf32>, vector<8x128xf32> -> vector<8x128xf32>
    %220 = arith.addf %216, %219 : vector<8x128xf32>
    %c127_i32 = arith.constant 127 : i32
    %221 = tpu.dynamic_rotate %177 by %c127_i32 dim 1 : vector<4x128xf32>, i32 -> vector<4x128xf32>
    %c5_176 = arith.constant 5 : index
    %c0_177 = arith.constant 0 : index
    %c0_178 = arith.constant 0 : index
    %222 = vector.load %arg13[%c5_176, %c0_177, %c0_178] : memref<9x1x128xf32, #tpu.memory_space<vmem>>, vector<1x1x128xf32>
    %223 = vector.shape_cast %222 : vector<1x1x128xf32> to vector<1x128xf32>
    %224 = vector.broadcast %223 : vector<1x128xf32> to vector<4x128xf32>
    %225 = arith.mulf %221, %224 : vector<4x128xf32>
    %c5_179 = arith.constant 5 : index
    %c0_180 = arith.constant 0 : index
    %c0_181 = arith.constant 0 : index
    %226 = vector.load %arg10[%c5_179, %c0_180, %c0_181] : memref<9x8x4xf32, #tpu.memory_space<vmem>>, vector<1x8x4xf32>
    %227 = vector.shape_cast %226 : vector<1x8x4xf32> to vector<8x4xf32>
    %cst_182 = arith.constant dense<0.000000e+00> : vector<8x128xf32>
    %228 = tpu.matmul %227, %225, %cst_182 {dimension_numbers = #tpu.dot_dimension_numbers<[1], [0], [0], [1], [0, 0, 1, 1], [], []>} : vector<8x4xf32>, vector<4x128xf32>, vector<8x128xf32> -> vector<8x128xf32>
    %229 = arith.addf %220, %228 : vector<8x128xf32>
    %c121_i32 = arith.constant 121 : i32
    %230 = tpu.dynamic_rotate %177 by %c121_i32 dim 1 : vector<4x128xf32>, i32 -> vector<4x128xf32>
    %c6_183 = arith.constant 6 : index
    %c0_184 = arith.constant 0 : index
    %c0_185 = arith.constant 0 : index
    %231 = vector.load %arg13[%c6_183, %c0_184, %c0_185] : memref<9x1x128xf32, #tpu.memory_space<vmem>>, vector<1x1x128xf32>
    %232 = vector.shape_cast %231 : vector<1x1x128xf32> to vector<1x128xf32>
    %233 = vector.broadcast %232 : vector<1x128xf32> to vector<4x128xf32>
    %234 = arith.mulf %230, %233 : vector<4x128xf32>
    %c6_186 = arith.constant 6 : index
    %c0_187 = arith.constant 0 : index
    %c0_188 = arith.constant 0 : index
    %235 = vector.load %arg10[%c6_186, %c0_187, %c0_188] : memref<9x8x4xf32, #tpu.memory_space<vmem>>, vector<1x8x4xf32>
    %236 = vector.shape_cast %235 : vector<1x8x4xf32> to vector<8x4xf32>
    %cst_189 = arith.constant dense<0.000000e+00> : vector<8x128xf32>
    %237 = tpu.matmul %236, %234, %cst_189 {dimension_numbers = #tpu.dot_dimension_numbers<[1], [0], [0], [1], [0, 0, 1, 1], [], []>} : vector<8x4xf32>, vector<4x128xf32>, vector<8x128xf32> -> vector<8x128xf32>
    %238 = arith.addf %229, %237 : vector<8x128xf32>
    %c120_i32 = arith.constant 120 : i32
    %239 = tpu.dynamic_rotate %177 by %c120_i32 dim 1 : vector<4x128xf32>, i32 -> vector<4x128xf32>
    %c7_190 = arith.constant 7 : index
    %c0_191 = arith.constant 0 : index
    %c0_192 = arith.constant 0 : index
    %240 = vector.load %arg13[%c7_190, %c0_191, %c0_192] : memref<9x1x128xf32, #tpu.memory_space<vmem>>, vector<1x1x128xf32>
    %241 = vector.shape_cast %240 : vector<1x1x128xf32> to vector<1x128xf32>
    %242 = vector.broadcast %241 : vector<1x128xf32> to vector<4x128xf32>
    %243 = arith.mulf %239, %242 : vector<4x128xf32>
    %c7_193 = arith.constant 7 : index
    %c0_194 = arith.constant 0 : index
    %c0_195 = arith.constant 0 : index
    %244 = vector.load %arg10[%c7_193, %c0_194, %c0_195] : memref<9x8x4xf32, #tpu.memory_space<vmem>>, vector<1x8x4xf32>
    %245 = vector.shape_cast %244 : vector<1x8x4xf32> to vector<8x4xf32>
    %cst_196 = arith.constant dense<0.000000e+00> : vector<8x128xf32>
    %246 = tpu.matmul %245, %243, %cst_196 {dimension_numbers = #tpu.dot_dimension_numbers<[1], [0], [0], [1], [0, 0, 1, 1], [], []>} : vector<8x4xf32>, vector<4x128xf32>, vector<8x128xf32> -> vector<8x128xf32>
    %247 = arith.addf %238, %246 : vector<8x128xf32>
    %c119_i32 = arith.constant 119 : i32
    %248 = tpu.dynamic_rotate %177 by %c119_i32 dim 1 : vector<4x128xf32>, i32 -> vector<4x128xf32>
    %c8_197 = arith.constant 8 : index
    %c0_198 = arith.constant 0 : index
    %c0_199 = arith.constant 0 : index
    %249 = vector.load %arg13[%c8_197, %c0_198, %c0_199] : memref<9x1x128xf32, #tpu.memory_space<vmem>>, vector<1x1x128xf32>
    %250 = vector.shape_cast %249 : vector<1x1x128xf32> to vector<1x128xf32>
    %251 = vector.broadcast %250 : vector<1x128xf32> to vector<4x128xf32>
    %252 = arith.mulf %248, %251 : vector<4x128xf32>
    %c8_200 = arith.constant 8 : index
    %c0_201 = arith.constant 0 : index
    %c0_202 = arith.constant 0 : index
    %253 = vector.load %arg10[%c8_200, %c0_201, %c0_202] : memref<9x8x4xf32, #tpu.memory_space<vmem>>, vector<1x8x4xf32>
    %254 = vector.shape_cast %253 : vector<1x8x4xf32> to vector<8x4xf32>
    %cst_203 = arith.constant dense<0.000000e+00> : vector<8x128xf32>
    %255 = tpu.matmul %254, %252, %cst_203 {dimension_numbers = #tpu.dot_dimension_numbers<[1], [0], [0], [1], [0, 0, 1, 1], [], []>} : vector<8x4xf32>, vector<4x128xf32>, vector<8x128xf32> -> vector<8x128xf32>
    %256 = arith.addf %247, %255 : vector<8x128xf32>
    %257 = vector.broadcast %178 : vector<8x1xf32> to vector<8x128xf32>
    %258 = arith.mulf %256, %257 : vector<8x128xf32>
    %259 = vector.broadcast %179 : vector<8x1xf32> to vector<8x128xf32>
    %260 = arith.addf %258, %259 : vector<8x128xf32>
    %cst_204 = arith.constant 0.000000e+00 : f32
    %261 = vector.broadcast %cst_204 : f32 to vector<8x128xf32>
    %262 = arith.maximumf %260, %261 : vector<8x128xf32>
    %c0_205 = arith.constant 0 : index
    %c0_206 = arith.constant 0 : index
    %263 = vector.load %arg14[%c0_205, %c0_206] : memref<128x16xf32, #tpu.memory_space<vmem>>, vector<128x16xf32>
    %c127_i32_207 = arith.constant 127 : i32
    %264 = tpu.dynamic_rotate %262 by %c127_i32_207 dim 1 : vector<8x128xf32>, i32 -> vector<8x128xf32>
    %265 = arith.maximumf %262, %264 : vector<8x128xf32>
    %c120_i32_208 = arith.constant 120 : i32
    %266 = tpu.dynamic_rotate %265 by %c120_i32_208 dim 1 : vector<8x128xf32>, i32 -> vector<8x128xf32>
    %267 = arith.maximumf %265, %266 : vector<8x128xf32>
    %cst_209 = arith.constant dense<0.000000e+00> : vector<8x16xf32>
    %268 = tpu.matmul %267, %263, %cst_209 {dimension_numbers = #tpu.dot_dimension_numbers<[1], [0], [0], [1], [0, 0, 1, 1], [], []>} : vector<8x128xf32>, vector<128x16xf32>, vector<8x16xf32> -> vector<8x16xf32>
    %c0_210 = arith.constant 0 : index
    %c0_211 = arith.constant 0 : index
    %269 = vector.load %arg16[%c0_210, %c0_211] : memref<1x32xf32, #tpu.memory_space<vmem>>, vector<1x32xf32>
    %270 = vector.extract_strided_slice %268 {offsets = [0, 0], sizes = [1, 16], strides = [1, 1]} : vector<8x16xf32> to vector<1x16xf32>
    %c0_212 = arith.constant 0 : index
    %c0_213 = arith.constant 0 : index
    %c0_214 = arith.constant 0 : index
    %271 = vector.load %arg15[%c0_212, %c0_213, %c0_214] : memref<8x16x32xf32, #tpu.memory_space<vmem>>, vector<1x16x32xf32>
    %272 = vector.shape_cast %271 : vector<1x16x32xf32> to vector<16x32xf32>
    %cst_215 = arith.constant dense<0.000000e+00> : vector<1x32xf32>
    %273 = tpu.matmul %270, %272, %cst_215 {dimension_numbers = #tpu.dot_dimension_numbers<[1], [0], [0], [1], [0, 0, 1, 1], [], []>} : vector<1x16xf32>, vector<16x32xf32>, vector<1x32xf32> -> vector<1x32xf32>
    %274 = arith.addf %269, %273 : vector<1x32xf32>
    %275 = vector.extract_strided_slice %268 {offsets = [1, 0], sizes = [1, 16], strides = [1, 1]} : vector<8x16xf32> to vector<1x16xf32>
    %c1_216 = arith.constant 1 : index
    %c0_217 = arith.constant 0 : index
    %c0_218 = arith.constant 0 : index
    %276 = vector.load %arg15[%c1_216, %c0_217, %c0_218] : memref<8x16x32xf32, #tpu.memory_space<vmem>>, vector<1x16x32xf32>
    %277 = vector.shape_cast %276 : vector<1x16x32xf32> to vector<16x32xf32>
    %cst_219 = arith.constant dense<0.000000e+00> : vector<1x32xf32>
    %278 = tpu.matmul %275, %277, %cst_219 {dimension_numbers = #tpu.dot_dimension_numbers<[1], [0], [0], [1], [0, 0, 1, 1], [], []>} : vector<1x16xf32>, vector<16x32xf32>, vector<1x32xf32> -> vector<1x32xf32>
    %279 = arith.addf %274, %278 : vector<1x32xf32>
    %280 = vector.extract_strided_slice %268 {offsets = [2, 0], sizes = [1, 16], strides = [1, 1]} : vector<8x16xf32> to vector<1x16xf32>
    %c2_220 = arith.constant 2 : index
    %c0_221 = arith.constant 0 : index
    %c0_222 = arith.constant 0 : index
    %281 = vector.load %arg15[%c2_220, %c0_221, %c0_222] : memref<8x16x32xf32, #tpu.memory_space<vmem>>, vector<1x16x32xf32>
    %282 = vector.shape_cast %281 : vector<1x16x32xf32> to vector<16x32xf32>
    %cst_223 = arith.constant dense<0.000000e+00> : vector<1x32xf32>
    %283 = tpu.matmul %280, %282, %cst_223 {dimension_numbers = #tpu.dot_dimension_numbers<[1], [0], [0], [1], [0, 0, 1, 1], [], []>} : vector<1x16xf32>, vector<16x32xf32>, vector<1x32xf32> -> vector<1x32xf32>
    %284 = arith.addf %279, %283 : vector<1x32xf32>
    %285 = vector.extract_strided_slice %268 {offsets = [3, 0], sizes = [1, 16], strides = [1, 1]} : vector<8x16xf32> to vector<1x16xf32>
    %c3_224 = arith.constant 3 : index
    %c0_225 = arith.constant 0 : index
    %c0_226 = arith.constant 0 : index
    %286 = vector.load %arg15[%c3_224, %c0_225, %c0_226] : memref<8x16x32xf32, #tpu.memory_space<vmem>>, vector<1x16x32xf32>
    %287 = vector.shape_cast %286 : vector<1x16x32xf32> to vector<16x32xf32>
    %cst_227 = arith.constant dense<0.000000e+00> : vector<1x32xf32>
    %288 = tpu.matmul %285, %287, %cst_227 {dimension_numbers = #tpu.dot_dimension_numbers<[1], [0], [0], [1], [0, 0, 1, 1], [], []>} : vector<1x16xf32>, vector<16x32xf32>, vector<1x32xf32> -> vector<1x32xf32>
    %289 = arith.addf %284, %288 : vector<1x32xf32>
    %290 = vector.extract_strided_slice %268 {offsets = [4, 0], sizes = [1, 16], strides = [1, 1]} : vector<8x16xf32> to vector<1x16xf32>
    %c4_228 = arith.constant 4 : index
    %c0_229 = arith.constant 0 : index
    %c0_230 = arith.constant 0 : index
    %291 = vector.load %arg15[%c4_228, %c0_229, %c0_230] : memref<8x16x32xf32, #tpu.memory_space<vmem>>, vector<1x16x32xf32>
    %292 = vector.shape_cast %291 : vector<1x16x32xf32> to vector<16x32xf32>
    %cst_231 = arith.constant dense<0.000000e+00> : vector<1x32xf32>
    %293 = tpu.matmul %290, %292, %cst_231 {dimension_numbers = #tpu.dot_dimension_numbers<[1], [0], [0], [1], [0, 0, 1, 1], [], []>} : vector<1x16xf32>, vector<16x32xf32>, vector<1x32xf32> -> vector<1x32xf32>
    %294 = arith.addf %289, %293 : vector<1x32xf32>
    %295 = vector.extract_strided_slice %268 {offsets = [5, 0], sizes = [1, 16], strides = [1, 1]} : vector<8x16xf32> to vector<1x16xf32>
    %c5_232 = arith.constant 5 : index
    %c0_233 = arith.constant 0 : index
    %c0_234 = arith.constant 0 : index
    %296 = vector.load %arg15[%c5_232, %c0_233, %c0_234] : memref<8x16x32xf32, #tpu.memory_space<vmem>>, vector<1x16x32xf32>
    %297 = vector.shape_cast %296 : vector<1x16x32xf32> to vector<16x32xf32>
    %cst_235 = arith.constant dense<0.000000e+00> : vector<1x32xf32>
    %298 = tpu.matmul %295, %297, %cst_235 {dimension_numbers = #tpu.dot_dimension_numbers<[1], [0], [0], [1], [0, 0, 1, 1], [], []>} : vector<1x16xf32>, vector<16x32xf32>, vector<1x32xf32> -> vector<1x32xf32>
    %299 = arith.addf %294, %298 : vector<1x32xf32>
    %300 = vector.extract_strided_slice %268 {offsets = [6, 0], sizes = [1, 16], strides = [1, 1]} : vector<8x16xf32> to vector<1x16xf32>
    %c6_236 = arith.constant 6 : index
    %c0_237 = arith.constant 0 : index
    %c0_238 = arith.constant 0 : index
    %301 = vector.load %arg15[%c6_236, %c0_237, %c0_238] : memref<8x16x32xf32, #tpu.memory_space<vmem>>, vector<1x16x32xf32>
    %302 = vector.shape_cast %301 : vector<1x16x32xf32> to vector<16x32xf32>
    %cst_239 = arith.constant dense<0.000000e+00> : vector<1x32xf32>
    %303 = tpu.matmul %300, %302, %cst_239 {dimension_numbers = #tpu.dot_dimension_numbers<[1], [0], [0], [1], [0, 0, 1, 1], [], []>} : vector<1x16xf32>, vector<16x32xf32>, vector<1x32xf32> -> vector<1x32xf32>
    %304 = arith.addf %299, %303 : vector<1x32xf32>
    %305 = vector.extract_strided_slice %268 {offsets = [7, 0], sizes = [1, 16], strides = [1, 1]} : vector<8x16xf32> to vector<1x16xf32>
    %c7_240 = arith.constant 7 : index
    %c0_241 = arith.constant 0 : index
    %c0_242 = arith.constant 0 : index
    %306 = vector.load %arg15[%c7_240, %c0_241, %c0_242] : memref<8x16x32xf32, #tpu.memory_space<vmem>>, vector<1x16x32xf32>
    %307 = vector.shape_cast %306 : vector<1x16x32xf32> to vector<16x32xf32>
    %cst_243 = arith.constant dense<0.000000e+00> : vector<1x32xf32>
    %308 = tpu.matmul %305, %307, %cst_243 {dimension_numbers = #tpu.dot_dimension_numbers<[1], [0], [0], [1], [0, 0, 1, 1], [], []>} : vector<1x16xf32>, vector<16x32xf32>, vector<1x32xf32> -> vector<1x32xf32>
    %309 = arith.addf %304, %308 : vector<1x32xf32>
    %cst_244 = arith.constant 0.000000e+00 : f32
    %310 = vector.broadcast %cst_244 : f32 to vector<1x32xf32>
    %311 = arith.maximumf %309, %310 : vector<1x32xf32>
    %c0_245 = arith.constant 0 : index
    %c0_246 = arith.constant 0 : index
    %312 = vector.load %arg17[%c0_245, %c0_246] : memref<32x32xf32, #tpu.memory_space<vmem>>, vector<32x32xf32>
    %cst_247 = arith.constant dense<0.000000e+00> : vector<1x32xf32>
    %313 = tpu.matmul %311, %312, %cst_247 {dimension_numbers = #tpu.dot_dimension_numbers<[1], [0], [0], [1], [0, 0, 1, 1], [], []>} : vector<1x32xf32>, vector<32x32xf32>, vector<1x32xf32> -> vector<1x32xf32>
    %c0_248 = arith.constant 0 : index
    %c0_249 = arith.constant 0 : index
    %314 = vector.load %arg18[%c0_248, %c0_249] : memref<1x32xf32, #tpu.memory_space<vmem>>, vector<1x32xf32>
    %315 = arith.addf %313, %314 : vector<1x32xf32>
    %cst_250 = arith.constant 0.000000e+00 : f32
    %316 = vector.broadcast %cst_250 : f32 to vector<1x32xf32>
    %317 = arith.maximumf %315, %316 : vector<1x32xf32>
    %c0_251 = arith.constant 0 : index
    %c0_252 = arith.constant 0 : index
    %318 = vector.load %arg19[%c0_251, %c0_252] : memref<32x5xf32, #tpu.memory_space<vmem>>, vector<32x5xf32>
    %cst_253 = arith.constant dense<0.000000e+00> : vector<1x5xf32>
    %319 = tpu.matmul %317, %318, %cst_253 {dimension_numbers = #tpu.dot_dimension_numbers<[1], [0], [0], [1], [0, 0, 1, 1], [], []>} : vector<1x32xf32>, vector<32x5xf32>, vector<1x5xf32> -> vector<1x5xf32>
    %c0_254 = arith.constant 0 : index
    %c0_255 = arith.constant 0 : index
    %320 = vector.load %arg20[%c0_254, %c0_255] : memref<1x5xf32, #tpu.memory_space<vmem>>, vector<1x5xf32>
    %321 = arith.addf %319, %320 : vector<1x5xf32>
    %c0_256 = arith.constant 0 : index
    %c0_257 = arith.constant 0 : index
    %c0_258 = arith.constant 0 : index
    %322 = vector.load %arg21[%c0_256, %c0_257, %c0_258] : memref<1x1x5xf32, #tpu.memory_space<vmem>>, vector<1x1x5xf32>
    %323 = vector.shape_cast %322 : vector<1x1x5xf32> to vector<1x5xf32>
    %324 = vector.shape_cast %321 : vector<1x5xf32> to vector<1x1x5xf32>
    tpu.vector_store %arg21[%c0_256, %c0_257, %c0_258], %324 {strides = array<i32>} : memref<1x1x5xf32, #tpu.memory_space<vmem>>, vector<1x1x5xf32>,
    return
  }
  func.func @transform_0(%arg0: i32) -> (i32, i32, i32) {
    %c0_i32 = arith.constant 0 : i32
    %c0_i32_0 = arith.constant 0 : i32
    %c0_i32_1 = arith.constant 0 : i32
    return %arg0, %c0_i32, %c0_i32_0 : i32, i32, i32
  }
  func.func @transform_1(%arg0: i32) -> (i32, i32, i32) {
    %c0_i32 = arith.constant 0 : i32
    %c0_i32_0 = arith.constant 0 : i32
    %c0_i32_1 = arith.constant 0 : i32
    %c0_i32_2 = arith.constant 0 : i32
    return %c0_i32, %c0_i32_0, %c0_i32_1 : i32, i32, i32
  }
  func.func @transform_2(%arg0: i32) -> (i32, i32) {
    %c0_i32 = arith.constant 0 : i32
    %c0_i32_0 = arith.constant 0 : i32
    %c0_i32_1 = arith.constant 0 : i32
    return %c0_i32, %c0_i32_0 : i32, i32
  }
  func.func @transform_3(%arg0: i32) -> (i32, i32) {
    %c0_i32 = arith.constant 0 : i32
    %c0_i32_0 = arith.constant 0 : i32
    %c0_i32_1 = arith.constant 0 : i32
    return %c0_i32, %c0_i32_0 : i32, i32
  }
  func.func @transform_4(%arg0: i32) -> (i32, i32, i32) {
    %c0_i32 = arith.constant 0 : i32
    %c0_i32_0 = arith.constant 0 : i32
    %c0_i32_1 = arith.constant 0 : i32
    %c0_i32_2 = arith.constant 0 : i32
    return %c0_i32, %c0_i32_0, %c0_i32_1 : i32, i32, i32
  }
  func.func @transform_5(%arg0: i32) -> (i32, i32) {
    %c0_i32 = arith.constant 0 : i32
    %c0_i32_0 = arith.constant 0 : i32
    %c0_i32_1 = arith.constant 0 : i32
    return %c0_i32, %c0_i32_0 : i32, i32
  }
  func.func @transform_6(%arg0: i32) -> (i32, i32) {
    %c0_i32 = arith.constant 0 : i32
    %c0_i32_0 = arith.constant 0 : i32
    %c0_i32_1 = arith.constant 0 : i32
    return %c0_i32, %c0_i32_0 : i32, i32
  }
  func.func @transform_7(%arg0: i32) -> (i32, i32, i32) {
    %c0_i32 = arith.constant 0 : i32
    %c0_i32_0 = arith.constant 0 : i32
    %c0_i32_1 = arith.constant 0 : i32
    %c0_i32_2 = arith.constant 0 : i32
    return %c0_i32, %c0_i32_0, %c0_i32_1 : i32, i32, i32
  }
  func.func @transform_8(%arg0: i32) -> (i32, i32) {
    %c0_i32 = arith.constant 0 : i32
    %c0_i32_0 = arith.constant 0 : i32
    %c0_i32_1 = arith.constant 0 : i32
    return %c0_i32, %c0_i32_0 : i32, i32
  }
  func.func @transform_9(%arg0: i32) -> (i32, i32, i32) {
    %c0_i32 = arith.constant 0 : i32
    %c0_i32_0 = arith.constant 0 : i32
    %c0_i32_1 = arith.constant 0 : i32
    %c0_i32_2 = arith.constant 0 : i32
    return %c0_i32, %c0_i32_0, %c0_i32_1 : i32, i32, i32
  }
  func.func @transform_10(%arg0: i32) -> (i32, i32) {
    %c0_i32 = arith.constant 0 : i32
    %c0_i32_0 = arith.constant 0 : i32
    %c0_i32_1 = arith.constant 0 : i32
    return %c0_i32, %c0_i32_0 : i32, i32
  }
  func.func @transform_11(%arg0: i32) -> (i32, i32) {
    %c0_i32 = arith.constant 0 : i32
    %c0_i32_0 = arith.constant 0 : i32
    %c0_i32_1 = arith.constant 0 : i32
    return %c0_i32, %c0_i32_0 : i32, i32
  }
  func.func @transform_12(%arg0: i32) -> (i32, i32, i32) {
    %c0_i32 = arith.constant 0 : i32
    %c0_i32_0 = arith.constant 0 : i32
    %c0_i32_1 = arith.constant 0 : i32
    %c0_i32_2 = arith.constant 0 : i32
    return %c0_i32, %c0_i32_0, %c0_i32_1 : i32, i32, i32
  }
  func.func @transform_13(%arg0: i32) -> (i32, i32) {
    %c0_i32 = arith.constant 0 : i32
    %c0_i32_0 = arith.constant 0 : i32
    %c0_i32_1 = arith.constant 0 : i32
    return %c0_i32, %c0_i32_0 : i32, i32
  }
  func.func @transform_14(%arg0: i32) -> (i32, i32, i32) {
    %c0_i32 = arith.constant 0 : i32
    %c0_i32_0 = arith.constant 0 : i32
    %c0_i32_1 = arith.constant 0 : i32
    %c0_i32_2 = arith.constant 0 : i32
    return %c0_i32, %c0_i32_0, %c0_i32_1 : i32, i32, i32
  }
  func.func @transform_15(%arg0: i32) -> (i32, i32) {
    %c0_i32 = arith.constant 0 : i32
    %c0_i32_0 = arith.constant 0 : i32
    %c0_i32_1 = arith.constant 0 : i32
    return %c0_i32, %c0_i32_0 : i32, i32
  }
  func.func @transform_16(%arg0: i32) -> (i32, i32) {
    %c0_i32 = arith.constant 0 : i32
    %c0_i32_0 = arith.constant 0 : i32
    %c0_i32_1 = arith.constant 0 : i32
    return %c0_i32, %c0_i32_0 : i32, i32
  }
  func.func @transform_17(%arg0: i32) -> (i32, i32) {
    %c0_i32 = arith.constant 0 : i32
    %c0_i32_0 = arith.constant 0 : i32
    %c0_i32_1 = arith.constant 0 : i32
    return %c0_i32, %c0_i32_0 : i32, i32
  }
  func.func @transform_18(%arg0: i32) -> (i32, i32) {
    %c0_i32 = arith.constant 0 : i32
    %c0_i32_0 = arith.constant 0 : i32
    %c0_i32_1 = arith.constant 0 : i32
    return %c0_i32, %c0_i32_0 : i32, i32
  }
  func.func @transform_19(%arg0: i32) -> (i32, i32) {
    %c0_i32 = arith.constant 0 : i32
    %c0_i32_0 = arith.constant 0 : i32
    %c0_i32_1 = arith.constant 0 : i32
    return %c0_i32, %c0_i32_0 : i32, i32
  }
  func.func @transform_20(%arg0: i32) -> (i32, i32, i32) {
    %c0_i32 = arith.constant 0 : i32
    %c0_i32_0 = arith.constant 0 : i32
    %c0_i32_1 = arith.constant 0 : i32
    return %arg0, %c0_i32, %c0_i32_0 : i32, i32, i32
  }
}

</mosaic_0001>

<llo_original>
// kernel: tpu_custom_call.1
$region0: #{tpu_custom_call.1}
  #allocation0 [shape = 'u32[]', space=smem, size = 0x4, offset = 0x4, fixed_abs, tag = 'smem constant byte address 0x4 - core index']
  #allocation1 [shape = 'u32[144,128]{1,0:T(1,128)}', space=vmem, size = 0x12000, scoped, tag = 'internal scratch']
  %s0 = inlined_call_operand.vmem [shape: f32[2,3,256], index: 0, kind: input, shape index: {}]
  %s1 = inlined_call_operand.vmem [shape: f32[9,4,3], index: 1, kind: input, shape index: {}]
  %s2 = inlined_call_operand.vmem [shape: f32[4,1], index: 2, kind: input, shape index: {}]
  %s3 = inlined_call_operand.vmem [shape: f32[4,1], index: 3, kind: input, shape index: {}]
  %s4 = inlined_call_operand.vmem [shape: f32[9,4,4], index: 4, kind: input, shape index: {}]
  %s5 = inlined_call_operand.vmem [shape: f32[4,1], index: 5, kind: input, shape index: {}]
  %s6 = inlined_call_operand.vmem [shape: f32[4,1], index: 6, kind: input, shape index: {}]
  %s7 = inlined_call_operand.vmem [shape: f32[9,1,256], index: 7, kind: input, shape index: {}]
  %s8 = inlined_call_operand.vmem [shape: f32[256,128], index: 8, kind: input, shape index: {}]
  %s9 = inlined_call_operand.vmem [shape: f32[9,8,4], index: 9, kind: input, shape index: {}]
  %s10 = inlined_call_operand.vmem [shape: f32[8,1], index: 10, kind: input, shape index: {}]
  %s11 = inlined_call_operand.vmem [shape: f32[8,1], index: 11, kind: input, shape index: {}]
  %s12 = inlined_call_operand.vmem [shape: f32[9,1,128], index: 12, kind: input, shape index: {}]
  %s13 = inlined_call_operand.vmem [shape: f32[128,16], index: 13, kind: input, shape index: {}]
  %s14 = inlined_call_operand.vmem [shape: f32[8,16,32], index: 14, kind: input, shape index: {}]
  %s15 = inlined_call_operand.vmem [shape: f32[1,32], index: 15, kind: input, shape index: {}]
  %s16 = inlined_call_operand.vmem [shape: f32[32,32], index: 16, kind: input, shape index: {}]
  %s17 = inlined_call_operand.vmem [shape: f32[1,32], index: 17, kind: input, shape index: {}]
  %s18 = inlined_call_operand.vmem [shape: f32[32,5], index: 18, kind: input, shape index: {}]
  %s19 = inlined_call_operand.vmem [shape: f32[1,5], index: 19, kind: input, shape index: {}]
  %s20 = inlined_call_operand.hbm [shape: f32[2,1,5], index: 20, kind: output, shape index: {}]
  %s21 = sld [smem:[#allocation0]]
  $region113: #{tpu_custom_call.1} parent=0
    _
  %s23 = ssub.s32 1, %s21
  %s24 = scalar_select 0, %s23, %s21
  $region1: #{tpu_custom_call.1} parent=0
    #allocation2 [shape = 'u8[1024]{0}', space=vmem, size = 0x400, scoped, tag = 'output window, operand 0']
    #allocation3 [shape = 's32[2]{0}', space=sflag, size = 0x8, scoped, tag = 'scoped memory for tpu_custom_call.1']
    %25 = vsyncpa [#allocation3], 0
    %s26 = scalar_lea.sflag [#allocation3], 1
    %27 = vsyncpa %s26, 0
    loop: start=0, step=1, limit=4
    $region2: #{tpu_custom_call.1} parent=1 // loop_pre_header
      _
    $region3: #{tpu_custom_call.1} parent=1 // loop_header
      %s29 = sphi 0, %s33
      %p30 = scmp.ge.s32.totalorder %s29, 4
      %s39 = sphi 0, %s41
      %s42 = sphi 0, %s39
      %s43 = sphi 0, %s42
      %s59 = sphi 0, %s43
      %s63 = sphi 0, %s63
      %s65 = sphi 0, %s63
      %s66 = sphi 0, %s65
      %s80 = sphi 0, %s66
      %s84 = sphi 0, %s84
      %s86 = sphi 0, %s84
      %s87 = sphi 0, %s86
      %s101 = sphi 0, %s87
      %s105 = sphi 0, %s105
      %s107 = sphi 0, %s105
      %s108 = sphi 0, %s107
      %s122 = sphi 0, %s108
      %s126 = sphi 0, %s126
      %s128 = sphi 0, %s126
      %s129 = sphi 0, %s128
      %s143 = sphi 0, %s129
      %s147 = sphi 0, %s147
      %s149 = sphi 0, %s147
      %s150 = sphi 0, %s149
      %s164 = sphi 0, %s150
      %s168 = sphi 0, %s168
      %s170 = sphi 0, %s168
      %s171 = sphi 0, %s170
      %s185 = sphi 0, %s171
      %s189 = sphi 0, %s189
      %s191 = sphi 0, %s189
      %s192 = sphi 0, %s191
      %s206 = sphi 0, %s192
      %s210 = sphi 0, %s210
      %s212 = sphi 0, %s210
      %s213 = sphi 0, %s212
      %s227 = sphi 0, %s213
      %s231 = sphi 0, %s231
      %s233 = sphi 0, %s231
      %s234 = sphi 0, %s233
      %s248 = sphi 0, %s234
      %s252 = sphi 0, %s252
      %s254 = sphi 0, %s252
      %s255 = sphi 0, %s254
      %s269 = sphi 0, %s255
      %s273 = sphi 0, %s273
      %s275 = sphi 0, %s273
      %s276 = sphi 0, %s275
      %s290 = sphi 0, %s276
      %s294 = sphi 0, %s294
      %s296 = sphi 0, %s294
      %s297 = sphi 0, %s296
      %s311 = sphi 0, %s297
      %s315 = sphi 0, %s315
      %s317 = sphi 0, %s315
      %s318 = sphi 0, %s317
      %s332 = sphi 0, %s318
      %s336 = sphi 0, %s336
      %s338 = sphi 0, %s336
      %s339 = sphi 0, %s338
      %s353 = sphi 0, %s339
      %s357 = sphi 0, %s357
      %s359 = sphi 0, %s357
      %s360 = sphi 0, %s359
      %s374 = sphi 0, %s360
      %s378 = sphi 0, %s378
      %s380 = sphi 0, %s378
      %s381 = sphi 0, %s380
      %s395 = sphi 0, %s381
      %s399 = sphi 0, %s399
      %s401 = sphi 0, %s399
      %s402 = sphi 0, %s401
      %s416 = sphi 0, %s402
      %s420 = sphi 0, %s420
      %s422 = sphi 0, %s420
      %s423 = sphi 0, %s422
      %s437 = sphi 0, %s423
      %s441 = sphi 0, %s441
      %s443 = sphi 0, %s441
      %s444 = sphi 0, %s443
      %s458 = sphi 0, %s444
      %s464 = sphi 0, %s466
      %s467 = sphi 0, %s464
      %s468 = sphi 0, %s467
      %s484 = sphi 0, %s468
    $region4: #{tpu_custom_call.1} parent=1 // loop_header_branch
      %32 = sbr.rel (%p30) target = $region8
    $region5: #{tpu_custom_call.1} parent=1 // loop_body
      %s34 = ssub.s32 %s29, 1
      %s35 = ssub.s32 %s29, 2
      %s36 = sadd.s32 %s29, 1
      %s37 = ssub.s32 %s29, %s36
      %p38 = scmp.eq.s32.totalorder %s37, 0
      %s40 = sadd.s32 %s39, 1
      %s41 = scalar_select %p38, %s39, %s40
      %p44 = pneg %p38
      %p45 = scmp.eq.s32.totalorder %s29, 1
      %p46 = por %p44, %p45
      %p47 = scmp.ne.s32.totalorder %s39, %s42
      %p48 = scmp.eq.s32.totalorder %s29, 0
      %p49 = por %p47, %p48
      %p50 = scmp.ne.s32.totalorder %s39, %s42
      %p51 = scmp.eq.s32.totalorder %s34, 1
      %p52 = por %p50, %p51
      %p53 = scmp.ne.s32.totalorder %s42, %s43
      %p54 = scmp.eq.s32.totalorder %s34, 0
      %p55 = por %p53, %p54
      %p56 = scmp.ne.s32.totalorder %s42, %s43
      %p57 = scmp.eq.s32.totalorder %s35, 1
      %p58 = por %p56, %p57
      %p60 = scmp.ne.s32.totalorder %s43, %s59
      %p61 = scmp.eq.s32.totalorder %s35, 0
      %p62 = por %p60, %p61
      %s64 = sadd.s32 %s63, 1
      %p67 = scmp.eq.s32.totalorder %s29, 1
      %p68 = scmp.ne.s32.totalorder %s63, %s65
      %p69 = scmp.eq.s32.totalorder %s29, 0
      %p70 = por %p68, %p69
      %p71 = scmp.ne.s32.totalorder %s63, %s65
      %p72 = scmp.eq.s32.totalorder %s34, 1
      %p73 = por %p71, %p72
      %p74 = scmp.ne.s32.totalorder %s65, %s66
      %p75 = scmp.eq.s32.totalorder %s34, 0
      %p76 = por %p74, %p75
      %p77 = scmp.ne.s32.totalorder %s65, %s66
      %p78 = scmp.eq.s32.totalorder %s35, 1
      %p79 = por %p77, %p78
      %p81 = scmp.ne.s32.totalorder %s66, %s80
      %p82 = scmp.eq.s32.totalorder %s35, 0
      %p83 = por %p81, %p82
      %s85 = sadd.s32 %s84, 1
      %p88 = scmp.eq.s32.totalorder %s29, 1
      %p89 = scmp.ne.s32.totalorder %s84, %s86
      %p90 = scmp.eq.s32.totalorder %s29, 0
      %p91 = por %p89, %p90
      %p92 = scmp.ne.s32.totalorder %s84, %s86
      %p93 = scmp.eq.s32.totalorder %s34, 1
      %p94 = por %p92, %p93
      %p95 = scmp.ne.s32.totalorder %s86, %s87
      %p96 = scmp.eq.s32.totalorder %s34, 0
      %p97 = por %p95, %p96
      %p98 = scmp.ne.s32.totalorder %s86, %s87
      %p99 = scmp.eq.s32.totalorder %s35, 1
      %p100 = por %p98, %p99
      %p102 = scmp.ne.s32.totalorder %s87, %s101
      %p103 = scmp.eq.s32.totalorder %s35, 0
      %p104 = por %p102, %p103
      %s106 = sadd.s32 %s105, 1
      %p109 = scmp.eq.s32.totalorder %s29, 1
      %p110 = scmp.ne.s32.totalorder %s105, %s107
      %p111 = scmp.eq.s32.totalorder %s29, 0
      %p112 = por %p110, %p111
      %p113 = scmp.ne.s32.totalorder %s105, %s107
      %p114 = scmp.eq.s32.totalorder %s34, 1
      %p115 = por %p113, %p114
      %p116 = scmp.ne.s32.totalorder %s107, %s108
      %p117 = scmp.eq.s32.totalorder %s34, 0
      %p118 = por %p116, %p117
      %p119 = scmp.ne.s32.totalorder %s107, %s108
      %p120 = scmp.eq.s32.totalorder %s35, 1
      %p121 = por %p119, %p120
      %p123 = scmp.ne.s32.totalorder %s108, %s122
      %p124 = scmp.eq.s32.totalorder %s35, 0
      %p125 = por %p123, %p124
      %s127 = sadd.s32 %s126, 1
      %p130 = scmp.eq.s32.totalorder %s29, 1
      %p131 = scmp.ne.s32.totalorder %s126, %s128
      %p132 = scmp.eq.s32.totalorder %s29, 0
      %p133 = por %p131, %p132
      %p134 = scmp.ne.s32.totalorder %s126, %s128
      %p135 = scmp.eq.s32.totalorder %s34, 1
      %p136 = por %p134, %p135
      %p137 = scmp.ne.s32.totalorder %s128, %s129
      %p138 = scmp.eq.s32.totalorder %s34, 0
      %p139 = por %p137, %p138
      %p140 = scmp.ne.s32.totalorder %s128, %s129
      %p141 = scmp.eq.s32.totalorder %s35, 1
      %p142 = por %p140, %p141
      %p144 = scmp.ne.s32.totalorder %s129, %s143
      %p145 = scmp.eq.s32.totalorder %s35, 0
      %p146 = por %p144, %p145
      %s148 = sadd.s32 %s147, 1
      %p151 = scmp.eq.s32.totalorder %s29, 1
      %p152 = scmp.ne.s32.totalorder %s147, %s149
      %p153 = scmp.eq.s32.totalorder %s29, 0
      %p154 = por %p152, %p153
      %p155 = scmp.ne.s32.totalorder %s147, %s149
      %p156 = scmp.eq.s32.totalorder %s34, 1
      %p157 = por %p155, %p156
      %p158 = scmp.ne.s32.totalorder %s149, %s150
      %p159 = scmp.eq.s32.totalorder %s34, 0
      %p160 = por %p158, %p159
      %p161 = scmp.ne.s32.totalorder %s149, %s150
      %p162 = scmp.eq.s32.totalorder %s35, 1
      %p163 = por %p161, %p162
      %p165 = scmp.ne.s32.totalorder %s150, %s164
      %p166 = scmp.eq.s32.totalorder %s35, 0
      %p167 = por %p165, %p166
      %s169 = sadd.s32 %s168, 1
      %p172 = scmp.eq.s32.totalorder %s29, 1
      %p173 = scmp.ne.s32.totalorder %s168, %s170
      %p174 = scmp.eq.s32.totalorder %s29, 0
      %p175 = por %p173, %p174
      %p176 = scmp.ne.s32.totalorder %s168, %s170
      %p177 = scmp.eq.s32.totalorder %s34, 1
      %p178 = por %p176, %p177
      %p179 = scmp.ne.s32.totalorder %s170, %s171
      %p180 = scmp.eq.s32.totalorder %s34, 0
      %p181 = por %p179, %p180
      %p182 = scmp.ne.s32.totalorder %s170, %s171
      %p183 = scmp.eq.s32.totalorder %s35, 1
      %p184 = por %p182, %p183
      %p186 = scmp.ne.s32.totalorder %s171, %s185
      %p187 = scmp.eq.s32.totalorder %s35, 0
      %p188 = por %p186, %p187
      %s190 = sadd.s32 %s189, 1
      %p193 = scmp.eq.s32.totalorder %s29, 1
      %p194 = scmp.ne.s32.totalorder %s189, %s191
      %p195 = scmp.eq.s32.totalorder %s29, 0
      %p196 = por %p194, %p195
      %p197 = scmp.ne.s32.totalorder %s189, %s191
      %p198 = scmp.eq.s32.totalorder %s34, 1
      %p199 = por %p197, %p198
      %p200 = scmp.ne.s32.totalorder %s191, %s192
      %p201 = scmp.eq.s32.totalorder %s34, 0
      %p202 = por %p200, %p201
      %p203 = scmp.ne.s32.totalorder %s191, %s192
      %p204 = scmp.eq.s32.totalorder %s35, 1
      %p205 = por %p203, %p204
      %p207 = scmp.ne.s32.totalorder %s192, %s206
      %p208 = scmp.eq.s32.totalorder %s35, 0
      %p209 = por %p207, %p208
      %s211 = sadd.s32 %s210, 1
      %p214 = scmp.eq.s32.totalorder %s29, 1
      %p215 = scmp.ne.s32.totalorder %s210, %s212
      %p216 = scmp.eq.s32.totalorder %s29, 0
      %p217 = por %p215, %p216
      %p218 = scmp.ne.s32.totalorder %s210, %s212
      %p219 = scmp.eq.s32.totalorder %s34, 1
      %p220 = por %p218, %p219
      %p221 = scmp.ne.s32.totalorder %s212, %s213
      %p222 = scmp.eq.s32.totalorder %s34, 0
      %p223 = por %p221, %p222
      %p224 = scmp.ne.s32.totalorder %s212, %s213
      %p225 = scmp.eq.s32.totalorder %s35, 1
      %p226 = por %p224, %p225
      %p228 = scmp.ne.s32.totalorder %s213, %s227
      %p229 = scmp.eq.s32.totalorder %s35, 0
      %p230 = por %p228, %p229
      %s232 = sadd.s32 %s231, 1
      %p235 = scmp.eq.s32.totalorder %s29, 1
      %p236 = scmp.ne.s32.totalorder %s231, %s233
      %p237 = scmp.eq.s32.totalorder %s29, 0
      %p238 = por %p236, %p237
      %p239 = scmp.ne.s32.totalorder %s231, %s233
      %p240 = scmp.eq.s32.totalorder %s34, 1
      %p241 = por %p239, %p240
      %p242 = scmp.ne.s32.totalorder %s233, %s234
      %p243 = scmp.eq.s32.totalorder %s34, 0
      %p244 = por %p242, %p243
      %p245 = scmp.ne.s32.totalorder %s233, %s234
      %p246 = scmp.eq.s32.totalorder %s35, 1
      %p247 = por %p245, %p246
      %p249 = scmp.ne.s32.totalorder %s234, %s248
      %p250 = scmp.eq.s32.totalorder %s35, 0
      %p251 = por %p249, %p250
      %s253 = sadd.s32 %s252, 1
      %p256 = scmp.eq.s32.totalorder %s29, 1
      %p257 = scmp.ne.s32.totalorder %s252, %s254
      %p258 = scmp.eq.s32.totalorder %s29, 0
      %p259 = por %p257, %p258
      %p260 = scmp.ne.s32.totalorder %s252, %s254
      %p261 = scmp.eq.s32.totalorder %s34, 1
      %p262 = por %p260, %p261
      %p263 = scmp.ne.s32.totalorder %s254, %s255
      %p264 = scmp.eq.s32.totalorder %s34, 0
      %p265 = por %p263, %p264
      %p266 = scmp.ne.s32.totalorder %s254, %s255
      %p267 = scmp.eq.s32.totalorder %s35, 1
      %p268 = por %p266, %p267
      %p270 = scmp.ne.s32.totalorder %s255, %s269
      %p271 = scmp.eq.s32.totalorder %s35, 0
      %p272 = por %p270, %p271
      %s274 = sadd.s32 %s273, 1
      %p277 = scmp.eq.s32.totalorder %s29, 1
      %p278 = scmp.ne.s32.totalorder %s273, %s275
      %p279 = scmp.eq.s32.totalorder %s29, 0
      %p280 = por %p278, %p279
      %p281 = scmp.ne.s32.totalorder %s273, %s275
      %p282 = scmp.eq.s32.totalorder %s34, 1
      %p283 = por %p281, %p282
      %p284 = scmp.ne.s32.totalorder %s275, %s276
      %p285 = scmp.eq.s32.totalorder %s34, 0
      %p286 = por %p284, %p285
      %p287 = scmp.ne.s32.totalorder %s275, %s276
      %p288 = scmp.eq.s32.totalorder %s35, 1
      %p289 = por %p287, %p288
      %p291 = scmp.ne.s32.totalorder %s276, %s290
      %p292 = scmp.eq.s32.totalorder %s35, 0
      %p293 = por %p291, %p292
      %s295 = sadd.s32 %s294, 1
      %p298 = scmp.eq.s32.totalorder %s29, 1
      %p299 = scmp.ne.s32.totalorder %s294, %s296
      %p300 = scmp.eq.s32.totalorder %s29, 0
      %p301 = por %p299, %p300
      %p302 = scmp.ne.s32.totalorder %s294, %s296
      %p303 = scmp.eq.s32.totalorder %s34, 1
      %p304 = por %p302, %p303
      %p305 = scmp.ne.s32.totalorder %s296, %s297
      %p306 = scmp.eq.s32.totalorder %s34, 0
      %p307 = por %p305, %p306
      %p308 = scmp.ne.s32.totalorder %s296, %s297
      %p309 = scmp.eq.s32.totalorder %s35, 1
      %p310 = por %p308, %p309
      %p312 = scmp.ne.s32.totalorder %s297, %s311
      %p313 = scmp.eq.s32.totalorder %s35, 0
      %p314 = por %p312, %p313
      %s316 = sadd.s32 %s315, 1
      %p319 = scmp.eq.s32.totalorder %s29, 1
      %p320 = scmp.ne.s32.totalorder %s315, %s317
      %p321 = scmp.eq.s32.totalorder %s29, 0
      %p322 = por %p320, %p321
      %p323 = scmp.ne.s32.totalorder %s315, %s317
      %p324 = scmp.eq.s32.totalorder %s34, 1
      %p325 = por %p323, %p324
      %p326 = scmp.ne.s32.totalorder %s317, %s318
      %p327 = scmp.eq.s32.totalorder %s34, 0
      %p328 = por %p326, %p327
      %p329 = scmp.ne.s32.totalorder %s317, %s318
      %p330 = scmp.eq.s32.totalorder %s35, 1
      %p331 = por %p329, %p330
      %p333 = scmp.ne.s32.totalorder %s318, %s332
      %p334 = scmp.eq.s32.totalorder %s35, 0
      %p335 = por %p333, %p334
      %s337 = sadd.s32 %s336, 1
      %p340 = scmp.eq.s32.totalorder %s29, 1
      %p341 = scmp.ne.s32.totalorder %s336, %s338
      %p342 = scmp.eq.s32.totalorder %s29, 0
      %p343 = por %p341, %p342
      %p344 = scmp.ne.s32.totalorder %s336, %s338
      %p345 = scmp.eq.s32.totalorder %s34, 1
      %p346 = por %p344, %p345
      %p347 = scmp.ne.s32.totalorder %s338, %s339
      %p348 = scmp.eq.s32.totalorder %s34, 0
      %p349 = por %p347, %p348
      %p350 = scmp.ne.s32.totalorder %s338, %s339
      %p351 = scmp.eq.s32.totalorder %s35, 1
      %p352 = por %p350, %p351
      %p354 = scmp.ne.s32.totalorder %s339, %s353
      %p355 = scmp.eq.s32.totalorder %s35, 0
      %p356 = por %p354, %p355
      %s358 = sadd.s32 %s357, 1
      %p361 = scmp.eq.s32.totalorder %s29, 1
      %p362 = scmp.ne.s32.totalorder %s357, %s359
      %p363 = scmp.eq.s32.totalorder %s29, 0
      %p364 = por %p362, %p363
      %p365 = scmp.ne.s32.totalorder %s357, %s359
      %p366 = scmp.eq.s32.totalorder %s34, 1
      %p367 = por %p365, %p366
      %p368 = scmp.ne.s32.totalorder %s359, %s360
      %p369 = scmp.eq.s32.totalorder %s34, 0
      %p370 = por %p368, %p369
      %p371 = scmp.ne.s32.totalorder %s359, %s360
      %p372 = scmp.eq.s32.totalorder %s35, 1
      %p373 = por %p371, %p372
      %p375 = scmp.ne.s32.totalorder %s360, %s374
      %p376 = scmp.eq.s32.totalorder %s35, 0
      %p377 = por %p375, %p376
      %s379 = sadd.s32 %s378, 1
      %p382 = scmp.eq.s32.totalorder %s29, 1
      %p383 = scmp.ne.s32.totalorder %s378, %s380
      %p384 = scmp.eq.s32.totalorder %s29, 0
      %p385 = por %p383, %p384
      %p386 = scmp.ne.s32.totalorder %s378, %s380
      %p387 = scmp.eq.s32.totalorder %s34, 1
      %p388 = por %p386, %p387
      %p389 = scmp.ne.s32.totalorder %s380, %s381
      %p390 = scmp.eq.s32.totalorder %s34, 0
      %p391 = por %p389, %p390
      %p392 = scmp.ne.s32.totalorder %s380, %s381
      %p393 = scmp.eq.s32.totalorder %s35, 1
      %p394 = por %p392, %p393
      %p396 = scmp.ne.s32.totalorder %s381, %s395
      %p397 = scmp.eq.s32.totalorder %s35, 0
      %p398 = por %p396, %p397
      %s400 = sadd.s32 %s399, 1
      %p403 = scmp.eq.s32.totalorder %s29, 1
      %p404 = scmp.ne.s32.totalorder %s399, %s401
      %p405 = scmp.eq.s32.totalorder %s29, 0
      %p406 = por %p404, %p405
      %p407 = scmp.ne.s32.totalorder %s399, %s401
      %p408 = scmp.eq.s32.totalorder %s34, 1
      %p409 = por %p407, %p408
      %p410 = scmp.ne.s32.totalorder %s401, %s402
      %p411 = scmp.eq.s32.totalorder %s34, 0
      %p412 = por %p410, %p411
      %p413 = scmp.ne.s32.totalorder %s401, %s402
      %p414 = scmp.eq.s32.totalorder %s35, 1
      %p415 = por %p413, %p414
      %p417 = scmp.ne.s32.totalorder %s402, %s416
      %p418 = scmp.eq.s32.totalorder %s35, 0
      %p419 = por %p417, %p418
      %s421 = sadd.s32 %s420, 1
      %p424 = scmp.eq.s32.totalorder %s29, 1
      %p425 = scmp.ne.s32.totalorder %s420, %s422
      %p426 = scmp.eq.s32.totalorder %s29, 0
      %p427 = por %p425, %p426
      %p428 = scmp.ne.s32.totalorder %s420, %s422
      %p429 = scmp.eq.s32.totalorder %s34, 1
      %p430 = por %p428, %p429
      %p431 = scmp.ne.s32.totalorder %s422, %s423
      %p432 = scmp.eq.s32.totalorder %s34, 0
      %p433 = por %p431, %p432
      %p434 = scmp.ne.s32.totalorder %s422, %s423
      %p435 = scmp.eq.s32.totalorder %s35, 1
      %p436 = por %p434, %p435
      %p438 = scmp.ne.s32.totalorder %s423, %s437
      %p439 = scmp.eq.s32.totalorder %s35, 0
      %p440 = por %p438, %p439
      %s442 = sadd.s32 %s441, 1
      %p445 = scmp.eq.s32.totalorder %s29, 1
      %p446 = scmp.ne.s32.totalorder %s441, %s443
      %p447 = scmp.eq.s32.totalorder %s29, 0
      %p448 = por %p446, %p447
      %p449 = scmp.ne.s32.totalorder %s441, %s443
      %p450 = scmp.eq.s32.totalorder %s34, 1
      %p451 = por %p449, %p450
      %p452 = scmp.ne.s32.totalorder %s443, %s444
      %p453 = scmp.eq.s32.totalorder %s34, 0
      %p454 = por %p452, %p453
      %p455 = scmp.ne.s32.totalorder %s443, %s444
      %p456 = scmp.eq.s32.totalorder %s35, 1
      %p457 = por %p455, %p456
      %p459 = scmp.ne.s32.totalorder %s444, %s458
      %p460 = scmp.eq.s32.totalorder %s35, 0
      %p461 = por %p459, %p460
      %s462 = ssub.s32 %s29, %s36
      %p463 = scmp.eq.s32.totalorder %s462, 0
      %s465 = sadd.s32 %s464, 1
      %s466 = scalar_select %p463, %s464, %s465
      %p469 = pneg %p463
      %p470 = scmp.eq.s32.totalorder %s29, 1
      %p471 = por %p469, %p470
      %p472 = scmp.ne.s32.totalorder %s464, %s467
      %p473 = scmp.eq.s32.totalorder %s29, 0
      %p474 = por %p472, %p473
      %p475 = scmp.ne.s32.totalorder %s464, %s467
      %p476 = scmp.eq.s32.totalorder %s34, 1
      %p477 = por %p475, %p476
      %p478 = scmp.ne.s32.totalorder %s467, %s468
      %p479 = scmp.eq.s32.totalorder %s34, 0
      %p480 = por %p478, %p479
      %p481 = scmp.ne.s32.totalorder %s467, %s468
      %p482 = scmp.eq.s32.totalorder %s35, 1
      %p483 = por %p481, %p482
      %p485 = scmp.ne.s32.totalorder %s468, %s484
      %p486 = scmp.eq.s32.totalorder %s35, 0
      %p487 = por %p485, %p486
      %p488 = scmp.le.s32.totalorder 1, %s29
      %p489 = scmp.lt.s32.totalorder %s29, 3
      %p490 = pnand %p488, %p489
      %p491 = pneg %p490
      // Predicated region
      $region9: #{tpu_custom_call.1} parent=5 // pred_check
        _
      $region10: #{tpu_custom_call.1} parent=5 // pred_check_branch
        %493 = sbr.rel (%p490) target = $region12
      $region11: #{tpu_custom_call.1} parent=5 // pred_region
        %s494 = ssub.s32 %s29, 1
        // Predicated region
        $region13: #{tpu_custom_call.1} parent=11 // pred_check
          %p495 = pneg %p76
        $region14: #{tpu_custom_call.1} parent=11 // pred_check_branch
          %497 = sbr.rel (%p495) target = $region16
        $region15: #{tpu_custom_call.1} parent=11 // pred_region
          _
        $region16: #{tpu_custom_call.1} parent=11 // pred_fallthru
          _
        // Predicated region
        $region17: #{tpu_custom_call.1} parent=11 // pred_check
          %p498 = pneg %p97
        $region18: #{tpu_custom_call.1} parent=11 // pred_check_branch
          %500 = sbr.rel (%p498) target = $region20
        $region19: #{tpu_custom_call.1} parent=11 // pred_region
          _
        $region20: #{tpu_custom_call.1} parent=11 // pred_fallthru
          _
        // Predicated region
        $region21: #{tpu_custom_call.1} parent=11 // pred_check
          %p501 = pneg %p118
        $region22: #{tpu_custom_call.1} parent=11 // pred_check_branch
          %503 = sbr.rel (%p501) target = $region24
        $region23: #{tpu_custom_call.1} parent=11 // pred_region
          _
        $region24: #{tpu_custom_call.1} parent=11 // pred_fallthru
          _
        // Predicated region
        $region25: #{tpu_custom_call.1} parent=11 // pred_check
          %p504 = pneg %p139
        $region26: #{tpu_custom_call.1} parent=11 // pred_check_branch
          %506 = sbr.rel (%p504) target = $region28
        $region27: #{tpu_custom_call.1} parent=11 // pred_region
          _
        $region28: #{tpu_custom_call.1} parent=11 // pred_fallthru
          _
        // Predicated region
        $region29: #{tpu_custom_call.1} parent=11 // pred_check
          %p507 = pneg %p160
        $region30: #{tpu_custom_call.1} parent=11 // pred_check_branch
          %509 = sbr.rel (%p507) target = $region32
        $region31: #{tpu_custom_call.1} parent=11 // pred_region
          _
        $region32: #{tpu_custom_call.1} parent=11 // pred_fallthru
          _
        // Predicated region
        $region33: #{tpu_custom_call.1} parent=11 // pred_check
          %p510 = pneg %p181
        $region34: #{tpu_custom_call.1} parent=11 // pred_check_branch
          %512 = sbr.rel (%p510) target = $region36
        $region35: #{tpu_custom_call.1} parent=11 // pred_region
          _
        $region36: #{tpu_custom_call.1} parent=11 // pred_fallthru
          _
        // Predicated region
        $region37: #{tpu_custom_call.1} parent=11 // pred_check
          %p513 = pneg %p202
        $region38: #{tpu_custom_call.1} parent=11 // pred_check_branch
          %515 = sbr.rel (%p513) target = $region40
        $region39: #{tpu_custom_call.1} parent=11 // pred_region
          _
        $region40: #{tpu_custom_call.1} parent=11 // pred_fallthru
          _
        // Predicated region
        $region41: #{tpu_custom_call.1} parent=11 // pred_check
          %p516 = pneg %p223
        $region42: #{tpu_custom_call.1} parent=11 // pred_check_branch
          %518 = sbr.rel (%p516) target = $region44
        $region43: #{tpu_custom_call.1} parent=11 // pred_region
          _
        $region44: #{tpu_custom_call.1} parent=11 // pred_fallthru
          _
        // Predicated region
        $region45: #{tpu_custom_call.1} parent=11 // pred_check
          %p519 = pneg %p244
        $region46: #{tpu_custom_call.1} parent=11 // pred_check_branch
          %521 = sbr.rel (%p519) target = $region48
        $region47: #{tpu_custom_call.1} parent=11 // pred_region
          _
        $region48: #{tpu_custom_call.1} parent=11 // pred_fallthru
          _
        // Predicated region
        $region49: #{tpu_custom_call.1} parent=11 // pred_check
          %p522 = pneg %p265
        $region50: #{tpu_custom_call.1} parent=11 // pred_check_branch
          %524 = sbr.rel (%p522) target = $region52
        $region51: #{tpu_custom_call.1} parent=11 // pred_region
          _
        $region52: #{tpu_custom_call.1} parent=11 // pred_fallthru
          _
        // Predicated region
        $region53: #{tpu_custom_call.1} parent=11 // pred_check
          %p525 = pneg %p286
        $region54: #{tpu_custom_call.1} parent=11 // pred_check_branch
          %527 = sbr.rel (%p525) target = $region56
        $region55: #{tpu_custom_call.1} parent=11 // pred_region
          _
        $region56: #{tpu_custom_call.1} parent=11 // pred_fallthru
          _
        // Predicated region
        $region57: #{tpu_custom_call.1} parent=11 // pred_check
          %p528 = pneg %p307
        $region58: #{tpu_custom_call.1} parent=11 // pred_check_branch
          %530 = sbr.rel (%p528) target = $region60
        $region59: #{tpu_custom_call.1} parent=11 // pred_region
          _
        $region60: #{tpu_custom_call.1} parent=11 // pred_fallthru
          _
        // Predicated region
        $region61: #{tpu_custom_call.1} parent=11 // pred_check
          %p531 = pneg %p328
        $region62: #{tpu_custom_call.1} parent=11 // pred_check_branch
          %533 = sbr.rel (%p531) target = $region64
        $region63: #{tpu_custom_call.1} parent=11 // pred_region
          _
        $region64: #{tpu_custom_call.1} parent=11 // pred_fallthru
          _
        // Predicated region
        $region65: #{tpu_custom_call.1} parent=11 // pred_check
          %p534 = pneg %p349
        $region66: #{tpu_custom_call.1} parent=11 // pred_check_branch
          %536 = sbr.rel (%p534) target = $region68
        $region67: #{tpu_custom_call.1} parent=11 // pred_region
          _
        $region68: #{tpu_custom_call.1} parent=11 // pred_fallthru
          _
        // Predicated region
        $region69: #{tpu_custom_call.1} parent=11 // pred_check
          %p537 = pneg %p370
        $region70: #{tpu_custom_call.1} parent=11 // pred_check_branch
          %539 = sbr.rel (%p537) target = $region72
        $region71: #{tpu_custom_call.1} parent=11 // pred_region
          _
        $region72: #{tpu_custom_call.1} parent=11 // pred_fallthru
          _
        // Predicated region
        $region73: #{tpu_custom_call.1} parent=11 // pred_check
          %p540 = pneg %p391
        $region74: #{tpu_custom_call.1} parent=11 // pred_check_branch
          %542 = sbr.rel (%p540) target = $region76
        $region75: #{tpu_custom_call.1} parent=11 // pred_region
          _
        $region76: #{tpu_custom_call.1} parent=11 // pred_fallthru
          _
        // Predicated region
        $region77: #{tpu_custom_call.1} parent=11 // pred_check
          %p543 = pneg %p412
        $region78: #{tpu_custom_call.1} parent=11 // pred_check_branch
          %545 = sbr.rel (%p543) target = $region80
        $region79: #{tpu_custom_call.1} parent=11 // pred_region
          _
        $region80: #{tpu_custom_call.1} parent=11 // pred_fallthru
          _
        // Predicated region
        $region81: #{tpu_custom_call.1} parent=11 // pred_check
          %p546 = pneg %p433
        $region82: #{tpu_custom_call.1} parent=11 // pred_check_branch
          %548 = sbr.rel (%p546) target = $region84
        $region83: #{tpu_custom_call.1} parent=11 // pred_region
          _
        $region84: #{tpu_custom_call.1} parent=11 // pred_fallthru
          _
        // Predicated region
        $region85: #{tpu_custom_call.1} parent=11 // pred_check
          %p549 = pneg %p454
        $region86: #{tpu_custom_call.1} parent=11 // pred_check_branch
          %551 = sbr.rel (%p549) target = $region88
        $region87: #{tpu_custom_call.1} parent=11 // pred_region
          _
        $region88: #{tpu_custom_call.1} parent=11 // pred_fallthru
          _
      $region12: #{tpu_custom_call.1} parent=5 // pred_fallthru
        _
      %p552 = scmp.lt.s32.totalorder %s29, 2
      // Predicated region
      $region89: #{tpu_custom_call.1} parent=5 // pred_check
        %p553 = pneg %p552
      $region90: #{tpu_custom_call.1} parent=5 // pred_check_branch
        %555 = sbr.rel (%p553) target = $region92
      $region91: #{tpu_custom_call.1} parent=5 // pred_region
        // Predicated region
        $region93: #{tpu_custom_call.1} parent=91 // pred_check
          %p556 = pneg %p49
        $region94: #{tpu_custom_call.1} parent=91 // pred_check_branch
          %558 = sbr.rel (%p556) target = $region96
        $region95: #{tpu_custom_call.1} parent=91 // pred_region
          %p559 = scmp.lt.s32.totalorder %s29, 1
          %s560 = scalar_select %p559, %s29, 1
          %s561 = smul.addr %s560, 2
          %s562 = smul.addr %s561, 4
          %s563 = scalar_lea.vmem %s0, %s562
        $region96: #{tpu_custom_call.1} parent=91 // pred_fallthru
          _
      $region92: #{tpu_custom_call.1} parent=5 // pred_fallthru
        _
      %p564 = scmp.le.s32.totalorder 1, %s29
      %p565 = scmp.lt.s32.totalorder %s29, 3
      %p566 = pnand %p564, %p565
      %p567 = pneg %p566
      // Predicated region
      $region97: #{tpu_custom_call.1} parent=5 // pred_check
        _
      $region98: #{tpu_custom_call.1} parent=5 // pred_check_branch
        %569 = sbr.rel (%p566) target = $region100
      $region99: #{tpu_custom_call.1} parent=5 // pred_region
        %s570 = ssub.s32 %s29, 1
        %p571 = scmp.lt.s32.totalorder %s34, 1
        %s572 = scalar_select %p571, %s34, 1
        %s573 = smul.addr %s572, 2
        %s574 = smul.addr %s573, 4
        %s575 = scalar_lea.vmem %s0, %s574
        %p576 = pneg %p55
        %p577 = pneg %p52
        %p578 = pneg %p76
        %p579 = pneg %p73
        %p580 = pneg %p97
        %p581 = pneg %p94
        %p582 = pneg %p118
        %p583 = pneg %p115
        %p584 = pneg %p139
        %p585 = pneg %p136
        %p586 = pneg %p160
        %p587 = pneg %p157
        %p588 = pneg %p181
        %p589 = pneg %p178
        %p590 = pneg %p202
        %p591 = pneg %p199
        %p592 = pneg %p223
        %p593 = pneg %p220
        %p594 = pneg %p244
        %p595 = pneg %p241
        %p596 = pneg %p265
        %p597 = pneg %p262
        %p598 = pneg %p286
        %p599 = pneg %p283
        %p600 = pneg %p307
        %p601 = pneg %p304
        %p602 = pneg %p328
        %p603 = pneg %p325
        %p604 = pneg %p349
        %p605 = pneg %p346
        %p606 = pneg %p370
        %p607 = pneg %p367
        %p608 = pneg %p391
        %p609 = pneg %p388
        %p610 = pneg %p412
        %p611 = pneg %p409
        %p612 = pneg %p433
        %p613 = pneg %p430
        %p614 = pneg %p454
        %p615 = pneg %p451
        %p616 = pneg %p480
        %p617 = pneg %p477
        %s618 = sand.u32 %s467, 1
        %s619 = scalar_lea.sflag [#allocation3], %s618
        %s620 = sand.u32 %s467, 1
        %s621 = scalar_lea.vmem [#allocation2], %s620
        %p622 = scmp.lt.s32.totalorder %s34, 1
        %s623 = scalar_select %p622, %s34, 1
        %s624 = smul.addr %s623, 2
        %s625 = smul.addr %s624, 4
        %s626 = scalar_lea.vmem %s0, %s625
        %v627 = vld [vmem:[%s626] sm:$0x77]
        %v628 = vld [vmem:[%s2] sm:$0xf]
        %v629 = vld [vmem:[%s3] sm:$0xf]
        %v631 = vcombine.high %v627, %v627
        %633 = vrot.lane.b32.xlu0 %v627, 17
        %v634 = vpop.permute.xlu0 %633
        %635 = vrot.lane.b32.xlu0 %v631, 17
        %v636 = vpop.permute.xlu0 %635
        %v637 = vlaneseq
        %v638 = vand.u32 %v637, 127
        %vm639 = vcmp.lt.s32.totalorder %v638, 17
        %v640 = vsel %vm639, %v634, %v636
        %v641 = vsel %vm639, %v636, %v634
        %v642 = vld [vmem:[%s7] sm:$0x3]
        %v644 = vlaneseq
        %v645 = vshrl.u32 %v644, 7
        %v646 = vsub.s32 0, %v645
        %v647 = vrot.slane %v642, %v646
        %v648 = vlaneseq
        %v649 = vshrl.u32 %v648, 7
        %v650 = vsub.s32 1, %v649
        %v651 = vrot.slane %v642, %v650
        %v654 = vmul.f32 %v641, %v647
        %v655 = vmul.f32 %v640, %v651
        %v656 = vld [vmem:[%s1] sm:$0xf]
        %657 = vrot.lane.b32.xlu0 %v627, 16
        %v658 = vpop.permute.xlu0 %657
        %659 = vrot.lane.b32.xlu0 %v631, 16
        %v660 = vpop.permute.xlu0 %659
        %vm661 = vcmp.lt.s32.totalorder %v638, 16
        %v662 = vsel %vm661, %v658, %v660
        %v663 = vsel %vm661, %v660, %v658
        %s664 = scalar_lea.vmem %s7, 2
        %v665 = vld [vmem:[%s664] sm:$0x3]
        %v667 = vlaneseq
        %v668 = vshrl.u32 %v667, 7
        %v669 = vsub.s32 0, %v668
        %v670 = vrot.slane %v665, %v669
        %v671 = vlaneseq
        %v672 = vshrl.u32 %v671, 7
        %v673 = vsub.s32 1, %v672
        %v674 = vrot.slane %v665, %v673
        %v677 = vmul.f32 %v663, %v670
        %v678 = vmul.f32 %v662, %v674
        %s679 = scalar_lea.vmem %s1, 4
        %v680 = vld [vmem:[%s679] sm:$0xf]
        %vm681 = vcmask 23552
        %v683 = vsel %vm681, %v680, 0
        %vm685 = vcmask 1042432
        %v687 = vsel %vm685, %v677, 0
        %v690 = vsel %vm685, %v678, 0
        %692 = vmatprep.subr.mxu0 %v690
        %693 = vmatpush1.msra.mxu0 %v687
        %694 = vmatprep.subr.mxu0 0.0
        %695 = vmatpush1.msra.mxu0 0.0
        %696 = vmatprep.subr.mxu0 0.0
        %697 = vmatpush1.msra.mxu0 0.0
        %698 = vmatprep.subr.mxu0 0.0
        %699 = vmatpush1.msra.mxu0 0.0
        %700 = vmatprep.subr.mxu0 0.0
        %701 = vmatpush1.msra.mxu0 0.0
        %702 = vmatprep.subr.mxu0 0.0
        %703 = vmatpush1.msra.mxu0 0.0
        %704 = vmatprep.subr.mxu0 0.0
        %705 = vmatpush1.msra.mxu0 0.0
        %706 = vmatprep.subr.mxu0 0.0
        %707 = vmatpush1.msra.mxu0 0.0
        %708 = vmatprep.subr.mxu0 0.0
        %709 = vmatpush1.msra.mxu0 0.0
        %710 = vmatprep.subr.mxu0 0.0
        %711 = vmatpush1.msra.mxu0 0.0
        %712 = vmatprep.subr.mxu0 0.0
        %713 = vmatpush1.msra.mxu0 0.0
        %714 = vmatprep.subr.mxu0 0.0
        %715 = vmatpush1.msra.mxu0 0.0
        %716 = vmatprep.subr.mxu0 0.0
        %717 = vmatpush1.msra.mxu0 0.0
        %718 = vmatprep.subr.mxu0 0.0
        %719 = vmatpush1.msra.mxu0 0.0
        %720 = vmatprep.subr.mxu0 0.0
        %721 = vmatpush1.msra.mxu0 0.0
        %722 = vmatprep.subr.mxu0 0.0
        %723 = vmatpush1.msra.mxu0 0.0
        %724 = vmatprep.subr.mxu0 0.0
        %725 = vmatpush1.msra.mxu0 0.0
        %726 = vmatprep.subr.mxu0 0.0
        %727 = vmatpush1.msra.mxu0 0.0
        %728 = vmatprep.subr.mxu0 0.0
        %729 = vmatpush1.msra.mxu0 0.0
        %730 = vmatprep.subr.mxu0 0.0
        %731 = vmatpush1.msra.mxu0 0.0
        %732 = vmatprep.subr.mxu0 0.0
        %733 = vmatpush1.msra.mxu0 0.0
        %734 = vmatprep.subr.mxu0 0.0
        %735 = vmatpush1.msra.mxu0 0.0
        %736 = vmatprep.subr.mxu0 0.0
        %737 = vmatpush1.msra.mxu0 0.0
        %738 = vmatprep.subr.mxu0 0.0
        %739 = vmatpush1.msra.mxu0 0.0
        %740 = vmatprep.subr.mxu0 0.0
        %741 = vmatpush1.msra.mxu0 0.0
        %742 = vmatprep.subr.mxu0 0.0
        %743 = vmatpush1.msra.mxu0 0.0
        %744 = vmatprep.subr.mxu0 0.0
        %745 = vmatpush1.msra.mxu0 0.0
        %746 = vmatprep.subr.mxu0 0.0
        %747 = vmatpush1.msra.mxu0 0.0
        %748 = vmatprep.subr.mxu0 0.0
        %749 = vmatpush1.msra.mxu0 0.0
        %750 = vmatprep.subr.mxu0 0.0
        %751 = vmatpush1.msra.mxu0 0.0
        %752 = vmatprep.subr.mxu0 0.0
        %753 = vmatpush1.msra.mxu0 0.0
        %754 = vmatprep.subr.mxu0 0.0
        %755 = vmatpush1.msra.mxu0 0.0
        %756 = vmatprep.mubr.f32.mxu0 0.0
        %757 = vmatmul.mubr.f32.gmra.mrb[0].mxu0 %v683
        %v758 = vpop.f32.mrb[0].mxu0
        %v759 = vadd.f32 0.0, %v758
        %v760 = vpop.f32.mrb[0].mxu0
        %v761 = vadd.f32 0.0, %v760
        %762 = vdwg.mxu0
        %v764 = vsel %vm681, %v656, 0
        %v767 = vsel %vm685, %v654, 0
        %v770 = vsel %vm685, %v655, 0
        %772 = vmatprep.subr.mxu0 %v770
        %773 = vmatpush1.msra.mxu0 %v767
        %774 = vmatprep.subr.mxu0 0.0
        %775 = vmatpush1.msra.mxu0 0.0
        %776 = vmatprep.subr.mxu0 0.0
        %777 = vmatpush1.msra.mxu0 0.0
        %778 = vmatprep.subr.mxu0 0.0
        %779 = vmatpush1.msra.mxu0 0.0
        %780 = vmatprep.subr.mxu0 0.0
        %781 = vmatpush1.msra.mxu0 0.0
        %782 = vmatprep.subr.mxu0 0.0
        %783 = vmatpush1.msra.mxu0 0.0
        %784 = vmatprep.subr.mxu0 0.0
        %785 = vmatpush1.msra.mxu0 0.0
        %786 = vmatprep.subr.mxu0 0.0
        %787 = vmatpush1.msra.mxu0 0.0
        %788 = vmatprep.subr.mxu0 0.0
        %789 = vmatpush1.msra.mxu0 0.0
        %790 = vmatprep.subr.mxu0 0.0
        %791 = vmatpush1.msra.mxu0 0.0
        %792 = vmatprep.subr.mxu0 0.0
        %793 = vmatpush1.msra.mxu0 0.0
        %794 = vmatprep.subr.mxu0 0.0
        %795 = vmatpush1.msra.mxu0 0.0
        %796 = vmatprep.subr.mxu0 0.0
        %797 = vmatpush1.msra.mxu0 0.0
        %798 = vmatprep.subr.mxu0 0.0
        %799 = vmatpush1.msra.mxu0 0.0
        %800 = vmatprep.subr.mxu0 0.0
        %801 = vmatpush1.msra.mxu0 0.0
        %802 = vmatprep.subr.mxu0 0.0
        %803 = vmatpush1.msra.mxu0 0.0
        %804 = vmatprep.subr.mxu0 0.0
        %805 = vmatpush1.msra.mxu0 0.0
        %806 = vmatprep.subr.mxu0 0.0
        %807 = vmatpush1.msra.mxu0 0.0
        %808 = vmatprep.subr.mxu0 0.0
        %809 = vmatpush1.msra.mxu0 0.0
        %810 = vmatprep.subr.mxu0 0.0
        %811 = vmatpush1.msra.mxu0 0.0
        %812 = vmatprep.subr.mxu0 0.0
        %813 = vmatpush1.msra.mxu0 0.0
        %814 = vmatprep.subr.mxu0 0.0
        %815 = vmatpush1.msra.mxu0 0.0
        %816 = vmatprep.subr.mxu0 0.0
        %817 = vmatpush1.msra.mxu0 0.0
        %818 = vmatprep.subr.mxu0 0.0
        %819 = vmatpush1.msra.mxu0 0.0
        %820 = vmatprep.subr.mxu0 0.0
        %821 = vmatpush1.msra.mxu0 0.0
        %822 = vmatprep.subr.mxu0 0.0
        %823 = vmatpush1.msra.mxu0 0.0
        %824 = vmatprep.subr.mxu0 0.0
        %825 = vmatpush1.msra.mxu0 0.0
        %826 = vmatprep.subr.mxu0 0.0
        %827 = vmatpush1.msra.mxu0 0.0
        %828 = vmatprep.subr.mxu0 0.0
        %829 = vmatpush1.msra.mxu0 0.0
        %830 = vmatprep.subr.mxu0 0.0
        %831 = vmatpush1.msra.mxu0 0.0
        %832 = vmatprep.subr.mxu0 0.0
        %833 = vmatpush1.msra.mxu0 0.0
        %834 = vmatprep.subr.mxu0 0.0
        %835 = vmatpush1.msra.mxu0 0.0
        %836 = vmatprep.mubr.f32.mxu0 0.0
        %837 = vmatmul.mubr.f32.gmra.mrb[0].mxu0 %v764
        %v838 = vpop.f32.mrb[0].mxu0
        %v839 = vadd.f32 %v759, %v838
        %v840 = vpop.f32.mrb[0].mxu0
        %v841 = vadd.f32 %v761, %v840
        %842 = vdwg.mxu0
        %843 = vrot.lane.b32.xlu0 %v627, 15
        %v844 = vpop.permute.xlu0 %843
        %845 = vrot.lane.b32.xlu0 %v631, 15
        %v846 = vpop.permute.xlu0 %845
        %vm847 = vcmp.lt.s32.totalorder %v638, 15
        %v848 = vsel %vm847, %v844, %v846
        %v849 = vsel %vm847, %v846, %v844
        %s850 = scalar_lea.vmem %s7, 4
        %v851 = vld [vmem:[%s850] sm:$0x3]
        %v853 = vlaneseq
        %v854 = vshrl.u32 %v853, 7
        %v855 = vsub.s32 0, %v854
        %v856 = vrot.slane %v851, %v855
        %v857 = vlaneseq
        %v858 = vshrl.u32 %v857, 7
        %v859 = vsub.s32 1, %v858
        %v860 = vrot.slane %v851, %v859
        %v863 = vmul.f32 %v849, %v856
        %v864 = vmul.f32 %v848, %v860
        %s865 = scalar_lea.vmem %s1, 8
        %v866 = vld [vmem:[%s865] sm:$0xf]
        %v868 = vsel %vm681, %v866, 0
        %v871 = vsel %vm685, %v863, 0
        %v874 = vsel %vm685, %v864, 0
        %876 = vmatprep.subr.mxu0 %v874
        %877 = vmatpush1.msra.mxu0 %v871
        %878 = vmatprep.subr.mxu0 0.0
        %879 = vmatpush1.msra.mxu0 0.0
        %880 = vmatprep.subr.mxu0 0.0
        %881 = vmatpush1.msra.mxu0 0.0
        %882 = vmatprep.subr.mxu0 0.0
        %883 = vmatpush1.msra.mxu0 0.0
        %884 = vmatprep.subr.mxu0 0.0
        %885 = vmatpush1.msra.mxu0 0.0
        %886 = vmatprep.subr.mxu0 0.0
        %887 = vmatpush1.msra.mxu0 0.0
        %888 = vmatprep.subr.mxu0 0.0
        %889 = vmatpush1.msra.mxu0 0.0
        %890 = vmatprep.subr.mxu0 0.0
        %891 = vmatpush1.msra.mxu0 0.0
        %892 = vmatprep.subr.mxu0 0.0
        %893 = vmatpush1.msra.mxu0 0.0
        %894 = vmatprep.subr.mxu0 0.0
        %895 = vmatpush1.msra.mxu0 0.0
        %896 = vmatprep.subr.mxu0 0.0
        %897 = vmatpush1.msra.mxu0 0.0
        %898 = vmatprep.subr.mxu0 0.0
        %899 = vmatpush1.msra.mxu0 0.0
        %900 = vmatprep.subr.mxu0 0.0
        %901 = vmatpush1.msra.mxu0 0.0
        %902 = vmatprep.subr.mxu0 0.0
        %903 = vmatpush1.msra.mxu0 0.0
        %904 = vmatprep.subr.mxu0 0.0
        %905 = vmatpush1.msra.mxu0 0.0
        %906 = vmatprep.subr.mxu0 0.0
        %907 = vmatpush1.msra.mxu0 0.0
        %908 = vmatprep.subr.mxu0 0.0
        %909 = vmatpush1.msra.mxu0 0.0
        %910 = vmatprep.subr.mxu0 0.0
        %911 = vmatpush1.msra.mxu0 0.0
        %912 = vmatprep.subr.mxu0 0.0
        %913 = vmatpush1.msra.mxu0 0.0
        %914 = vmatprep.subr.mxu0 0.0
        %915 = vmatpush1.msra.mxu0 0.0
        %916 = vmatprep.subr.mxu0 0.0
        %917 = vmatpush1.msra.mxu0 0.0
        %918 = vmatprep.subr.mxu0 0.0
        %919 = vmatpush1.msra.mxu0 0.0
        %920 = vmatprep.subr.mxu0 0.0
        %921 = vmatpush1.msra.mxu0 0.0
        %922 = vmatprep.subr.mxu0 0.0
        %923 = vmatpush1.msra.mxu0 0.0
        %924 = vmatprep.subr.mxu0 0.0
        %925 = vmatpush1.msra.mxu0 0.0
        %926 = vmatprep.subr.mxu0 0.0
        %927 = vmatpush1.msra.mxu0 0.0
        %928 = vmatprep.subr.mxu0 0.0
        %929 = vmatpush1.msra.mxu0 0.0
        %930 = vmatprep.subr.mxu0 0.0
        %931 = vmatpush1.msra.mxu0 0.0
        %932 = vmatprep.subr.mxu0 0.0
        %933 = vmatpush1.msra.mxu0 0.0
        %934 = vmatprep.subr.mxu0 0.0
        %935 = vmatpush1.msra.mxu0 0.0
        %936 = vmatprep.subr.mxu0 0.0
        %937 = vmatpush1.msra.mxu0 0.0
        %938 = vmatprep.subr.mxu0 0.0
        %939 = vmatpush1.msra.mxu0 0.0
        %940 = vmatprep.mubr.f32.mxu0 0.0
        %941 = vmatmul.mubr.f32.gmra.mrb[0].mxu0 %v868
        %v942 = vpop.f32.mrb[0].mxu0
        %v943 = vadd.f32 0.0, %v942
        %v944 = vpop.f32.mrb[0].mxu0
        %v945 = vadd.f32 0.0, %v944
        %946 = vdwg.mxu0
        %v947 = vadd.f32 %v839, %v943
        %v948 = vadd.f32 %v841, %v945
        %949 = vrot.lane.b32.xlu0 %v627, 1
        %v950 = vpop.permute.xlu0 %949
        %951 = vrot.lane.b32.xlu0 %v631, 1
        %v952 = vpop.permute.xlu0 %951
        %vm953 = vcmp.lt.s32.totalorder %v638, 1
        %v954 = vsel %vm953, %v950, %v952
        %v955 = vsel %vm953, %v952, %v950
        %s956 = scalar_lea.vmem %s7, 6
        %v957 = vld [vmem:[%s956] sm:$0x3]
        %v959 = vlaneseq
        %v960 = vshrl.u32 %v959, 7
        %v961 = vsub.s32 0, %v960
        %v962 = vrot.slane %v957, %v961
        %v963 = vlaneseq
        %v964 = vshrl.u32 %v963, 7
        %v965 = vsub.s32 1, %v964
        %v966 = vrot.slane %v957, %v965
        %v969 = vmul.f32 %v955, %v962
        %v970 = vmul.f32 %v954, %v966
        %s971 = scalar_lea.vmem %s1, 12
        %v972 = vld [vmem:[%s971] sm:$0xf]
        %v974 = vsel %vm681, %v972, 0
        %v977 = vsel %vm685, %v969, 0
        %v980 = vsel %vm685, %v970, 0
        %982 = vmatprep.subr.mxu0 %v980
        %983 = vmatpush1.msra.mxu0 %v977
        %984 = vmatprep.subr.mxu0 0.0
        %985 = vmatpush1.msra.mxu0 0.0
        %986 = vmatprep.subr.mxu0 0.0
        %987 = vmatpush1.msra.mxu0 0.0
        %988 = vmatprep.subr.mxu0 0.0
        %989 = vmatpush1.msra.mxu0 0.0
        %990 = vmatprep.subr.mxu0 0.0
        %991 = vmatpush1.msra.mxu0 0.0
        %992 = vmatprep.subr.mxu0 0.0
        %993 = vmatpush1.msra.mxu0 0.0
        %994 = vmatprep.subr.mxu0 0.0
        %995 = vmatpush1.msra.mxu0 0.0
        %996 = vmatprep.subr.mxu0 0.0
        %997 = vmatpush1.msra.mxu0 0.0
        %998 = vmatprep.subr.mxu0 0.0
        %999 = vmatpush1.msra.mxu0 0.0
        %1000 = vmatprep.subr.mxu0 0.0
        %1001 = vmatpush1.msra.mxu0 0.0
        %1002 = vmatprep.subr.mxu0 0.0
        %1003 = vmatpush1.msra.mxu0 0.0
        %1004 = vmatprep.subr.mxu0 0.0
        %1005 = vmatpush1.msra.mxu0 0.0
        %1006 = vmatprep.subr.mxu0 0.0
        %1007 = vmatpush1.msra.mxu0 0.0
        %1008 = vmatprep.subr.mxu0 0.0
        %1009 = vmatpush1.msra.mxu0 0.0
        %1010 = vmatprep.subr.mxu0 0.0
        %1011 = vmatpush1.msra.mxu0 0.0
        %1012 = vmatprep.subr.mxu0 0.0
        %1013 = vmatpush1.msra.mxu0 0.0
        %1014 = vmatprep.subr.mxu0 0.0
        %1015 = vmatpush1.msra.mxu0 0.0
        %1016 = vmatprep.subr.mxu0 0.0
        %1017 = vmatpush1.msra.mxu0 0.0
        %1018 = vmatprep.subr.mxu0 0.0
        %1019 = vmatpush1.msra.mxu0 0.0
        %1020 = vmatprep.subr.mxu0 0.0
        %1021 = vmatpush1.msra.mxu0 0.0
        %1022 = vmatprep.subr.mxu0 0.0
        %1023 = vmatpush1.msra.mxu0 0.0
        %1024 = vmatprep.subr.mxu0 0.0
        %1025 = vmatpush1.msra.mxu0 0.0
        %1026 = vmatprep.subr.mxu0 0.0
        %1027 = vmatpush1.msra.mxu0 0.0
        %1028 = vmatprep.subr.mxu0 0.0
        %1029 = vmatpush1.msra.mxu0 0.0
        %1030 = vmatprep.subr.mxu0 0.0
        %1031 = vmatpush1.msra.mxu0 0.0
        %1032 = vmatprep.subr.mxu0 0.0
        %1033 = vmatpush1.msra.mxu0 0.0
        %1034 = vmatprep.subr.mxu0 0.0
        %1035 = vmatpush1.msra.mxu0 0.0
        %1036 = vmatprep.subr.mxu0 0.0
        %1037 = vmatpush1.msra.mxu0 0.0
        %1038 = vmatprep.subr.mxu0 0.0
        %1039 = vmatpush1.msra.mxu0 0.0
        %1040 = vmatprep.subr.mxu0 0.0
        %1041 = vmatpush1.msra.mxu0 0.0
        %1042 = vmatprep.subr.mxu0 0.0
        %1043 = vmatpush1.msra.mxu0 0.0
        %1044 = vmatprep.subr.mxu0 0.0
        %1045 = vmatpush1.msra.mxu0 0.0
        %1046 = vmatprep.mubr.f32.mxu0 0.0
        %1047 = vmatmul.mubr.f32.gmra.mrb[0].mxu0 %v974
        %v1048 = vpop.f32.mrb[0].mxu0
        %v1049 = vadd.f32 0.0, %v1048
        %v1050 = vpop.f32.mrb[0].mxu0
        %v1051 = vadd.f32 0.0, %v1050
        %1052 = vdwg.mxu0
        %v1053 = vadd.f32 %v947, %v1049
        %v1054 = vadd.f32 %v948, %v1051
        %s1055 = scalar_lea.vmem %s1, 16
        %v1056 = vld [vmem:[%s1055] sm:$0xf]
        %v1058 = vsel %vm681, %v1056, 0
        %v1060 = vsel %vm685, %v627, 0
        %v1062 = vsel %vm685, %v631, 0
        %1064 = vmatprep.subr.mxu0 %v1062
        %1065 = vmatpush1.msra.mxu0 %v1060
        %1066 = vmatprep.subr.mxu0 0.0
        %1067 = vmatpush1.msra.mxu0 0.0
        %1068 = vmatprep.subr.mxu0 0.0
        %1069 = vmatpush1.msra.mxu0 0.0
        %1070 = vmatprep.subr.mxu0 0.0
        %1071 = vmatpush1.msra.mxu0 0.0
        %1072 = vmatprep.subr.mxu0 0.0
        %1073 = vmatpush1.msra.mxu0 0.0
        %1074 = vmatprep.subr.mxu0 0.0
        %1075 = vmatpush1.msra.mxu0 0.0
        %1076 = vmatprep.subr.mxu0 0.0
        %1077 = vmatpush1.msra.mxu0 0.0
        %1078 = vmatprep.subr.mxu0 0.0
        %1079 = vmatpush1.msra.mxu0 0.0
        %1080 = vmatprep.subr.mxu0 0.0
        %1081 = vmatpush1.msra.mxu0 0.0
        %1082 = vmatprep.subr.mxu0 0.0
        %1083 = vmatpush1.msra.mxu0 0.0
        %1084 = vmatprep.subr.mxu0 0.0
        %1085 = vmatpush1.msra.mxu0 0.0
        %1086 = vmatprep.subr.mxu0 0.0
        %1087 = vmatpush1.msra.mxu0 0.0
        %1088 = vmatprep.subr.mxu0 0.0
        %1089 = vmatpush1.msra.mxu0 0.0
        %1090 = vmatprep.subr.mxu0 0.0
        %1091 = vmatpush1.msra.mxu0 0.0
        %1092 = vmatprep.subr.mxu0 0.0
        %1093 = vmatpush1.msra.mxu0 0.0
        %1094 = vmatprep.subr.mxu0 0.0
        %1095 = vmatpush1.msra.mxu0 0.0
        %1096 = vmatprep.subr.mxu0 0.0
        %1097 = vmatpush1.msra.mxu0 0.0
        %1098 = vmatprep.subr.mxu0 0.0
        %1099 = vmatpush1.msra.mxu0 0.0
        %1100 = vmatprep.subr.mxu0 0.0
        %1101 = vmatpush1.msra.mxu0 0.0
        %1102 = vmatprep.subr.mxu0 0.0
        %1103 = vmatpush1.msra.mxu0 0.0
        %1104 = vmatprep.subr.mxu0 0.0
        %1105 = vmatpush1.msra.mxu0 0.0
        %1106 = vmatprep.subr.mxu0 0.0
        %1107 = vmatpush1.msra.mxu0 0.0
        %1108 = vmatprep.subr.mxu0 0.0
        %1109 = vmatpush1.msra.mxu0 0.0
        %1110 = vmatprep.subr.mxu0 0.0
        %1111 = vmatpush1.msra.mxu0 0.0
        %1112 = vmatprep.subr.mxu0 0.0
        %1113 = vmatpush1.msra.mxu0 0.0
        %1114 = vmatprep.subr.mxu0 0.0
        %1115 = vmatpush1.msra.mxu0 0.0
        %1116 = vmatprep.subr.mxu0 0.0
        %1117 = vmatpush1.msra.mxu0 0.0
        %1118 = vmatprep.subr.mxu0 0.0
        %1119 = vmatpush1.msra.mxu0 0.0
        %1120 = vmatprep.subr.mxu0 0.0
        %1121 = vmatpush1.msra.mxu0 0.0
        %1122 = vmatprep.subr.mxu0 0.0
        %1123 = vmatpush1.msra.mxu0 0.0
        %1124 = vmatprep.subr.mxu0 0.0
        %1125 = vmatpush1.msra.mxu0 0.0
        %1126 = vmatprep.subr.mxu0 0.0
        %1127 = vmatpush1.msra.mxu0 0.0
        %1128 = vmatprep.mubr.f32.mxu0 0.0
        %1129 = vmatmul.mubr.f32.gmra.mrb[0].mxu0 %v1058
        %v1130 = vpop.f32.mrb[0].mxu0
        %v1131 = vadd.f32 0.0, %v1130
        %v1132 = vpop.f32.mrb[0].mxu0
        %v1133 = vadd.f32 0.0, %v1132
        %1134 = vdwg.mxu0
        %v1135 = vadd.f32 %v1053, %v1131
        %v1136 = vadd.f32 %v1054, %v1133
        %1137 = vrot.lane.b32.xlu0 %v627, 127
        %v1138 = vpop.permute.xlu0 %1137
        %1139 = vrot.lane.b32.xlu0 %v631, 127
        %v1140 = vpop.permute.xlu0 %1139
        %vm1141 = vcmp.lt.s32.totalorder %v638, 127
        %v1142 = vsel %vm1141, %v1138, %v1140
        %v1143 = vsel %vm1141, %v1140, %v1138
        %s1144 = scalar_lea.vmem %s7, 10
        %v1145 = vld [vmem:[%s1144] sm:$0x3]
        %v1147 = vlaneseq
        %v1148 = vshrl.u32 %v1147, 7
        %v1149 = vsub.s32 0, %v1148
        %v1150 = vrot.slane %v1145, %v1149
        %v1151 = vlaneseq
        %v1152 = vshrl.u32 %v1151, 7
        %v1153 = vsub.s32 1, %v1152
        %v1154 = vrot.slane %v1145, %v1153
        %v1157 = vmul.f32 %v1142, %v1150
        %v1158 = vmul.f32 %v1143, %v1154
        %s1159 = scalar_lea.vmem %s1, 20
        %v1160 = vld [vmem:[%s1159] sm:$0xf]
        %v1162 = vsel %vm681, %v1160, 0
        %v1165 = vsel %vm685, %v1157, 0
        %v1168 = vsel %vm685, %v1158, 0
        %1170 = vmatprep.subr.mxu0 %v1168
        %1171 = vmatpush1.msra.mxu0 %v1165
        %1172 = vmatprep.subr.mxu0 0.0
        %1173 = vmatpush1.msra.mxu0 0.0
        %1174 = vmatprep.subr.mxu0 0.0
        %1175 = vmatpush1.msra.mxu0 0.0
        %1176 = vmatprep.subr.mxu0 0.0
        %1177 = vmatpush1.msra.mxu0 0.0
        %1178 = vmatprep.subr.mxu0 0.0
        %1179 = vmatpush1.msra.mxu0 0.0
        %1180 = vmatprep.subr.mxu0 0.0
        %1181 = vmatpush1.msra.mxu0 0.0
        %1182 = vmatprep.subr.mxu0 0.0
        %1183 = vmatpush1.msra.mxu0 0.0
        %1184 = vmatprep.subr.mxu0 0.0
        %1185 = vmatpush1.msra.mxu0 0.0
        %1186 = vmatprep.subr.mxu0 0.0
        %1187 = vmatpush1.msra.mxu0 0.0
        %1188 = vmatprep.subr.mxu0 0.0
        %1189 = vmatpush1.msra.mxu0 0.0
        %1190 = vmatprep.subr.mxu0 0.0
        %1191 = vmatpush1.msra.mxu0 0.0
        %1192 = vmatprep.subr.mxu0 0.0
        %1193 = vmatpush1.msra.mxu0 0.0
        %1194 = vmatprep.subr.mxu0 0.0
        %1195 = vmatpush1.msra.mxu0 0.0
        %1196 = vmatprep.subr.mxu0 0.0
        %1197 = vmatpush1.msra.mxu0 0.0
        %1198 = vmatprep.subr.mxu0 0.0
        %1199 = vmatpush1.msra.mxu0 0.0
        %1200 = vmatprep.subr.mxu0 0.0
        %1201 = vmatpush1.msra.mxu0 0.0
        %1202 = vmatprep.subr.mxu0 0.0
        %1203 = vmatpush1.msra.mxu0 0.0
        %1204 = vmatprep.subr.mxu0 0.0
        %1205 = vmatpush1.msra.mxu0 0.0
        %1206 = vmatprep.subr.mxu0 0.0
        %1207 = vmatpush1.msra.mxu0 0.0
        %1208 = vmatprep.subr.mxu0 0.0
        %1209 = vmatpush1.msra.mxu0 0.0
        %1210 = vmatprep.subr.mxu0 0.0
        %1211 = vmatpush1.msra.mxu0 0.0
        %1212 = vmatprep.subr.mxu0 0.0
        %1213 = vmatpush1.msra.mxu0 0.0
        %1214 = vmatprep.subr.mxu0 0.0
        %1215 = vmatpush1.msra.mxu0 0.0
        %1216 = vmatprep.subr.mxu0 0.0
        %1217 = vmatpush1.msra.mxu0 0.0
        %1218 = vmatprep.subr.mxu0 0.0
        %1219 = vmatpush1.msra.mxu0 0.0
        %1220 = vmatprep.subr.mxu0 0.0
        %1221 = vmatpush1.msra.mxu0 0.0
        %1222 = vmatprep.subr.mxu0 0.0
        %1223 = vmatpush1.msra.mxu0 0.0
        %1224 = vmatprep.subr.mxu0 0.0
        %1225 = vmatpush1.msra.mxu0 0.0
        %1226 = vmatprep.subr.mxu0 0.0
        %1227 = vmatpush1.msra.mxu0 0.0
        %1228 = vmatprep.subr.mxu0 0.0
        %1229 = vmatpush1.msra.mxu0 0.0
        %1230 = vmatprep.subr.mxu0 0.0
        %1231 = vmatpush1.msra.mxu0 0.0
        %1232 = vmatprep.subr.mxu0 0.0
        %1233 = vmatpush1.msra.mxu0 0.0
        %1234 = vmatprep.mubr.f32.mxu0 0.0
        %1235 = vmatmul.mubr.f32.gmra.mrb[0].mxu0 %v1162
        %v1236 = vpop.f32.mrb[0].mxu0
        %v1237 = vadd.f32 0.0, %v1236
        %v1238 = vpop.f32.mrb[0].mxu0
        %v1239 = vadd.f32 0.0, %v1238
        %1240 = vdwg.mxu0
        %v1241 = vadd.f32 %v1135, %v1237
        %v1242 = vadd.f32 %v1136, %v1239
        %1243 = vrot.lane.b32.xlu0 %v627, 113
        %v1244 = vpop.permute.xlu0 %1243
        %1245 = vrot.lane.b32.xlu0 %v631, 113
        %v1246 = vpop.permute.xlu0 %1245
        %vm1247 = vcmp.lt.s32.totalorder %v638, 113
        %v1248 = vsel %vm1247, %v1244, %v1246
        %v1249 = vsel %vm1247, %v1246, %v1244
        %s1250 = scalar_lea.vmem %s7, 12
        %v1251 = vld [vmem:[%s1250] sm:$0x3]
        %v1253 = vlaneseq
        %v1254 = vshrl.u32 %v1253, 7
        %v1255 = vsub.s32 0, %v1254
        %v1256 = vrot.slane %v1251, %v1255
        %v1257 = vlaneseq
        %v1258 = vshrl.u32 %v1257, 7
        %v1259 = vsub.s32 1, %v1258
        %v1260 = vrot.slane %v1251, %v1259
        %v1263 = vmul.f32 %v1248, %v1256
        %v1264 = vmul.f32 %v1249, %v1260
        %s1265 = scalar_lea.vmem %s1, 24
        %v1266 = vld [vmem:[%s1265] sm:$0xf]
        %v1268 = vsel %vm681, %v1266, 0
        %v1271 = vsel %vm685, %v1263, 0
        %v1274 = vsel %vm685, %v1264, 0
        %1276 = vmatprep.subr.mxu0 %v1274
        %1277 = vmatpush1.msra.mxu0 %v1271
        %1278 = vmatprep.subr.mxu0 0.0
        %1279 = vmatpush1.msra.mxu0 0.0
        %1280 = vmatprep.subr.mxu0 0.0
        %1281 = vmatpush1.msra.mxu0 0.0
        %1282 = vmatprep.subr.mxu0 0.0
        %1283 = vmatpush1.msra.mxu0 0.0
        %1284 = vmatprep.subr.mxu0 0.0
        %1285 = vmatpush1.msra.mxu0 0.0
        %1286 = vmatprep.subr.mxu0 0.0
        %1287 = vmatpush1.msra.mxu0 0.0
        %1288 = vmatprep.subr.mxu0 0.0
        %1289 = vmatpush1.msra.mxu0 0.0
        %1290 = vmatprep.subr.mxu0 0.0
        %1291 = vmatpush1.msra.mxu0 0.0
        %1292 = vmatprep.subr.mxu0 0.0
        %1293 = vmatpush1.msra.mxu0 0.0
        %1294 = vmatprep.subr.mxu0 0.0
        %1295 = vmatpush1.msra.mxu0 0.0
        %1296 = vmatprep.subr.mxu0 0.0
        %1297 = vmatpush1.msra.mxu0 0.0
        %1298 = vmatprep.subr.mxu0 0.0
        %1299 = vmatpush1.msra.mxu0 0.0
        %1300 = vmatprep.subr.mxu0 0.0
        %1301 = vmatpush1.msra.mxu0 0.0
        %1302 = vmatprep.subr.mxu0 0.0
        %1303 = vmatpush1.msra.mxu0 0.0
        %1304 = vmatprep.subr.mxu0 0.0
        %1305 = vmatpush1.msra.mxu0 0.0
        %1306 = vmatprep.subr.mxu0 0.0
        %1307 = vmatpush1.msra.mxu0 0.0
        %1308 = vmatprep.subr.mxu0 0.0
        %1309 = vmatpush1.msra.mxu0 0.0
        %1310 = vmatprep.subr.mxu0 0.0
        %1311 = vmatpush1.msra.mxu0 0.0
        %1312 = vmatprep.subr.mxu0 0.0
        %1313 = vmatpush1.msra.mxu0 0.0
        %1314 = vmatprep.subr.mxu0 0.0
        %1315 = vmatpush1.msra.mxu0 0.0
        %1316 = vmatprep.subr.mxu0 0.0
        %1317 = vmatpush1.msra.mxu0 0.0
        %1318 = vmatprep.subr.mxu0 0.0
        %1319 = vmatpush1.msra.mxu0 0.0
        %1320 = vmatprep.subr.mxu0 0.0
        %1321 = vmatpush1.msra.mxu0 0.0
        %1322 = vmatprep.subr.mxu0 0.0
        %1323 = vmatpush1.msra.mxu0 0.0
        %1324 = vmatprep.subr.mxu0 0.0
        %1325 = vmatpush1.msra.mxu0 0.0
        %1326 = vmatprep.subr.mxu0 0.0
        %1327 = vmatpush1.msra.mxu0 0.0
        %1328 = vmatprep.subr.mxu0 0.0
        %1329 = vmatpush1.msra.mxu0 0.0
        %1330 = vmatprep.subr.mxu0 0.0
        %1331 = vmatpush1.msra.mxu0 0.0
        %1332 = vmatprep.subr.mxu0 0.0
        %1333 = vmatpush1.msra.mxu0 0.0
        %1334 = vmatprep.subr.mxu0 0.0
        %1335 = vmatpush1.msra.mxu0 0.0
        %1336 = vmatprep.subr.mxu0 0.0
        %1337 = vmatpush1.msra.mxu0 0.0
        %1338 = vmatprep.subr.mxu0 0.0
        %1339 = vmatpush1.msra.mxu0 0.0
        %1340 = vmatprep.mubr.f32.mxu0 0.0
        %1341 = vmatmul.mubr.f32.gmra.mrb[0].mxu0 %v1268
        %v1342 = vpop.f32.mrb[0].mxu0
        %v1343 = vadd.f32 0.0, %v1342
        %v1344 = vpop.f32.mrb[0].mxu0
        %v1345 = vadd.f32 0.0, %v1344
        %1346 = vdwg.mxu0
        %v1347 = vadd.f32 %v1241, %v1343
        %v1348 = vadd.f32 %v1242, %v1345
        %1349 = vrot.lane.b32.xlu0 %v627, 112
        %v1350 = vpop.permute.xlu0 %1349
        %1351 = vrot.lane.b32.xlu0 %v631, 112
        %v1352 = vpop.permute.xlu0 %1351
        %vm1353 = vcmp.lt.s32.totalorder %v638, 112
        %v1354 = vsel %vm1353, %v1350, %v1352
        %v1355 = vsel %vm1353, %v1352, %v1350
        %s1356 = scalar_lea.vmem %s7, 14
        %v1357 = vld [vmem:[%s1356] sm:$0x3]
        %v1359 = vlaneseq
        %v1360 = vshrl.u32 %v1359, 7
        %v1361 = vsub.s32 0, %v1360
        %v1362 = vrot.slane %v1357, %v1361
        %v1363 = vlaneseq
        %v1364 = vshrl.u32 %v1363, 7
        %v1365 = vsub.s32 1, %v1364
        %v1366 = vrot.slane %v1357, %v1365
        %v1369 = vmul.f32 %v1354, %v1362
        %v1370 = vmul.f32 %v1355, %v1366
        %s1371 = scalar_lea.vmem %s1, 28
        %v1372 = vld [vmem:[%s1371] sm:$0xf]
        %v1374 = vsel %vm681, %v1372, 0
        %v1377 = vsel %vm685, %v1369, 0
        %v1380 = vsel %vm685, %v1370, 0
        %1382 = vmatprep.subr.mxu0 %v1380
        %1383 = vmatpush1.msra.mxu0 %v1377
        %1384 = vmatprep.subr.mxu0 0.0
        %1385 = vmatpush1.msra.mxu0 0.0
        %1386 = vmatprep.subr.mxu0 0.0
        %1387 = vmatpush1.msra.mxu0 0.0
        %1388 = vmatprep.subr.mxu0 0.0
        %1389 = vmatpush1.msra.mxu0 0.0
        %1390 = vmatprep.subr.mxu0 0.0
        %1391 = vmatpush1.msra.mxu0 0.0
        %1392 = vmatprep.subr.mxu0 0.0
        %1393 = vmatpush1.msra.mxu0 0.0
        %1394 = vmatprep.subr.mxu0 0.0
        %1395 = vmatpush1.msra.mxu0 0.0
        %1396 = vmatprep.subr.mxu0 0.0
        %1397 = vmatpush1.msra.mxu0 0.0
        %1398 = vmatprep.subr.mxu0 0.0
        %1399 = vmatpush1.msra.mxu0 0.0
        %1400 = vmatprep.subr.mxu0 0.0
        %1401 = vmatpush1.msra.mxu0 0.0
        %1402 = vmatprep.subr.mxu0 0.0
        %1403 = vmatpush1.msra.mxu0 0.0
        %1404 = vmatprep.subr.mxu0 0.0
        %1405 = vmatpush1.msra.mxu0 0.0
        %1406 = vmatprep.subr.mxu0 0.0
        %1407 = vmatpush1.msra.mxu0 0.0
        %1408 = vmatprep.subr.mxu0 0.0
        %1409 = vmatpush1.msra.mxu0 0.0
        %1410 = vmatprep.subr.mxu0 0.0
        %1411 = vmatpush1.msra.mxu0 0.0
        %1412 = vmatprep.subr.mxu0 0.0
        %1413 = vmatpush1.msra.mxu0 0.0
        %1414 = vmatprep.subr.mxu0 0.0
        %1415 = vmatpush1.msra.mxu0 0.0
        %1416 = vmatprep.subr.mxu0 0.0
        %1417 = vmatpush1.msra.mxu0 0.0
        %1418 = vmatprep.subr.mxu0 0.0
        %1419 = vmatpush1.msra.mxu0 0.0
        %1420 = vmatprep.subr.mxu0 0.0
        %1421 = vmatpush1.msra.mxu0 0.0
        %1422 = vmatprep.subr.mxu0 0.0
        %1423 = vmatpush1.msra.mxu0 0.0
        %1424 = vmatprep.subr.mxu0 0.0
        %1425 = vmatpush1.msra.mxu0 0.0
        %1426 = vmatprep.subr.mxu0 0.0
        %1427 = vmatpush1.msra.mxu0 0.0
        %1428 = vmatprep.subr.mxu0 0.0
        %1429 = vmatpush1.msra.mxu0 0.0
        %1430 = vmatprep.subr.mxu0 0.0
        %1431 = vmatpush1.msra.mxu0 0.0
        %1432 = vmatprep.subr.mxu0 0.0
        %1433 = vmatpush1.msra.mxu0 0.0
        %1434 = vmatprep.subr.mxu0 0.0
        %1435 = vmatpush1.msra.mxu0 0.0
        %1436 = vmatprep.subr.mxu0 0.0
        %1437 = vmatpush1.msra.mxu0 0.0
        %1438 = vmatprep.subr.mxu0 0.0
        %1439 = vmatpush1.msra.mxu0 0.0
        %1440 = vmatprep.subr.mxu0 0.0
        %1441 = vmatpush1.msra.mxu0 0.0
        %1442 = vmatprep.subr.mxu0 0.0
        %1443 = vmatpush1.msra.mxu0 0.0
        %1444 = vmatprep.subr.mxu0 0.0
        %1445 = vmatpush1.msra.mxu0 0.0
        %1446 = vmatprep.mubr.f32.mxu0 0.0
        %1447 = vmatmul.mubr.f32.gmra.mrb[0].mxu0 %v1374
        %v1448 = vpop.f32.mrb[0].mxu0
        %v1449 = vadd.f32 0.0, %v1448
        %v1450 = vpop.f32.mrb[0].mxu0
        %v1451 = vadd.f32 0.0, %v1450
        %1452 = vdwg.mxu0
        %v1453 = vadd.f32 %v1347, %v1449
        %v1454 = vadd.f32 %v1348, %v1451
        %1455 = vrot.lane.b32.xlu0 %v627, 111
        %v1456 = vpop.permute.xlu0 %1455
        %1457 = vrot.lane.b32.xlu0 %v631, 111
        %v1458 = vpop.permute.xlu0 %1457
        %vm1459 = vcmp.lt.s32.totalorder %v638, 111
        %v1460 = vsel %vm1459, %v1456, %v1458
        %v1461 = vsel %vm1459, %v1458, %v1456
        %s1462 = scalar_lea.vmem %s7, 16
        %v1463 = vld [vmem:[%s1462] sm:$0x3]
        %v1465 = vlaneseq
        %v1466 = vshrl.u32 %v1465, 7
        %v1467 = vsub.s32 0, %v1466
        %v1468 = vrot.slane %v1463, %v1467
        %v1469 = vlaneseq
        %v1470 = vshrl.u32 %v1469, 7
        %v1471 = vsub.s32 1, %v1470
        %v1472 = vrot.slane %v1463, %v1471
        %v1475 = vmul.f32 %v1460, %v1468
        %v1476 = vmul.f32 %v1461, %v1472
        %s1477 = scalar_lea.vmem %s1, 32
        %v1478 = vld [vmem:[%s1477] sm:$0xf]
        %v1480 = vsel %vm681, %v1478, 0
        %v1483 = vsel %vm685, %v1475, 0
        %v1486 = vsel %vm685, %v1476, 0
        %1488 = vmatprep.subr.mxu0 %v1486
        %1489 = vmatpush1.msra.mxu0 %v1483
        %1490 = vmatprep.subr.mxu0 0.0
        %1491 = vmatpush1.msra.mxu0 0.0
        %1492 = vmatprep.subr.mxu0 0.0
        %1493 = vmatpush1.msra.mxu0 0.0
        %1494 = vmatprep.subr.mxu0 0.0
        %1495 = vmatpush1.msra.mxu0 0.0
        %1496 = vmatprep.subr.mxu0 0.0
        %1497 = vmatpush1.msra.mxu0 0.0
        %1498 = vmatprep.subr.mxu0 0.0
        %1499 = vmatpush1.msra.mxu0 0.0
        %1500 = vmatprep.subr.mxu0 0.0
        %1501 = vmatpush1.msra.mxu0 0.0
        %1502 = vmatprep.subr.mxu0 0.0
        %1503 = vmatpush1.msra.mxu0 0.0
        %1504 = vmatprep.subr.mxu0 0.0
        %1505 = vmatpush1.msra.mxu0 0.0
        %1506 = vmatprep.subr.mxu0 0.0
        %1507 = vmatpush1.msra.mxu0 0.0
        %1508 = vmatprep.subr.mxu0 0.0
        %1509 = vmatpush1.msra.mxu0 0.0
        %1510 = vmatprep.subr.mxu0 0.0
        %1511 = vmatpush1.msra.mxu0 0.0
        %1512 = vmatprep.subr.mxu0 0.0
        %1513 = vmatpush1.msra.mxu0 0.0
        %1514 = vmatprep.subr.mxu0 0.0
        %1515 = vmatpush1.msra.mxu0 0.0
        %1516 = vmatprep.subr.mxu0 0.0
        %1517 = vmatpush1.msra.mxu0 0.0
        %1518 = vmatprep.subr.mxu0 0.0
        %1519 = vmatpush1.msra.mxu0 0.0
        %1520 = vmatprep.subr.mxu0 0.0
        %1521 = vmatpush1.msra.mxu0 0.0
        %1522 = vmatprep.subr.mxu0 0.0
        %1523 = vmatpush1.msra.mxu0 0.0
        %1524 = vmatprep.subr.mxu0 0.0
        %1525 = vmatpush1.msra.mxu0 0.0
        %1526 = vmatprep.subr.mxu0 0.0
        %1527 = vmatpush1.msra.mxu0 0.0
        %1528 = vmatprep.subr.mxu0 0.0
        %1529 = vmatpush1.msra.mxu0 0.0
        %1530 = vmatprep.subr.mxu0 0.0
        %1531 = vmatpush1.msra.mxu0 0.0
        %1532 = vmatprep.subr.mxu0 0.0
        %1533 = vmatpush1.msra.mxu0 0.0
        %1534 = vmatprep.subr.mxu0 0.0
        %1535 = vmatpush1.msra.mxu0 0.0
        %1536 = vmatprep.subr.mxu0 0.0
        %1537 = vmatpush1.msra.mxu0 0.0
        %1538 = vmatprep.subr.mxu0 0.0
        %1539 = vmatpush1.msra.mxu0 0.0
        %1540 = vmatprep.subr.mxu0 0.0
        %1541 = vmatpush1.msra.mxu0 0.0
        %1542 = vmatprep.subr.mxu0 0.0
        %1543 = vmatpush1.msra.mxu0 0.0
        %1544 = vmatprep.subr.mxu0 0.0
        %1545 = vmatpush1.msra.mxu0 0.0
        %1546 = vmatprep.subr.mxu0 0.0
        %1547 = vmatpush1.msra.mxu0 0.0
        %1548 = vmatprep.subr.mxu0 0.0
        %1549 = vmatpush1.msra.mxu0 0.0
        %1550 = vmatprep.subr.mxu0 0.0
        %1551 = vmatpush1.msra.mxu0 0.0
        %1552 = vmatprep.mubr.f32.mxu0 0.0
        %1553 = vmatmul.mubr.f32.gmra.mrb[0].mxu0 %v1480
        %v1554 = vpop.f32.mrb[0].mxu0
        %v1555 = vadd.f32 0.0, %v1554
        %v1556 = vpop.f32.mrb[0].mxu0
        %v1557 = vadd.f32 0.0, %v1556
        %1558 = vdwg.mxu0
        %v1559 = vadd.f32 %v1453, %v1555
        %v1560 = vadd.f32 %v1454, %v1557
        %1562 = vset.pattern.permute.xlu0 0
        %1563 = vperm.xlu0 %1562, %v628
        %v1564 = vpop.permute.xlu0 %1563
        %v1566 = vmul.f32 %v1559, %v1564
        %v1567 = vmul.f32 %v1560, %v1564
        %1569 = vset.pattern.permute.xlu0 0
        %1570 = vperm.xlu0 %1569, %v629
        %v1571 = vpop.permute.xlu0 %1570
        %v1573 = vadd.f32 %v1566, %v1571
        %v1574 = vadd.f32 %v1567, %v1571
        %v1575 = vmax.f32 %v1573, 0.0
        %v1576 = vmax.f32 %v1574, 0.0
        %v1577 = vld [vmem:[%s5] sm:$0xf]
        %v1578 = vld [vmem:[%s6] sm:$0xf]
        %1579 = vrot.lane.b32.xlu0 %v1575, 17
        %v1580 = vpop.permute.xlu0 %1579
        %1581 = vrot.lane.b32.xlu0 %v1576, 17
        %v1582 = vpop.permute.xlu0 %1581
        %v1583 = vsel %vm639, %v1580, %v1582
        %v1584 = vsel %vm639, %v1582, %v1580
        %v1585 = vmul.f32 %v1584, %v647
        %v1586 = vmul.f32 %v1583, %v651
        %v1587 = vld [vmem:[%s4] sm:$0xf]
        %1588 = vrot.lane.b32.xlu0 %v1575, 16
        %v1589 = vpop.permute.xlu0 %1588
        %1590 = vrot.lane.b32.xlu0 %v1576, 16
        %v1591 = vpop.permute.xlu0 %1590
        %v1592 = vsel %vm661, %v1589, %v1591
        %v1593 = vsel %vm661, %v1591, %v1589
        %v1594 = vmul.f32 %v1593, %v670
        %v1595 = vmul.f32 %v1592, %v674
        %s1596 = scalar_lea.vmem %s4, 4
        %v1597 = vld [vmem:[%s1596] sm:$0xf]
        %vm1598 = vcmask 31744
        %v1600 = vsel %vm1598, %v1597, 0
        %vm1602 = vcmask 1043456
        %v1604 = vsel %vm1602, %v1594, 0
        %v1607 = vsel %vm1602, %v1595, 0
        %1609 = vmatprep.subr.mxu0 %v1607
        %1610 = vmatpush1.msra.mxu0 %v1604
        %1611 = vmatprep.subr.mxu0 0.0
        %1612 = vmatpush1.msra.mxu0 0.0
        %1613 = vmatprep.subr.mxu0 0.0
        %1614 = vmatpush1.msra.mxu0 0.0
        %1615 = vmatprep.subr.mxu0 0.0
        %1616 = vmatpush1.msra.mxu0 0.0
        %1617 = vmatprep.subr.mxu0 0.0
        %1618 = vmatpush1.msra.mxu0 0.0
        %1619 = vmatprep.subr.mxu0 0.0
        %1620 = vmatpush1.msra.mxu0 0.0
        %1621 = vmatprep.subr.mxu0 0.0
        %1622 = vmatpush1.msra.mxu0 0.0
        %1623 = vmatprep.subr.mxu0 0.0
        %1624 = vmatpush1.msra.mxu0 0.0
        %1625 = vmatprep.subr.mxu0 0.0
        %1626 = vmatpush1.msra.mxu0 0.0
        %1627 = vmatprep.subr.mxu0 0.0
        %1628 = vmatpush1.msra.mxu0 0.0
        %1629 = vmatprep.subr.mxu0 0.0
        %1630 = vmatpush1.msra.mxu0 0.0
        %1631 = vmatprep.subr.mxu0 0.0
        %1632 = vmatpush1.msra.mxu0 0.0
        %1633 = vmatprep.subr.mxu0 0.0
        %1634 = vmatpush1.msra.mxu0 0.0
        %1635 = vmatprep.subr.mxu0 0.0
        %1636 = vmatpush1.msra.mxu0 0.0
        %1637 = vmatprep.subr.mxu0 0.0
        %1638 = vmatpush1.msra.mxu0 0.0
        %1639 = vmatprep.subr.mxu0 0.0
        %1640 = vmatpush1.msra.mxu0 0.0
        %1641 = vmatprep.subr.mxu0 0.0
        %1642 = vmatpush1.msra.mxu0 0.0
        %1643 = vmatprep.subr.mxu0 0.0
        %1644 = vmatpush1.msra.mxu0 0.0
        %1645 = vmatprep.subr.mxu0 0.0
        %1646 = vmatpush1.msra.mxu0 0.0
        %1647 = vmatprep.subr.mxu0 0.0
        %1648 = vmatpush1.msra.mxu0 0.0
        %1649 = vmatprep.subr.mxu0 0.0
        %1650 = vmatpush1.msra.mxu0 0.0
        %1651 = vmatprep.subr.mxu0 0.0
        %1652 = vmatpush1.msra.mxu0 0.0
        %1653 = vmatprep.subr.mxu0 0.0
        %1654 = vmatpush1.msra.mxu0 0.0
        %1655 = vmatprep.subr.mxu0 0.0
        %1656 = vmatpush1.msra.mxu0 0.0
        %1657 = vmatprep.subr.mxu0 0.0
        %1658 = vmatpush1.msra.mxu0 0.0
        %1659 = vmatprep.subr.mxu0 0.0
        %1660 = vmatpush1.msra.mxu0 0.0
        %1661 = vmatprep.subr.mxu0 0.0
        %1662 = vmatpush1.msra.mxu0 0.0
        %1663 = vmatprep.subr.mxu0 0.0
        %1664 = vmatpush1.msra.mxu0 0.0
        %1665 = vmatprep.subr.mxu0 0.0
        %1666 = vmatpush1.msra.mxu0 0.0
        %1667 = vmatprep.subr.mxu0 0.0
        %1668 = vmatpush1.msra.mxu0 0.0
        %1669 = vmatprep.subr.mxu0 0.0
        %1670 = vmatpush1.msra.mxu0 0.0
        %1671 = vmatprep.subr.mxu0 0.0
        %1672 = vmatpush1.msra.mxu0 0.0
        %1673 = vmatprep.mubr.f32.mxu0 0.0
        %1674 = vmatmul.mubr.f32.gmra.mrb[0].mxu0 %v1600
        %v1675 = vpop.f32.mrb[0].mxu0
        %v1676 = vadd.f32 0.0, %v1675
        %v1677 = vpop.f32.mrb[0].mxu0
        %v1678 = vadd.f32 0.0, %v1677
        %1679 = vdwg.mxu0
        %v1681 = vsel %vm1598, %v1587, 0
        %v1684 = vsel %vm1602, %v1585, 0
        %v1687 = vsel %vm1602, %v1586, 0
        %1689 = vmatprep.subr.mxu0 %v1687
        %1690 = vmatpush1.msra.mxu0 %v1684
        %1691 = vmatprep.subr.mxu0 0.0
        %1692 = vmatpush1.msra.mxu0 0.0
        %1693 = vmatprep.subr.mxu0 0.0
        %1694 = vmatpush1.msra.mxu0 0.0
        %1695 = vmatprep.subr.mxu0 0.0
        %1696 = vmatpush1.msra.mxu0 0.0
        %1697 = vmatprep.subr.mxu0 0.0
        %1698 = vmatpush1.msra.mxu0 0.0
        %1699 = vmatprep.subr.mxu0 0.0
        %1700 = vmatpush1.msra.mxu0 0.0
        %1701 = vmatprep.subr.mxu0 0.0
        %1702 = vmatpush1.msra.mxu0 0.0
        %1703 = vmatprep.subr.mxu0 0.0
        %1704 = vmatpush1.msra.mxu0 0.0
        %1705 = vmatprep.subr.mxu0 0.0
        %1706 = vmatpush1.msra.mxu0 0.0
        %1707 = vmatprep.subr.mxu0 0.0
        %1708 = vmatpush1.msra.mxu0 0.0
        %1709 = vmatprep.subr.mxu0 0.0
        %1710 = vmatpush1.msra.mxu0 0.0
        %1711 = vmatprep.subr.mxu0 0.0
        %1712 = vmatpush1.msra.mxu0 0.0
        %1713 = vmatprep.subr.mxu0 0.0
        %1714 = vmatpush1.msra.mxu0 0.0
        %1715 = vmatprep.subr.mxu0 0.0
        %1716 = vmatpush1.msra.mxu0 0.0
        %1717 = vmatprep.subr.mxu0 0.0
        %1718 = vmatpush1.msra.mxu0 0.0
        %1719 = vmatprep.subr.mxu0 0.0
        %1720 = vmatpush1.msra.mxu0 0.0
        %1721 = vmatprep.subr.mxu0 0.0
        %1722 = vmatpush1.msra.mxu0 0.0
        %1723 = vmatprep.subr.mxu0 0.0
        %1724 = vmatpush1.msra.mxu0 0.0
        %1725 = vmatprep.subr.mxu0 0.0
        %1726 = vmatpush1.msra.mxu0 0.0
        %1727 = vmatprep.subr.mxu0 0.0
        %1728 = vmatpush1.msra.mxu0 0.0
        %1729 = vmatprep.subr.mxu0 0.0
        %1730 = vmatpush1.msra.mxu0 0.0
        %1731 = vmatprep.subr.mxu0 0.0
        %1732 = vmatpush1.msra.mxu0 0.0
        %1733 = vmatprep.subr.mxu0 0.0
        %1734 = vmatpush1.msra.mxu0 0.0
        %1735 = vmatprep.subr.mxu0 0.0
        %1736 = vmatpush1.msra.mxu0 0.0
        %1737 = vmatprep.subr.mxu0 0.0
        %1738 = vmatpush1.msra.mxu0 0.0
        %1739 = vmatprep.subr.mxu0 0.0
        %1740 = vmatpush1.msra.mxu0 0.0
        %1741 = vmatprep.subr.mxu0 0.0
        %1742 = vmatpush1.msra.mxu0 0.0
        %1743 = vmatprep.subr.mxu0 0.0
        %1744 = vmatpush1.msra.mxu0 0.0
        %1745 = vmatprep.subr.mxu0 0.0
        %1746 = vmatpush1.msra.mxu0 0.0
        %1747 = vmatprep.subr.mxu0 0.0
        %1748 = vmatpush1.msra.mxu0 0.0
        %1749 = vmatprep.subr.mxu0 0.0
        %1750 = vmatpush1.msra.mxu0 0.0
        %1751 = vmatprep.subr.mxu0 0.0
        %1752 = vmatpush1.msra.mxu0 0.0
        %1753 = vmatprep.mubr.f32.mxu0 0.0
        %1754 = vmatmul.mubr.f32.gmra.mrb[0].mxu0 %v1681
        %v1755 = vpop.f32.mrb[0].mxu0
        %v1756 = vadd.f32 %v1676, %v1755
        %v1757 = vpop.f32.mrb[0].mxu0
        %v1758 = vadd.f32 %v1678, %v1757
        %1759 = vdwg.mxu0
        %1760 = vrot.lane.b32.xlu0 %v1575, 15
        %v1761 = vpop.permute.xlu0 %1760
        %1762 = vrot.lane.b32.xlu0 %v1576, 15
        %v1763 = vpop.permute.xlu0 %1762
        %v1764 = vsel %vm847, %v1761, %v1763
        %v1765 = vsel %vm847, %v1763, %v1761
        %v1766 = vmul.f32 %v1765, %v856
        %v1767 = vmul.f32 %v1764, %v860
        %s1768 = scalar_lea.vmem %s4, 8
        %v1769 = vld [vmem:[%s1768] sm:$0xf]
        %v1771 = vsel %vm1598, %v1769, 0
        %v1774 = vsel %vm1602, %v1766, 0
        %v1777 = vsel %vm1602, %v1767, 0
        %1779 = vmatprep.subr.mxu0 %v1777
        %1780 = vmatpush1.msra.mxu0 %v1774
        %1781 = vmatprep.subr.mxu0 0.0
        %1782 = vmatpush1.msra.mxu0 0.0
        %1783 = vmatprep.subr.mxu0 0.0
        %1784 = vmatpush1.msra.mxu0 0.0
        %1785 = vmatprep.subr.mxu0 0.0
        %1786 = vmatpush1.msra.mxu0 0.0
        %1787 = vmatprep.subr.mxu0 0.0
        %1788 = vmatpush1.msra.mxu0 0.0
        %1789 = vmatprep.subr.mxu0 0.0
        %1790 = vmatpush1.msra.mxu0 0.0
        %1791 = vmatprep.subr.mxu0 0.0
        %1792 = vmatpush1.msra.mxu0 0.0
        %1793 = vmatprep.subr.mxu0 0.0
        %1794 = vmatpush1.msra.mxu0 0.0
        %1795 = vmatprep.subr.mxu0 0.0
        %1796 = vmatpush1.msra.mxu0 0.0
        %1797 = vmatprep.subr.mxu0 0.0
        %1798 = vmatpush1.msra.mxu0 0.0
        %1799 = vmatprep.subr.mxu0 0.0
        %1800 = vmatpush1.msra.mxu0 0.0
        %1801 = vmatprep.subr.mxu0 0.0
        %1802 = vmatpush1.msra.mxu0 0.0
        %1803 = vmatprep.subr.mxu0 0.0
        %1804 = vmatpush1.msra.mxu0 0.0
        %1805 = vmatprep.subr.mxu0 0.0
        %1806 = vmatpush1.msra.mxu0 0.0
        %1807 = vmatprep.subr.mxu0 0.0
        %1808 = vmatpush1.msra.mxu0 0.0
        %1809 = vmatprep.subr.mxu0 0.0
        %1810 = vmatpush1.msra.mxu0 0.0
        %1811 = vmatprep.subr.mxu0 0.0
        %1812 = vmatpush1.msra.mxu0 0.0
        %1813 = vmatprep.subr.mxu0 0.0
        %1814 = vmatpush1.msra.mxu0 0.0
        %1815 = vmatprep.subr.mxu0 0.0
        %1816 = vmatpush1.msra.mxu0 0.0
        %1817 = vmatprep.subr.mxu0 0.0
        %1818 = vmatpush1.msra.mxu0 0.0
        %1819 = vmatprep.subr.mxu0 0.0
        %1820 = vmatpush1.msra.mxu0 0.0
        %1821 = vmatprep.subr.mxu0 0.0
        %1822 = vmatpush1.msra.mxu0 0.0
        %1823 = vmatprep.subr.mxu0 0.0
        %1824 = vmatpush1.msra.mxu0 0.0
        %1825 = vmatprep.subr.mxu0 0.0
        %1826 = vmatpush1.msra.mxu0 0.0
        %1827 = vmatprep.subr.mxu0 0.0
        %1828 = vmatpush1.msra.mxu0 0.0
        %1829 = vmatprep.subr.mxu0 0.0
        %1830 = vmatpush1.msra.mxu0 0.0
        %1831 = vmatprep.subr.mxu0 0.0
        %1832 = vmatpush1.msra.mxu0 0.0
        %1833 = vmatprep.subr.mxu0 0.0
        %1834 = vmatpush1.msra.mxu0 0.0
        %1835 = vmatprep.subr.mxu0 0.0
        %1836 = vmatpush1.msra.mxu0 0.0
        %1837 = vmatprep.subr.mxu0 0.0
        %1838 = vmatpush1.msra.mxu0 0.0
        %1839 = vmatprep.subr.mxu0 0.0
        %1840 = vmatpush1.msra.mxu0 0.0
        %1841 = vmatprep.subr.mxu0 0.0
        %1842 = vmatpush1.msra.mxu0 0.0
        %1843 = vmatprep.mubr.f32.mxu0 0.0
        %1844 = vmatmul.mubr.f32.gmra.mrb[0].mxu0 %v1771
        %v1845 = vpop.f32.mrb[0].mxu0
        %v1846 = vadd.f32 0.0, %v1845
        %v1847 = vpop.f32.mrb[0].mxu0
        %v1848 = vadd.f32 0.0, %v1847
        %1849 = vdwg.mxu0
        %v1850 = vadd.f32 %v1756, %v1846
        %v1851 = vadd.f32 %v1758, %v1848
        %1852 = vrot.lane.b32.xlu0 %v1575, 1
        %v1853 = vpop.permute.xlu0 %1852
        %1854 = vrot.lane.b32.xlu0 %v1576, 1
        %v1855 = vpop.permute.xlu0 %1854
        %v1856 = vsel %vm953, %v1853, %v1855
        %v1857 = vsel %vm953, %v1855, %v1853
        %v1858 = vmul.f32 %v1857, %v962
        %v1859 = vmul.f32 %v1856, %v966
        %s1860 = scalar_lea.vmem %s4, 12
        %v1861 = vld [vmem:[%s1860] sm:$0xf]
        %v1863 = vsel %vm1598, %v1861, 0
        %v1866 = vsel %vm1602, %v1858, 0
        %v1869 = vsel %vm1602, %v1859, 0
        %1871 = vmatprep.subr.mxu0 %v1869
        %1872 = vmatpush1.msra.mxu0 %v1866
        %1873 = vmatprep.subr.mxu0 0.0
        %1874 = vmatpush1.msra.mxu0 0.0
        %1875 = vmatprep.subr.mxu0 0.0
        %1876 = vmatpush1.msra.mxu0 0.0
        %1877 = vmatprep.subr.mxu0 0.0
        %1878 = vmatpush1.msra.mxu0 0.0
        %1879 = vmatprep.subr.mxu0 0.0
        %1880 = vmatpush1.msra.mxu0 0.0
        %1881 = vmatprep.subr.mxu0 0.0
        %1882 = vmatpush1.msra.mxu0 0.0
        %1883 = vmatprep.subr.mxu0 0.0
        %1884 = vmatpush1.msra.mxu0 0.0
        %1885 = vmatprep.subr.mxu0 0.0
        %1886 = vmatpush1.msra.mxu0 0.0
        %1887 = vmatprep.subr.mxu0 0.0
        %1888 = vmatpush1.msra.mxu0 0.0
        %1889 = vmatprep.subr.mxu0 0.0
        %1890 = vmatpush1.msra.mxu0 0.0
        %1891 = vmatprep.subr.mxu0 0.0
        %1892 = vmatpush1.msra.mxu0 0.0
        %1893 = vmatprep.subr.mxu0 0.0
        %1894 = vmatpush1.msra.mxu0 0.0
        %1895 = vmatprep.subr.mxu0 0.0
        %1896 = vmatpush1.msra.mxu0 0.0
        %1897 = vmatprep.subr.mxu0 0.0
        %1898 = vmatpush1.msra.mxu0 0.0
        %1899 = vmatprep.subr.mxu0 0.0
        %1900 = vmatpush1.msra.mxu0 0.0
        %1901 = vmatprep.subr.mxu0 0.0
        %1902 = vmatpush1.msra.mxu0 0.0
        %1903 = vmatprep.subr.mxu0 0.0
        %1904 = vmatpush1.msra.mxu0 0.0
        %1905 = vmatprep.subr.mxu0 0.0
        %1906 = vmatpush1.msra.mxu0 0.0
        %1907 = vmatprep.subr.mxu0 0.0
        %1908 = vmatpush1.msra.mxu0 0.0
        %1909 = vmatprep.subr.mxu0 0.0
        %1910 = vmatpush1.msra.mxu0 0.0
        %1911 = vmatprep.subr.mxu0 0.0
        %1912 = vmatpush1.msra.mxu0 0.0
        %1913 = vmatprep.subr.mxu0 0.0
        %1914 = vmatpush1.msra.mxu0 0.0
        %1915 = vmatprep.subr.mxu0 0.0
        %1916 = vmatpush1.msra.mxu0 0.0
        %1917 = vmatprep.subr.mxu0 0.0
        %1918 = vmatpush1.msra.mxu0 0.0
        %1919 = vmatprep.subr.mxu0 0.0
        %1920 = vmatpush1.msra.mxu0 0.0
        %1921 = vmatprep.subr.mxu0 0.0
        %1922 = vmatpush1.msra.mxu0 0.0
        %1923 = vmatprep.subr.mxu0 0.0
        %1924 = vmatpush1.msra.mxu0 0.0
        %1925 = vmatprep.subr.mxu0 0.0
        %1926 = vmatpush1.msra.mxu0 0.0
        %1927 = vmatprep.subr.mxu0 0.0
        %1928 = vmatpush1.msra.mxu0 0.0
        %1929 = vmatprep.subr.mxu0 0.0
        %1930 = vmatpush1.msra.mxu0 0.0
        %1931 = vmatprep.subr.mxu0 0.0
        %1932 = vmatpush1.msra.mxu0 0.0
        %1933 = vmatprep.subr.mxu0 0.0
        %1934 = vmatpush1.msra.mxu0 0.0
        %1935 = vmatprep.mubr.f32.mxu0 0.0
        %1936 = vmatmul.mubr.f32.gmra.mrb[0].mxu0 %v1863
        %v1937 = vpop.f32.mrb[0].mxu0
        %v1938 = vadd.f32 0.0, %v1937
        %v1939 = vpop.f32.mrb[0].mxu0
        %v1940 = vadd.f32 0.0, %v1939
        %1941 = vdwg.mxu0
        %v1942 = vadd.f32 %v1850, %v1938
        %v1943 = vadd.f32 %v1851, %v1940
        %s1944 = scalar_lea.vmem %s4, 16
        %v1945 = vld [vmem:[%s1944] sm:$0xf]
        %v1947 = vsel %vm1598, %v1945, 0
        %v1950 = vsel %vm1602, %v1575, 0
        %v1953 = vsel %vm1602, %v1576, 0
        %1955 = vmatprep.subr.mxu0 %v1953
        %1956 = vmatpush1.msra.mxu0 %v1950
        %1957 = vmatprep.subr.mxu0 0.0
        %1958 = vmatpush1.msra.mxu0 0.0
        %1959 = vmatprep.subr.mxu0 0.0
        %1960 = vmatpush1.msra.mxu0 0.0
        %1961 = vmatprep.subr.mxu0 0.0
        %1962 = vmatpush1.msra.mxu0 0.0
        %1963 = vmatprep.subr.mxu0 0.0
        %1964 = vmatpush1.msra.mxu0 0.0
        %1965 = vmatprep.subr.mxu0 0.0
        %1966 = vmatpush1.msra.mxu0 0.0
        %1967 = vmatprep.subr.mxu0 0.0
        %1968 = vmatpush1.msra.mxu0 0.0
        %1969 = vmatprep.subr.mxu0 0.0
        %1970 = vmatpush1.msra.mxu0 0.0
        %1971 = vmatprep.subr.mxu0 0.0
        %1972 = vmatpush1.msra.mxu0 0.0
        %1973 = vmatprep.subr.mxu0 0.0
        %1974 = vmatpush1.msra.mxu0 0.0
        %1975 = vmatprep.subr.mxu0 0.0
        %1976 = vmatpush1.msra.mxu0 0.0
        %1977 = vmatprep.subr.mxu0 0.0
        %1978 = vmatpush1.msra.mxu0 0.0
        %1979 = vmatprep.subr.mxu0 0.0
        %1980 = vmatpush1.msra.mxu0 0.0
        %1981 = vmatprep.subr.mxu0 0.0
        %1982 = vmatpush1.msra.mxu0 0.0
        %1983 = vmatprep.subr.mxu0 0.0
        %1984 = vmatpush1.msra.mxu0 0.0
        %1985 = vmatprep.subr.mxu0 0.0
        %1986 = vmatpush1.msra.mxu0 0.0
        %1987 = vmatprep.subr.mxu0 0.0
        %1988 = vmatpush1.msra.mxu0 0.0
        %1989 = vmatprep.subr.mxu0 0.0
        %1990 = vmatpush1.msra.mxu0 0.0
        %1991 = vmatprep.subr.mxu0 0.0
        %1992 = vmatpush1.msra.mxu0 0.0
        %1993 = vmatprep.subr.mxu0 0.0
        %1994 = vmatpush1.msra.mxu0 0.0
        %1995 = vmatprep.subr.mxu0 0.0
        %1996 = vmatpush1.msra.mxu0 0.0
        %1997 = vmatprep.subr.mxu0 0.0
        %1998 = vmatpush1.msra.mxu0 0.0
        %1999 = vmatprep.subr.mxu0 0.0
        %2000 = vmatpush1.msra.mxu0 0.0
        %2001 = vmatprep.subr.mxu0 0.0
        %2002 = vmatpush1.msra.mxu0 0.0
        %2003 = vmatprep.subr.mxu0 0.0
        %2004 = vmatpush1.msra.mxu0 0.0
        %2005 = vmatprep.subr.mxu0 0.0
        %2006 = vmatpush1.msra.mxu0 0.0
        %2007 = vmatprep.subr.mxu0 0.0
        %2008 = vmatpush1.msra.mxu0 0.0
        %2009 = vmatprep.subr.mxu0 0.0
        %2010 = vmatpush1.msra.mxu0 0.0
        %2011 = vmatprep.subr.mxu0 0.0
        %2012 = vmatpush1.msra.mxu0 0.0
        %2013 = vmatprep.subr.mxu0 0.0
        %2014 = vmatpush1.msra.mxu0 0.0
        %2015 = vmatprep.subr.mxu0 0.0
        %2016 = vmatpush1.msra.mxu0 0.0
        %2017 = vmatprep.subr.mxu0 0.0
        %2018 = vmatpush1.msra.mxu0 0.0
        %2019 = vmatprep.mubr.f32.mxu0 0.0
        %2020 = vmatmul.mubr.f32.gmra.mrb[0].mxu0 %v1947
        %v2021 = vpop.f32.mrb[0].mxu0
        %v2022 = vadd.f32 0.0, %v2021
        %v2023 = vpop.f32.mrb[0].mxu0
        %v2024 = vadd.f32 0.0, %v2023
        %2025 = vdwg.mxu0
        %v2026 = vadd.f32 %v1942, %v2022
        %v2027 = vadd.f32 %v1943, %v2024
        %2028 = vrot.lane.b32.xlu0 %v1575, 127
        %v2029 = vpop.permute.xlu0 %2028
        %2030 = vrot.lane.b32.xlu0 %v1576, 127
        %v2031 = vpop.permute.xlu0 %2030
        %v2032 = vsel %vm1141, %v2029, %v2031
        %v2033 = vsel %vm1141, %v2031, %v2029
        %v2034 = vmul.f32 %v2032, %v1150
        %v2035 = vmul.f32 %v2033, %v1154
        %s2036 = scalar_lea.vmem %s4, 20
        %v2037 = vld [vmem:[%s2036] sm:$0xf]
        %v2039 = vsel %vm1598, %v2037, 0
        %v2042 = vsel %vm1602, %v2034, 0
        %v2045 = vsel %vm1602, %v2035, 0
        %2047 = vmatprep.subr.mxu0 %v2045
        %2048 = vmatpush1.msra.mxu0 %v2042
        %2049 = vmatprep.subr.mxu0 0.0
        %2050 = vmatpush1.msra.mxu0 0.0
        %2051 = vmatprep.subr.mxu0 0.0
        %2052 = vmatpush1.msra.mxu0 0.0
        %2053 = vmatprep.subr.mxu0 0.0
        %2054 = vmatpush1.msra.mxu0 0.0
        %2055 = vmatprep.subr.mxu0 0.0
        %2056 = vmatpush1.msra.mxu0 0.0
        %2057 = vmatprep.subr.mxu0 0.0
        %2058 = vmatpush1.msra.mxu0 0.0
        %2059 = vmatprep.subr.mxu0 0.0
        %2060 = vmatpush1.msra.mxu0 0.0
        %2061 = vmatprep.subr.mxu0 0.0
        %2062 = vmatpush1.msra.mxu0 0.0
        %2063 = vmatprep.subr.mxu0 0.0
        %2064 = vmatpush1.msra.mxu0 0.0
        %2065 = vmatprep.subr.mxu0 0.0
        %2066 = vmatpush1.msra.mxu0 0.0
        %2067 = vmatprep.subr.mxu0 0.0
        %2068 = vmatpush1.msra.mxu0 0.0
        %2069 = vmatprep.subr.mxu0 0.0
        %2070 = vmatpush1.msra.mxu0 0.0
        %2071 = vmatprep.subr.mxu0 0.0
        %2072 = vmatpush1.msra.mxu0 0.0
        %2073 = vmatprep.subr.mxu0 0.0
        %2074 = vmatpush1.msra.mxu0 0.0
        %2075 = vmatprep.subr.mxu0 0.0
        %2076 = vmatpush1.msra.mxu0 0.0
        %2077 = vmatprep.subr.mxu0 0.0
        %2078 = vmatpush1.msra.mxu0 0.0
        %2079 = vmatprep.subr.mxu0 0.0
        %2080 = vmatpush1.msra.mxu0 0.0
        %2081 = vmatprep.subr.mxu0 0.0
        %2082 = vmatpush1.msra.mxu0 0.0
        %2083 = vmatprep.subr.mxu0 0.0
        %2084 = vmatpush1.msra.mxu0 0.0
        %2085 = vmatprep.subr.mxu0 0.0
        %2086 = vmatpush1.msra.mxu0 0.0
        %2087 = vmatprep.subr.mxu0 0.0
        %2088 = vmatpush1.msra.mxu0 0.0
        %2089 = vmatprep.subr.mxu0 0.0
        %2090 = vmatpush1.msra.mxu0 0.0
        %2091 = vmatprep.subr.mxu0 0.0
        %2092 = vmatpush1.msra.mxu0 0.0
        %2093 = vmatprep.subr.mxu0 0.0
        %2094 = vmatpush1.msra.mxu0 0.0
        %2095 = vmatprep.subr.mxu0 0.0
        %2096 = vmatpush1.msra.mxu0 0.0
        %2097 = vmatprep.subr.mxu0 0.0
        %2098 = vmatpush1.msra.mxu0 0.0
        %2099 = vmatprep.subr.mxu0 0.0
        %2100 = vmatpush1.msra.mxu0 0.0
        %2101 = vmatprep.subr.mxu0 0.0
        %2102 = vmatpush1.msra.mxu0 0.0
        %2103 = vmatprep.subr.mxu0 0.0
        %2104 = vmatpush1.msra.mxu0 0.0
        %2105 = vmatprep.subr.mxu0 0.0
        %2106 = vmatpush1.msra.mxu0 0.0
        %2107 = vmatprep.subr.mxu0 0.0
        %2108 = vmatpush1.msra.mxu0 0.0
        %2109 = vmatprep.subr.mxu0 0.0
        %2110 = vmatpush1.msra.mxu0 0.0
        %2111 = vmatprep.mubr.f32.mxu0 0.0
        %2112 = vmatmul.mubr.f32.gmra.mrb[0].mxu0 %v2039
        %v2113 = vpop.f32.mrb[0].mxu0
        %v2114 = vadd.f32 0.0, %v2113
        %v2115 = vpop.f32.mrb[0].mxu0
        %v2116 = vadd.f32 0.0, %v2115
        %2117 = vdwg.mxu0
        %v2118 = vadd.f32 %v2026, %v2114
        %v2119 = vadd.f32 %v2027, %v2116
        %2120 = vrot.lane.b32.xlu0 %v1575, 113
        %v2121 = vpop.permute.xlu0 %2120
        %2122 = vrot.lane.b32.xlu0 %v1576, 113
        %v2123 = vpop.permute.xlu0 %2122
        %v2124 = vsel %vm1247, %v2121, %v2123
        %v2125 = vsel %vm1247, %v2123, %v2121
        %v2126 = vmul.f32 %v2124, %v1256
        %v2127 = vmul.f32 %v2125, %v1260
        %s2128 = scalar_lea.vmem %s4, 24
        %v2129 = vld [vmem:[%s2128] sm:$0xf]
        %v2131 = vsel %vm1598, %v2129, 0
        %v2134 = vsel %vm1602, %v2126, 0
        %v2137 = vsel %vm1602, %v2127, 0
        %2139 = vmatprep.subr.mxu0 %v2137
        %2140 = vmatpush1.msra.mxu0 %v2134
        %2141 = vmatprep.subr.mxu0 0.0
        %2142 = vmatpush1.msra.mxu0 0.0
        %2143 = vmatprep.subr.mxu0 0.0
        %2144 = vmatpush1.msra.mxu0 0.0
        %2145 = vmatprep.subr.mxu0 0.0
        %2146 = vmatpush1.msra.mxu0 0.0
        %2147 = vmatprep.subr.mxu0 0.0
        %2148 = vmatpush1.msra.mxu0 0.0
        %2149 = vmatprep.subr.mxu0 0.0
        %2150 = vmatpush1.msra.mxu0 0.0
        %2151 = vmatprep.subr.mxu0 0.0
        %2152 = vmatpush1.msra.mxu0 0.0
        %2153 = vmatprep.subr.mxu0 0.0
        %2154 = vmatpush1.msra.mxu0 0.0
        %2155 = vmatprep.subr.mxu0 0.0
        %2156 = vmatpush1.msra.mxu0 0.0
        %2157 = vmatprep.subr.mxu0 0.0
        %2158 = vmatpush1.msra.mxu0 0.0
        %2159 = vmatprep.subr.mxu0 0.0
        %2160 = vmatpush1.msra.mxu0 0.0
        %2161 = vmatprep.subr.mxu0 0.0
        %2162 = vmatpush1.msra.mxu0 0.0
        %2163 = vmatprep.subr.mxu0 0.0
        %2164 = vmatpush1.msra.mxu0 0.0
        %2165 = vmatprep.subr.mxu0 0.0
        %2166 = vmatpush1.msra.mxu0 0.0
        %2167 = vmatprep.subr.mxu0 0.0
        %2168 = vmatpush1.msra.mxu0 0.0
        %2169 = vmatprep.subr.mxu0 0.0
        %2170 = vmatpush1.msra.mxu0 0.0
        %2171 = vmatprep.subr.mxu0 0.0
        %2172 = vmatpush1.msra.mxu0 0.0
        %2173 = vmatprep.subr.mxu0 0.0
        %2174 = vmatpush1.msra.mxu0 0.0
        %2175 = vmatprep.subr.mxu0 0.0
        %2176 = vmatpush1.msra.mxu0 0.0
        %2177 = vmatprep.subr.mxu0 0.0
        %2178 = vmatpush1.msra.mxu0 0.0
        %2179 = vmatprep.subr.mxu0 0.0
        %2180 = vmatpush1.msra.mxu0 0.0
        %2181 = vmatprep.subr.mxu0 0.0
        %2182 = vmatpush1.msra.mxu0 0.0
        %2183 = vmatprep.subr.mxu0 0.0
        %2184 = vmatpush1.msra.mxu0 0.0
        %2185 = vmatprep.subr.mxu0 0.0
        %2186 = vmatpush1.msra.mxu0 0.0
        %2187 = vmatprep.subr.mxu0 0.0
        %2188 = vmatpush1.msra.mxu0 0.0
        %2189 = vmatprep.subr.mxu0 0.0
        %2190 = vmatpush1.msra.mxu0 0.0
        %2191 = vmatprep.subr.mxu0 0.0
        %2192 = vmatpush1.msra.mxu0 0.0
        %2193 = vmatprep.subr.mxu0 0.0
        %2194 = vmatpush1.msra.mxu0 0.0
        %2195 = vmatprep.subr.mxu0 0.0
        %2196 = vmatpush1.msra.mxu0 0.0
        %2197 = vmatprep.subr.mxu0 0.0
        %2198 = vmatpush1.msra.mxu0 0.0
        %2199 = vmatprep.subr.mxu0 0.0
        %2200 = vmatpush1.msra.mxu0 0.0
        %2201 = vmatprep.subr.mxu0 0.0
        %2202 = vmatpush1.msra.mxu0 0.0
        %2203 = vmatprep.mubr.f32.mxu0 0.0
        %2204 = vmatmul.mubr.f32.gmra.mrb[0].mxu0 %v2131
        %v2205 = vpop.f32.mrb[0].mxu0
        %v2206 = vadd.f32 0.0, %v2205
        %v2207 = vpop.f32.mrb[0].mxu0
        %v2208 = vadd.f32 0.0, %v2207
        %2209 = vdwg.mxu0
        %v2210 = vadd.f32 %v2118, %v2206
        %v2211 = vadd.f32 %v2119, %v2208
        %2212 = vrot.lane.b32.xlu0 %v1575, 112
        %v2213 = vpop.permute.xlu0 %2212
        %2214 = vrot.lane.b32.xlu0 %v1576, 112
        %v2215 = vpop.permute.xlu0 %2214
        %v2216 = vsel %vm1353, %v2213, %v2215
        %v2217 = vsel %vm1353, %v2215, %v2213
        %v2218 = vmul.f32 %v2216, %v1362
        %v2219 = vmul.f32 %v2217, %v1366
        %s2220 = scalar_lea.vmem %s4, 28
        %v2221 = vld [vmem:[%s2220] sm:$0xf]
        %v2223 = vsel %vm1598, %v2221, 0
        %v2226 = vsel %vm1602, %v2218, 0
        %v2229 = vsel %vm1602, %v2219, 0
        %2231 = vmatprep.subr.mxu0 %v2229
        %2232 = vmatpush1.msra.mxu0 %v2226
        %2233 = vmatprep.subr.mxu0 0.0
        %2234 = vmatpush1.msra.mxu0 0.0
        %2235 = vmatprep.subr.mxu0 0.0
        %2236 = vmatpush1.msra.mxu0 0.0
        %2237 = vmatprep.subr.mxu0 0.0
        %2238 = vmatpush1.msra.mxu0 0.0
        %2239 = vmatprep.subr.mxu0 0.0
        %2240 = vmatpush1.msra.mxu0 0.0
        %2241 = vmatprep.subr.mxu0 0.0
        %2242 = vmatpush1.msra.mxu0 0.0
        %2243 = vmatprep.subr.mxu0 0.0
        %2244 = vmatpush1.msra.mxu0 0.0
        %2245 = vmatprep.subr.mxu0 0.0
        %2246 = vmatpush1.msra.mxu0 0.0
        %2247 = vmatprep.subr.mxu0 0.0
        %2248 = vmatpush1.msra.mxu0 0.0
        %2249 = vmatprep.subr.mxu0 0.0
        %2250 = vmatpush1.msra.mxu0 0.0
        %2251 = vmatprep.subr.mxu0 0.0
        %2252 = vmatpush1.msra.mxu0 0.0
        %2253 = vmatprep.subr.mxu0 0.0
        %2254 = vmatpush1.msra.mxu0 0.0
        %2255 = vmatprep.subr.mxu0 0.0
        %2256 = vmatpush1.msra.mxu0 0.0
        %2257 = vmatprep.subr.mxu0 0.0
        %2258 = vmatpush1.msra.mxu0 0.0
        %2259 = vmatprep.subr.mxu0 0.0
        %2260 = vmatpush1.msra.mxu0 0.0
        %2261 = vmatprep.subr.mxu0 0.0
        %2262 = vmatpush1.msra.mxu0 0.0
        %2263 = vmatprep.subr.mxu0 0.0
        %2264 = vmatpush1.msra.mxu0 0.0
        %2265 = vmatprep.subr.mxu0 0.0
        %2266 = vmatpush1.msra.mxu0 0.0
        %2267 = vmatprep.subr.mxu0 0.0
        %2268 = vmatpush1.msra.mxu0 0.0
        %2269 = vmatprep.subr.mxu0 0.0
        %2270 = vmatpush1.msra.mxu0 0.0
        %2271 = vmatprep.subr.mxu0 0.0
        %2272 = vmatpush1.msra.mxu0 0.0
        %2273 = vmatprep.subr.mxu0 0.0
        %2274 = vmatpush1.msra.mxu0 0.0
        %2275 = vmatprep.subr.mxu0 0.0
        %2276 = vmatpush1.msra.mxu0 0.0
        %2277 = vmatprep.subr.mxu0 0.0
        %2278 = vmatpush1.msra.mxu0 0.0
        %2279 = vmatprep.subr.mxu0 0.0
        %2280 = vmatpush1.msra.mxu0 0.0
        %2281 = vmatprep.subr.mxu0 0.0
        %2282 = vmatpush1.msra.mxu0 0.0
        %2283 = vmatprep.subr.mxu0 0.0
        %2284 = vmatpush1.msra.mxu0 0.0
        %2285 = vmatprep.subr.mxu0 0.0
        %2286 = vmatpush1.msra.mxu0 0.0
        %2287 = vmatprep.subr.mxu0 0.0
        %2288 = vmatpush1.msra.mxu0 0.0
        %2289 = vmatprep.subr.mxu0 0.0
        %2290 = vmatpush1.msra.mxu0 0.0
        %2291 = vmatprep.subr.mxu0 0.0
        %2292 = vmatpush1.msra.mxu0 0.0
        %2293 = vmatprep.subr.mxu0 0.0
        %2294 = vmatpush1.msra.mxu0 0.0
        %2295 = vmatprep.mubr.f32.mxu0 0.0
        %2296 = vmatmul.mubr.f32.gmra.mrb[0].mxu0 %v2223
        %v2297 = vpop.f32.mrb[0].mxu0
        %v2298 = vadd.f32 0.0, %v2297
        %v2299 = vpop.f32.mrb[0].mxu0
        %v2300 = vadd.f32 0.0, %v2299
        %2301 = vdwg.mxu0
        %v2302 = vadd.f32 %v2210, %v2298
        %v2303 = vadd.f32 %v2211, %v2300
        %2304 = vrot.lane.b32.xlu0 %v1575, 111
        %v2305 = vpop.permute.xlu0 %2304
        %2306 = vrot.lane.b32.xlu0 %v1576, 111
        %v2307 = vpop.permute.xlu0 %2306
        %v2308 = vsel %vm1459, %v2305, %v2307
        %v2309 = vsel %vm1459, %v2307, %v2305
        %v2310 = vmul.f32 %v2308, %v1468
        %v2311 = vmul.f32 %v2309, %v1472
        %s2312 = scalar_lea.vmem %s4, 32
        %v2313 = vld [vmem:[%s2312] sm:$0xf]
        %v2315 = vsel %vm1598, %v2313, 0
        %v2318 = vsel %vm1602, %v2310, 0
        %v2321 = vsel %vm1602, %v2311, 0
        %2323 = vmatprep.subr.mxu0 %v2321
        %2324 = vmatpush1.msra.mxu0 %v2318
        %2325 = vmatprep.subr.mxu0 0.0
        %2326 = vmatpush1.msra.mxu0 0.0
        %2327 = vmatprep.subr.mxu0 0.0
        %2328 = vmatpush1.msra.mxu0 0.0
        %2329 = vmatprep.subr.mxu0 0.0
        %2330 = vmatpush1.msra.mxu0 0.0
        %2331 = vmatprep.subr.mxu0 0.0
        %2332 = vmatpush1.msra.mxu0 0.0
        %2333 = vmatprep.subr.mxu0 0.0
        %2334 = vmatpush1.msra.mxu0 0.0
        %2335 = vmatprep.subr.mxu0 0.0
        %2336 = vmatpush1.msra.mxu0 0.0
        %2337 = vmatprep.subr.mxu0 0.0
        %2338 = vmatpush1.msra.mxu0 0.0
        %2339 = vmatprep.subr.mxu0 0.0
        %2340 = vmatpush1.msra.mxu0 0.0
        %2341 = vmatprep.subr.mxu0 0.0
        %2342 = vmatpush1.msra.mxu0 0.0
        %2343 = vmatprep.subr.mxu0 0.0
        %2344 = vmatpush1.msra.mxu0 0.0
        %2345 = vmatprep.subr.mxu0 0.0
        %2346 = vmatpush1.msra.mxu0 0.0
        %2347 = vmatprep.subr.mxu0 0.0
        %2348 = vmatpush1.msra.mxu0 0.0
        %2349 = vmatprep.subr.mxu0 0.0
        %2350 = vmatpush1.msra.mxu0 0.0
        %2351 = vmatprep.subr.mxu0 0.0
        %2352 = vmatpush1.msra.mxu0 0.0
        %2353 = vmatprep.subr.mxu0 0.0
        %2354 = vmatpush1.msra.mxu0 0.0
        %2355 = vmatprep.subr.mxu0 0.0
        %2356 = vmatpush1.msra.mxu0 0.0
        %2357 = vmatprep.subr.mxu0 0.0
        %2358 = vmatpush1.msra.mxu0 0.0
        %2359 = vmatprep.subr.mxu0 0.0
        %2360 = vmatpush1.msra.mxu0 0.0
        %2361 = vmatprep.subr.mxu0 0.0
        %2362 = vmatpush1.msra.mxu0 0.0
        %2363 = vmatprep.subr.mxu0 0.0
        %2364 = vmatpush1.msra.mxu0 0.0
        %2365 = vmatprep.subr.mxu0 0.0
        %2366 = vmatpush1.msra.mxu0 0.0
        %2367 = vmatprep.subr.mxu0 0.0
        %2368 = vmatpush1.msra.mxu0 0.0
        %2369 = vmatprep.subr.mxu0 0.0
        %2370 = vmatpush1.msra.mxu0 0.0
        %2371 = vmatprep.subr.mxu0 0.0
        %2372 = vmatpush1.msra.mxu0 0.0
        %2373 = vmatprep.subr.mxu0 0.0
        %2374 = vmatpush1.msra.mxu0 0.0
        %2375 = vmatprep.subr.mxu0 0.0
        %2376 = vmatpush1.msra.mxu0 0.0
        %2377 = vmatprep.subr.mxu0 0.0
        %2378 = vmatpush1.msra.mxu0 0.0
        %2379 = vmatprep.subr.mxu0 0.0
        %2380 = vmatpush1.msra.mxu0 0.0
        %2381 = vmatprep.subr.mxu0 0.0
        %2382 = vmatpush1.msra.mxu0 0.0
        %2383 = vmatprep.subr.mxu0 0.0
        %2384 = vmatpush1.msra.mxu0 0.0
        %2385 = vmatprep.subr.mxu0 0.0
        %2386 = vmatpush1.msra.mxu0 0.0
        %2387 = vmatprep.mubr.f32.mxu0 0.0
        %2388 = vmatmul.mubr.f32.gmra.mrb[0].mxu0 %v2315
        %v2389 = vpop.f32.mrb[0].mxu0
        %v2390 = vadd.f32 0.0, %v2389
        %v2391 = vpop.f32.mrb[0].mxu0
        %v2392 = vadd.f32 0.0, %v2391
        %2393 = vdwg.mxu0
        %v2394 = vadd.f32 %v2302, %v2390
        %v2395 = vadd.f32 %v2303, %v2392
        %2397 = vset.pattern.permute.xlu0 0
        %2398 = vperm.xlu0 %2397, %v1577
        %v2399 = vpop.permute.xlu0 %2398
        %v2401 = vmul.f32 %v2394, %v2399
        %v2402 = vmul.f32 %v2395, %v2399
        %2404 = vset.pattern.permute.xlu0 0
        %2405 = vperm.xlu0 %2404, %v1578
        %v2406 = vpop.permute.xlu0 %2405
        %v2408 = vadd.f32 %v2401, %v2406
        %v2409 = vadd.f32 %v2402, %v2406
        %v2410 = vmax.f32 %v2408, 0.0
        %v2411 = vmax.f32 %v2409, 0.0
        %v2412 = vld [vmem:[%s8] sm:$0xff]
        %v2413 = vld [vmem:[%s8 + $0x8] sm:$0xff]
        %v2414 = vld [vmem:[%s8 + $0x10] sm:$0xff]
        %v2415 = vld [vmem:[%s8 + $0x18] sm:$0xff]
        %v2416 = vld [vmem:[%s8 + $0x20] sm:$0xff]
        %v2417 = vld [vmem:[%s8 + $0x28] sm:$0xff]
        %v2418 = vld [vmem:[%s8 + $0x30] sm:$0xff]
        %v2419 = vld [vmem:[%s8 + $0x38] sm:$0xff]
        %v2420 = vld [vmem:[%s8 + $0x40] sm:$0xff]
        %v2421 = vld [vmem:[%s8 + $0x48] sm:$0xff]
        %v2422 = vld [vmem:[%s8 + $0x50] sm:$0xff]
        %v2423 = vld [vmem:[%s8 + $0x58] sm:$0xff]
        %v2424 = vld [vmem:[%s8 + $0x60] sm:$0xff]
        %v2425 = vld [vmem:[%s8 + $0x68] sm:$0xff]
        %v2426 = vld [vmem:[%s8 + $0x70] sm:$0xff]
        %v2427 = vld [vmem:[%s8 + $0x78] sm:$0xff]
        %v2428 = vld [vmem:[%s8 + $0x80] sm:$0xff]
        %v2429 = vld [vmem:[%s8 + $0x88] sm:$0xff]
        %v2430 = vld [vmem:[%s8 + $0x90] sm:$0xff]
        %v2431 = vld [vmem:[%s8 + $0x98] sm:$0xff]
        %v2432 = vld [vmem:[%s8 + $0xa0] sm:$0xff]
        %v2433 = vld [vmem:[%s8 + $0xa8] sm:$0xff]
        %v2434 = vld [vmem:[%s8 + $0xb0] sm:$0xff]
        %v2435 = vld [vmem:[%s8 + $0xb8] sm:$0xff]
        %v2436 = vld [vmem:[%s8 + $0xc0] sm:$0xff]
        %v2437 = vld [vmem:[%s8 + $0xc8] sm:$0xff]
        %v2438 = vld [vmem:[%s8 + $0xd0] sm:$0xff]
        %v2439 = vld [vmem:[%s8 + $0xd8] sm:$0xff]
        %v2440 = vld [vmem:[%s8 + $0xe0] sm:$0xff]
        %v2441 = vld [vmem:[%s8 + $0xe8] sm:$0xff]
        %v2442 = vld [vmem:[%s8 + $0xf0] sm:$0xff]
        %v2443 = vld [vmem:[%s8 + $0xf8] sm:$0xff]
        %2444 = vrot.lane.b32.xlu0 %v2410, 127
        %v2445 = vpop.permute.xlu0 %2444
        %2446 = vrot.lane.b32.xlu0 %v2411, 127
        %v2447 = vpop.permute.xlu0 %2446
        %v2448 = vsel %vm1141, %v2445, %v2447
        %v2449 = vsel %vm1141, %v2447, %v2445
        %v2450 = vmax.f32 %v2410, %v2448
        %v2451 = vmax.f32 %v2411, %v2449
        %2452 = vrot.lane.b32.xlu0 %v2450, 112
        %v2453 = vpop.permute.xlu0 %2452
        %2454 = vrot.lane.b32.xlu0 %v2451, 112
        %v2455 = vpop.permute.xlu0 %2454
        %v2456 = vsel %vm1353, %v2453, %v2455
        %v2457 = vsel %vm1353, %v2455, %v2453
        %v2458 = vmax.f32 %v2450, %v2456
        %v2459 = vmax.f32 %v2451, %v2457
        %2460 = vmatprep.subr.mxu0 0.0
        %2461 = vmatpush1.msra.mxu0 %v2412
        %2462 = vmatprep.subr.mxu0 0.0
        %2463 = vmatpush1.msra.mxu0 %v2413
        %2464 = vmatprep.subr.mxu0 0.0
        %2465 = vmatpush1.msra.mxu0 %v2414
        %2466 = vmatprep.subr.mxu0 0.0
        %2467 = vmatpush1.msra.mxu0 %v2415
        %2468 = vmatprep.subr.mxu0 0.0
        %2469 = vmatpush1.msra.mxu0 %v2416
        %2470 = vmatprep.subr.mxu0 0.0
        %2471 = vmatpush1.msra.mxu0 %v2417
        %2472 = vmatprep.subr.mxu0 0.0
        %2473 = vmatpush1.msra.mxu0 %v2418
        %2474 = vmatprep.subr.mxu0 0.0
        %2475 = vmatpush1.msra.mxu0 %v2419
        %2476 = vmatprep.subr.mxu0 0.0
        %2477 = vmatpush1.msra.mxu0 %v2420
        %2478 = vmatprep.subr.mxu0 0.0
        %2479 = vmatpush1.msra.mxu0 %v2421
        %2480 = vmatprep.subr.mxu0 0.0
        %2481 = vmatpush1.msra.mxu0 %v2422
        %2482 = vmatprep.subr.mxu0 0.0
        %2483 = vmatpush1.msra.mxu0 %v2423
        %2484 = vmatprep.subr.mxu0 0.0
        %2485 = vmatpush1.msra.mxu0 %v2424
        %2486 = vmatprep.subr.mxu0 0.0
        %2487 = vmatpush1.msra.mxu0 %v2425
        %2488 = vmatprep.subr.mxu0 0.0
        %2489 = vmatpush1.msra.mxu0 %v2426
        %2490 = vmatprep.subr.mxu0 0.0
        %2491 = vmatpush1.msra.mxu0 %v2427
        %2492 = vmatprep.subr.mxu0 0.0
        %2493 = vmatpush1.msra.mxu0 %v2428
        %2494 = vmatprep.subr.mxu0 0.0
        %2495 = vmatpush1.msra.mxu0 %v2429
        %2496 = vmatprep.subr.mxu0 0.0
        %2497 = vmatpush1.msra.mxu0 %v2430
        %2498 = vmatprep.subr.mxu0 0.0
        %2499 = vmatpush1.msra.mxu0 %v2431
        %2500 = vmatprep.subr.mxu0 0.0
        %2501 = vmatpush1.msra.mxu0 %v2432
        %2502 = vmatprep.subr.mxu0 0.0
        %2503 = vmatpush1.msra.mxu0 %v2433
        %2504 = vmatprep.subr.mxu0 0.0
        %2505 = vmatpush1.msra.mxu0 %v2434
        %2506 = vmatprep.subr.mxu0 0.0
        %2507 = vmatpush1.msra.mxu0 %v2435
        %2508 = vmatprep.subr.mxu0 0.0
        %2509 = vmatpush1.msra.mxu0 %v2436
        %2510 = vmatprep.subr.mxu0 0.0
        %2511 = vmatpush1.msra.mxu0 %v2437
        %2512 = vmatprep.subr.mxu0 0.0
        %2513 = vmatpush1.msra.mxu0 %v2438
        %2514 = vmatprep.subr.mxu0 0.0
        %2515 = vmatpush1.msra.mxu0 %v2439
        %2516 = vmatprep.subr.mxu0 0.0
        %2517 = vmatpush1.msra.mxu0 %v2440
        %2518 = vmatprep.subr.mxu0 0.0
        %2519 = vmatpush1.msra.mxu0 %v2441
        %2520 = vmatprep.subr.mxu0 0.0
        %2521 = vmatpush1.msra.mxu0 %v2442
        %2522 = vmatprep.subr.mxu0 0.0
        %2523 = vmatpush1.msra.mxu0 %v2443
        %2524 = vmatprep.mubr.f32.mxu0 %v2459
        %2525 = vmatmul.mubr.f32.gmra.mrb[0].mxu0 %v2458
        %v2526 = vpop.f32.mrb[0].mxu0
        %v2527 = vadd.f32 0.0, %v2526
        %v2528 = vpop.f32.mrb[0].mxu0
        %2529 = vdwg.mxu0
        %v2530 = vld [vmem:[%s10] sm:$0xff]
        %v2531 = vld [vmem:[%s11] sm:$0xff]
        %2532 = vrot.lane.b32.xlu0 %v2527, 9
        %v2533 = vpop.permute.xlu0 %2532
        %v2534 = vld [vmem:[%s12] sm:$0x1]
        %v2536 = vlaneseq
        %v2537 = vshrl.u32 %v2536, 7
        %v2538 = vsub.s32 0, %v2537
        %v2539 = vrot.slane %v2534, %v2538
        %v2541 = vmul.f32 %v2533, %v2539
        %v2542 = vld [vmem:[%s9] sm:$0xff]
        %2543 = vrot.lane.b32.xlu0 %v2527, 8
        %v2544 = vpop.permute.xlu0 %2543
        %s2545 = scalar_lea.vmem %s12, 1
        %v2546 = vld [vmem:[%s2545] sm:$0x1]
        %v2548 = vlaneseq
        %v2549 = vshrl.u32 %v2548, 7
        %v2550 = vsub.s32 0, %v2549
        %v2551 = vrot.slane %v2546, %v2550
        %v2553 = vmul.f32 %v2544, %v2551
        %s2554 = scalar_lea.vmem %s9, 8
        %v2555 = vld [vmem:[%s2554] sm:$0xff]
        %v2557 = vsel %vm1598, %v2555, 0
        %v2560 = vsel %vm1602, %v2553, 0
        %2562 = vmatprep.subr.mxu0 0.0
        %2563 = vmatpush1.msra.mxu0 %v2560
        %2564 = vmatprep.subr.mxu0 0.0
        %2565 = vmatpush1.msra.mxu0 0.0
        %2566 = vmatprep.subr.mxu0 0.0
        %2567 = vmatpush1.msra.mxu0 0.0
        %2568 = vmatprep.subr.mxu0 0.0
        %2569 = vmatpush1.msra.mxu0 0.0
        %2570 = vmatprep.subr.mxu0 0.0
        %2571 = vmatpush1.msra.mxu0 0.0
        %2572 = vmatprep.subr.mxu0 0.0
        %2573 = vmatpush1.msra.mxu0 0.0
        %2574 = vmatprep.subr.mxu0 0.0
        %2575 = vmatpush1.msra.mxu0 0.0
        %2576 = vmatprep.subr.mxu0 0.0
        %2577 = vmatpush1.msra.mxu0 0.0
        %2578 = vmatprep.subr.mxu0 0.0
        %2579 = vmatpush1.msra.mxu0 0.0
        %2580 = vmatprep.subr.mxu0 0.0
        %2581 = vmatpush1.msra.mxu0 0.0
        %2582 = vmatprep.subr.mxu0 0.0
        %2583 = vmatpush1.msra.mxu0 0.0
        %2584 = vmatprep.subr.mxu0 0.0
        %2585 = vmatpush1.msra.mxu0 0.0
        %2586 = vmatprep.subr.mxu0 0.0
        %2587 = vmatpush1.msra.mxu0 0.0
        %2588 = vmatprep.subr.mxu0 0.0
        %2589 = vmatpush1.msra.mxu0 0.0
        %2590 = vmatprep.subr.mxu0 0.0
        %2591 = vmatpush1.msra.mxu0 0.0
        %2592 = vmatprep.subr.mxu0 0.0
        %2593 = vmatpush1.msra.mxu0 0.0
        %2594 = vmatprep.subr.mxu0 0.0
        %2595 = vmatpush1.msra.mxu0 0.0
        %2596 = vmatprep.subr.mxu0 0.0
        %2597 = vmatpush1.msra.mxu0 0.0
        %2598 = vmatprep.subr.mxu0 0.0
        %2599 = vmatpush1.msra.mxu0 0.0
        %2600 = vmatprep.subr.mxu0 0.0
        %2601 = vmatpush1.msra.mxu0 0.0
        %2602 = vmatprep.subr.mxu0 0.0
        %2603 = vmatpush1.msra.mxu0 0.0
        %2604 = vmatprep.subr.mxu0 0.0
        %2605 = vmatpush1.msra.mxu0 0.0
        %2606 = vmatprep.subr.mxu0 0.0
        %2607 = vmatpush1.msra.mxu0 0.0
        %2608 = vmatprep.subr.mxu0 0.0
        %2609 = vmatpush1.msra.mxu0 0.0
        %2610 = vmatprep.subr.mxu0 0.0
        %2611 = vmatpush1.msra.mxu0 0.0
        %2612 = vmatprep.subr.mxu0 0.0
        %2613 = vmatpush1.msra.mxu0 0.0
        %2614 = vmatprep.subr.mxu0 0.0
        %2615 = vmatpush1.msra.mxu0 0.0
        %2616 = vmatprep.subr.mxu0 0.0
        %2617 = vmatpush1.msra.mxu0 0.0
        %2618 = vmatprep.subr.mxu0 0.0
        %2619 = vmatpush1.msra.mxu0 0.0
        %2620 = vmatprep.subr.mxu0 0.0
        %2621 = vmatpush1.msra.mxu0 0.0
        %2622 = vmatprep.subr.mxu0 0.0
        %2623 = vmatpush1.msra.mxu0 0.0
        %2624 = vmatprep.subr.mxu0 0.0
        %2625 = vmatpush1.msra.mxu0 0.0
        %2626 = vmatprep.mubr.f32.mxu0 0.0
        %2627 = vmatmul.mubr.f32.gmra.mrb[0].mxu0 %v2557
        %v2628 = vpop.f32.mrb[0].mxu0
        %v2629 = vadd.f32 0.0, %v2628
        %v2630 = vpop.f32.mrb[0].mxu0
        %2631 = vdwg.mxu0
        %v2633 = vsel %vm1598, %v2542, 0
        %v2636 = vsel %vm1602, %v2541, 0
        %2638 = vmatprep.subr.mxu0 0.0
        %2639 = vmatpush1.msra.mxu0 %v2636
        %2640 = vmatprep.subr.mxu0 0.0
        %2641 = vmatpush1.msra.mxu0 0.0
        %2642 = vmatprep.subr.mxu0 0.0
        %2643 = vmatpush1.msra.mxu0 0.0
        %2644 = vmatprep.subr.mxu0 0.0
        %2645 = vmatpush1.msra.mxu0 0.0
        %2646 = vmatprep.subr.mxu0 0.0
        %2647 = vmatpush1.msra.mxu0 0.0
        %2648 = vmatprep.subr.mxu0 0.0
        %2649 = vmatpush1.msra.mxu0 0.0
        %2650 = vmatprep.subr.mxu0 0.0
        %2651 = vmatpush1.msra.mxu0 0.0
        %2652 = vmatprep.subr.mxu0 0.0
        %2653 = vmatpush1.msra.mxu0 0.0
        %2654 = vmatprep.subr.mxu0 0.0
        %2655 = vmatpush1.msra.mxu0 0.0
        %2656 = vmatprep.subr.mxu0 0.0
        %2657 = vmatpush1.msra.mxu0 0.0
        %2658 = vmatprep.subr.mxu0 0.0
        %2659 = vmatpush1.msra.mxu0 0.0
        %2660 = vmatprep.subr.mxu0 0.0
        %2661 = vmatpush1.msra.mxu0 0.0
        %2662 = vmatprep.subr.mxu0 0.0
        %2663 = vmatpush1.msra.mxu0 0.0
        %2664 = vmatprep.subr.mxu0 0.0
        %2665 = vmatpush1.msra.mxu0 0.0
        %2666 = vmatprep.subr.mxu0 0.0
        %2667 = vmatpush1.msra.mxu0 0.0
        %2668 = vmatprep.subr.mxu0 0.0
        %2669 = vmatpush1.msra.mxu0 0.0
        %2670 = vmatprep.subr.mxu0 0.0
        %2671 = vmatpush1.msra.mxu0 0.0
        %2672 = vmatprep.subr.mxu0 0.0
        %2673 = vmatpush1.msra.mxu0 0.0
        %2674 = vmatprep.subr.mxu0 0.0
        %2675 = vmatpush1.msra.mxu0 0.0
        %2676 = vmatprep.subr.mxu0 0.0
        %2677 = vmatpush1.msra.mxu0 0.0
        %2678 = vmatprep.subr.mxu0 0.0
        %2679 = vmatpush1.msra.mxu0 0.0
        %2680 = vmatprep.subr.mxu0 0.0
        %2681 = vmatpush1.msra.mxu0 0.0
        %2682 = vmatprep.subr.mxu0 0.0
        %2683 = vmatpush1.msra.mxu0 0.0
        %2684 = vmatprep.subr.mxu0 0.0
        %2685 = vmatpush1.msra.mxu0 0.0
        %2686 = vmatprep.subr.mxu0 0.0
        %2687 = vmatpush1.msra.mxu0 0.0
        %2688 = vmatprep.subr.mxu0 0.0
        %2689 = vmatpush1.msra.mxu0 0.0
        %2690 = vmatprep.subr.mxu0 0.0
        %2691 = vmatpush1.msra.mxu0 0.0
        %2692 = vmatprep.subr.mxu0 0.0
        %2693 = vmatpush1.msra.mxu0 0.0
        %2694 = vmatprep.subr.mxu0 0.0
        %2695 = vmatpush1.msra.mxu0 0.0
        %2696 = vmatprep.subr.mxu0 0.0
        %2697 = vmatpush1.msra.mxu0 0.0
        %2698 = vmatprep.subr.mxu0 0.0
        %2699 = vmatpush1.msra.mxu0 0.0
        %2700 = vmatprep.subr.mxu0 0.0
        %2701 = vmatpush1.msra.mxu0 0.0
        %2702 = vmatprep.mubr.f32.mxu0 0.0
        %2703 = vmatmul.mubr.f32.gmra.mrb[0].mxu0 %v2633
        %v2704 = vpop.f32.mrb[0].mxu0
        %v2705 = vadd.f32 %v2629, %v2704
        %v2706 = vpop.f32.mrb[0].mxu0
        %2707 = vdwg.mxu0
        %2708 = vrot.lane.b32.xlu0 %v2527, 7
        %v2709 = vpop.permute.xlu0 %2708
        %s2710 = scalar_lea.vmem %s12, 2
        %v2711 = vld [vmem:[%s2710] sm:$0x1]
        %v2713 = vlaneseq
        %v2714 = vshrl.u32 %v2713, 7
        %v2715 = vsub.s32 0, %v2714
        %v2716 = vrot.slane %v2711, %v2715
        %v2718 = vmul.f32 %v2709, %v2716
        %s2719 = scalar_lea.vmem %s9, 16
        %v2720 = vld [vmem:[%s2719] sm:$0xff]
        %v2722 = vsel %vm1598, %v2720, 0
        %v2725 = vsel %vm1602, %v2718, 0
        %2727 = vmatprep.subr.mxu0 0.0
        %2728 = vmatpush1.msra.mxu0 %v2725
        %2729 = vmatprep.subr.mxu0 0.0
        %2730 = vmatpush1.msra.mxu0 0.0
        %2731 = vmatprep.subr.mxu0 0.0
        %2732 = vmatpush1.msra.mxu0 0.0
        %2733 = vmatprep.subr.mxu0 0.0
        %2734 = vmatpush1.msra.mxu0 0.0
        %2735 = vmatprep.subr.mxu0 0.0
        %2736 = vmatpush1.msra.mxu0 0.0
        %2737 = vmatprep.subr.mxu0 0.0
        %2738 = vmatpush1.msra.mxu0 0.0
        %2739 = vmatprep.subr.mxu0 0.0
        %2740 = vmatpush1.msra.mxu0 0.0
        %2741 = vmatprep.subr.mxu0 0.0
        %2742 = vmatpush1.msra.mxu0 0.0
        %2743 = vmatprep.subr.mxu0 0.0
        %2744 = vmatpush1.msra.mxu0 0.0
        %2745 = vmatprep.subr.mxu0 0.0
        %2746 = vmatpush1.msra.mxu0 0.0
        %2747 = vmatprep.subr.mxu0 0.0
        %2748 = vmatpush1.msra.mxu0 0.0
        %2749 = vmatprep.subr.mxu0 0.0
        %2750 = vmatpush1.msra.mxu0 0.0
        %2751 = vmatprep.subr.mxu0 0.0
        %2752 = vmatpush1.msra.mxu0 0.0
        %2753 = vmatprep.subr.mxu0 0.0
        %2754 = vmatpush1.msra.mxu0 0.0
        %2755 = vmatprep.subr.mxu0 0.0
        %2756 = vmatpush1.msra.mxu0 0.0
        %2757 = vmatprep.subr.mxu0 0.0
        %2758 = vmatpush1.msra.mxu0 0.0
        %2759 = vmatprep.subr.mxu0 0.0
        %2760 = vmatpush1.msra.mxu0 0.0
        %2761 = vmatprep.subr.mxu0 0.0
        %2762 = vmatpush1.msra.mxu0 0.0
        %2763 = vmatprep.subr.mxu0 0.0
        %2764 = vmatpush1.msra.mxu0 0.0
        %2765 = vmatprep.subr.mxu0 0.0
        %2766 = vmatpush1.msra.mxu0 0.0
        %2767 = vmatprep.subr.mxu0 0.0
        %2768 = vmatpush1.msra.mxu0 0.0
        %2769 = vmatprep.subr.mxu0 0.0
        %2770 = vmatpush1.msra.mxu0 0.0
        %2771 = vmatprep.subr.mxu0 0.0
        %2772 = vmatpush1.msra.mxu0 0.0
        %2773 = vmatprep.subr.mxu0 0.0
        %2774 = vmatpush1.msra.mxu0 0.0
        %2775 = vmatprep.subr.mxu0 0.0
        %2776 = vmatpush1.msra.mxu0 0.0
        %2777 = vmatprep.subr.mxu0 0.0
        %2778 = vmatpush1.msra.mxu0 0.0
        %2779 = vmatprep.subr.mxu0 0.0
        %2780 = vmatpush1.msra.mxu0 0.0
        %2781 = vmatprep.subr.mxu0 0.0
        %2782 = vmatpush1.msra.mxu0 0.0
        %2783 = vmatprep.subr.mxu0 0.0
        %2784 = vmatpush1.msra.mxu0 0.0
        %2785 = vmatprep.subr.mxu0 0.0
        %2786 = vmatpush1.msra.mxu0 0.0
        %2787 = vmatprep.subr.mxu0 0.0
        %2788 = vmatpush1.msra.mxu0 0.0
        %2789 = vmatprep.subr.mxu0 0.0
        %2790 = vmatpush1.msra.mxu0 0.0
        %2791 = vmatprep.mubr.f32.mxu0 0.0
        %2792 = vmatmul.mubr.f32.gmra.mrb[0].mxu0 %v2722
        %v2793 = vpop.f32.mrb[0].mxu0
        %v2794 = vadd.f32 0.0, %v2793
        %v2795 = vpop.f32.mrb[0].mxu0
        %2796 = vdwg.mxu0
        %v2797 = vadd.f32 %v2705, %v2794
        %2798 = vrot.lane.b32.xlu0 %v2527, 1
        %v2799 = vpop.permute.xlu0 %2798
        %s2800 = scalar_lea.vmem %s12, 3
        %v2801 = vld [vmem:[%s2800] sm:$0x1]
        %v2803 = vlaneseq
        %v2804 = vshrl.u32 %v2803, 7
        %v2805 = vsub.s32 0, %v2804
        %v2806 = vrot.slane %v2801, %v2805
        %v2808 = vmul.f32 %v2799, %v2806
        %s2809 = scalar_lea.vmem %s9, 24
        %v2810 = vld [vmem:[%s2809] sm:$0xff]
        %v2812 = vsel %vm1598, %v2810, 0
        %v2815 = vsel %vm1602, %v2808, 0
        %2817 = vmatprep.subr.mxu0 0.0
        %2818 = vmatpush1.msra.mxu0 %v2815
        %2819 = vmatprep.subr.mxu0 0.0
        %2820 = vmatpush1.msra.mxu0 0.0
        %2821 = vmatprep.subr.mxu0 0.0
        %2822 = vmatpush1.msra.mxu0 0.0
        %2823 = vmatprep.subr.mxu0 0.0
        %2824 = vmatpush1.msra.mxu0 0.0
        %2825 = vmatprep.subr.mxu0 0.0
        %2826 = vmatpush1.msra.mxu0 0.0
        %2827 = vmatprep.subr.mxu0 0.0
        %2828 = vmatpush1.msra.mxu0 0.0
        %2829 = vmatprep.subr.mxu0 0.0
        %2830 = vmatpush1.msra.mxu0 0.0
        %2831 = vmatprep.subr.mxu0 0.0
        %2832 = vmatpush1.msra.mxu0 0.0
        %2833 = vmatprep.subr.mxu0 0.0
        %2834 = vmatpush1.msra.mxu0 0.0
        %2835 = vmatprep.subr.mxu0 0.0
        %2836 = vmatpush1.msra.mxu0 0.0
        %2837 = vmatprep.subr.mxu0 0.0
        %2838 = vmatpush1.msra.mxu0 0.0
        %2839 = vmatprep.subr.mxu0 0.0
        %2840 = vmatpush1.msra.mxu0 0.0
        %2841 = vmatprep.subr.mxu0 0.0
        %2842 = vmatpush1.msra.mxu0 0.0
        %2843 = vmatprep.subr.mxu0 0.0
        %2844 = vmatpush1.msra.mxu0 0.0
        %2845 = vmatprep.subr.mxu0 0.0
        %2846 = vmatpush1.msra.mxu0 0.0
        %2847 = vmatprep.subr.mxu0 0.0
        %2848 = vmatpush1.msra.mxu0 0.0
        %2849 = vmatprep.subr.mxu0 0.0
        %2850 = vmatpush1.msra.mxu0 0.0
        %2851 = vmatprep.subr.mxu0 0.0
        %2852 = vmatpush1.msra.mxu0 0.0
        %2853 = vmatprep.subr.mxu0 0.0
        %2854 = vmatpush1.msra.mxu0 0.0
        %2855 = vmatprep.subr.mxu0 0.0
        %2856 = vmatpush1.msra.mxu0 0.0
        %2857 = vmatprep.subr.mxu0 0.0
        %2858 = vmatpush1.msra.mxu0 0.0
        %2859 = vmatprep.subr.mxu0 0.0
        %2860 = vmatpush1.msra.mxu0 0.0
        %2861 = vmatprep.subr.mxu0 0.0
        %2862 = vmatpush1.msra.mxu0 0.0
        %2863 = vmatprep.subr.mxu0 0.0
        %2864 = vmatpush1.msra.mxu0 0.0
        %2865 = vmatprep.subr.mxu0 0.0
        %2866 = vmatpush1.msra.mxu0 0.0
        %2867 = vmatprep.subr.mxu0 0.0
        %2868 = vmatpush1.msra.mxu0 0.0
        %2869 = vmatprep.subr.mxu0 0.0
        %2870 = vmatpush1.msra.mxu0 0.0
        %2871 = vmatprep.subr.mxu0 0.0
        %2872 = vmatpush1.msra.mxu0 0.0
        %2873 = vmatprep.subr.mxu0 0.0
        %2874 = vmatpush1.msra.mxu0 0.0
        %2875 = vmatprep.subr.mxu0 0.0
        %2876 = vmatpush1.msra.mxu0 0.0
        %2877 = vmatprep.subr.mxu0 0.0
        %2878 = vmatpush1.msra.mxu0 0.0
        %2879 = vmatprep.subr.mxu0 0.0
        %2880 = vmatpush1.msra.mxu0 0.0
        %2881 = vmatprep.mubr.f32.mxu0 0.0
        %2882 = vmatmul.mubr.f32.gmra.mrb[0].mxu0 %v2812
        %v2883 = vpop.f32.mrb[0].mxu0
        %v2884 = vadd.f32 0.0, %v2883
        %v2885 = vpop.f32.mrb[0].mxu0
        %2886 = vdwg.mxu0
        %v2887 = vadd.f32 %v2797, %v2884
        %s2888 = scalar_lea.vmem %s9, 32
        %v2889 = vld [vmem:[%s2888] sm:$0xff]
        %v2891 = vsel %vm1598, %v2889, 0
        %v2894 = vsel %vm1602, %v2527, 0
        %2896 = vmatprep.subr.mxu0 0.0
        %2897 = vmatpush1.msra.mxu0 %v2894
        %2898 = vmatprep.subr.mxu0 0.0
        %2899 = vmatpush1.msra.mxu0 0.0
        %2900 = vmatprep.subr.mxu0 0.0
        %2901 = vmatpush1.msra.mxu0 0.0
        %2902 = vmatprep.subr.mxu0 0.0
        %2903 = vmatpush1.msra.mxu0 0.0
        %2904 = vmatprep.subr.mxu0 0.0
        %2905 = vmatpush1.msra.mxu0 0.0
        %2906 = vmatprep.subr.mxu0 0.0
        %2907 = vmatpush1.msra.mxu0 0.0
        %2908 = vmatprep.subr.mxu0 0.0
        %2909 = vmatpush1.msra.mxu0 0.0
        %2910 = vmatprep.subr.mxu0 0.0
        %2911 = vmatpush1.msra.mxu0 0.0
        %2912 = vmatprep.subr.mxu0 0.0
        %2913 = vmatpush1.msra.mxu0 0.0
        %2914 = vmatprep.subr.mxu0 0.0
        %2915 = vmatpush1.msra.mxu0 0.0
        %2916 = vmatprep.subr.mxu0 0.0
        %2917 = vmatpush1.msra.mxu0 0.0
        %2918 = vmatprep.subr.mxu0 0.0
        %2919 = vmatpush1.msra.mxu0 0.0
        %2920 = vmatprep.subr.mxu0 0.0
        %2921 = vmatpush1.msra.mxu0 0.0
        %2922 = vmatprep.subr.mxu0 0.0
        %2923 = vmatpush1.msra.mxu0 0.0
        %2924 = vmatprep.subr.mxu0 0.0
        %2925 = vmatpush1.msra.mxu0 0.0
        %2926 = vmatprep.subr.mxu0 0.0
        %2927 = vmatpush1.msra.mxu0 0.0
        %2928 = vmatprep.subr.mxu0 0.0
        %2929 = vmatpush1.msra.mxu0 0.0
        %2930 = vmatprep.subr.mxu0 0.0
        %2931 = vmatpush1.msra.mxu0 0.0
        %2932 = vmatprep.subr.mxu0 0.0
        %2933 = vmatpush1.msra.mxu0 0.0
        %2934 = vmatprep.subr.mxu0 0.0
        %2935 = vmatpush1.msra.mxu0 0.0
        %2936 = vmatprep.subr.mxu0 0.0
        %2937 = vmatpush1.msra.mxu0 0.0
        %2938 = vmatprep.subr.mxu0 0.0
        %2939 = vmatpush1.msra.mxu0 0.0
        %2940 = vmatprep.subr.mxu0 0.0
        %2941 = vmatpush1.msra.mxu0 0.0
        %2942 = vmatprep.subr.mxu0 0.0
        %2943 = vmatpush1.msra.mxu0 0.0
        %2944 = vmatprep.subr.mxu0 0.0
        %2945 = vmatpush1.msra.mxu0 0.0
        %2946 = vmatprep.subr.mxu0 0.0
        %2947 = vmatpush1.msra.mxu0 0.0
        %2948 = vmatprep.subr.mxu0 0.0
        %2949 = vmatpush1.msra.mxu0 0.0
        %2950 = vmatprep.subr.mxu0 0.0
        %2951 = vmatpush1.msra.mxu0 0.0
        %2952 = vmatprep.subr.mxu0 0.0
        %2953 = vmatpush1.msra.mxu0 0.0
        %2954 = vmatprep.subr.mxu0 0.0
        %2955 = vmatpush1.msra.mxu0 0.0
        %2956 = vmatprep.subr.mxu0 0.0
        %2957 = vmatpush1.msra.mxu0 0.0
        %2958 = vmatprep.subr.mxu0 0.0
        %2959 = vmatpush1.msra.mxu0 0.0
        %2960 = vmatprep.mubr.f32.mxu0 0.0
        %2961 = vmatmul.mubr.f32.gmra.mrb[0].mxu0 %v2891
        %v2962 = vpop.f32.mrb[0].mxu0
        %v2963 = vadd.f32 0.0, %v2962
        %v2964 = vpop.f32.mrb[0].mxu0
        %2965 = vdwg.mxu0
        %v2966 = vadd.f32 %v2887, %v2963
        %2967 = vrot.lane.b32.xlu0 %v2527, 127
        %v2968 = vpop.permute.xlu0 %2967
        %s2969 = scalar_lea.vmem %s12, 5
        %v2970 = vld [vmem:[%s2969] sm:$0x1]
        %v2972 = vlaneseq
        %v2973 = vshrl.u32 %v2972, 7
        %v2974 = vsub.s32 0, %v2973
        %v2975 = vrot.slane %v2970, %v2974
        %v2977 = vmul.f32 %v2968, %v2975
        %s2978 = scalar_lea.vmem %s9, 40
        %v2979 = vld [vmem:[%s2978] sm:$0xff]
        %v2981 = vsel %vm1598, %v2979, 0
        %v2984 = vsel %vm1602, %v2977, 0
        %2986 = vmatprep.subr.mxu0 0.0
        %2987 = vmatpush1.msra.mxu0 %v2984
        %2988 = vmatprep.subr.mxu0 0.0
        %2989 = vmatpush1.msra.mxu0 0.0
        %2990 = vmatprep.subr.mxu0 0.0
        %2991 = vmatpush1.msra.mxu0 0.0
        %2992 = vmatprep.subr.mxu0 0.0
        %2993 = vmatpush1.msra.mxu0 0.0
        %2994 = vmatprep.subr.mxu0 0.0
        %2995 = vmatpush1.msra.mxu0 0.0
        %2996 = vmatprep.subr.mxu0 0.0
        %2997 = vmatpush1.msra.mxu0 0.0
        %2998 = vmatprep.subr.mxu0 0.0
        %2999 = vmatpush1.msra.mxu0 0.0
        %3000 = vmatprep.subr.mxu0 0.0
        %3001 = vmatpush1.msra.mxu0 0.0
        %3002 = vmatprep.subr.mxu0 0.0
        %3003 = vmatpush1.msra.mxu0 0.0
        %3004 = vmatprep.subr.mxu0 0.0
        %3005 = vmatpush1.msra.mxu0 0.0
        %3006 = vmatprep.subr.mxu0 0.0
        %3007 = vmatpush1.msra.mxu0 0.0
        %3008 = vmatprep.subr.mxu0 0.0
        %3009 = vmatpush1.msra.mxu0 0.0
        %3010 = vmatprep.subr.mxu0 0.0
        %3011 = vmatpush1.msra.mxu0 0.0
        %3012 = vmatprep.subr.mxu0 0.0
        %3013 = vmatpush1.msra.mxu0 0.0
        %3014 = vmatprep.subr.mxu0 0.0
        %3015 = vmatpush1.msra.mxu0 0.0
        %3016 = vmatprep.subr.mxu0 0.0
        %3017 = vmatpush1.msra.mxu0 0.0
        %3018 = vmatprep.subr.mxu0 0.0
        %3019 = vmatpush1.msra.mxu0 0.0
        %3020 = vmatprep.subr.mxu0 0.0
        %3021 = vmatpush1.msra.mxu0 0.0
        %3022 = vmatprep.subr.mxu0 0.0
        %3023 = vmatpush1.msra.mxu0 0.0
        %3024 = vmatprep.subr.mxu0 0.0
        %3025 = vmatpush1.msra.mxu0 0.0
        %3026 = vmatprep.subr.mxu0 0.0
        %3027 = vmatpush1.msra.mxu0 0.0
        %3028 = vmatprep.subr.mxu0 0.0
        %3029 = vmatpush1.msra.mxu0 0.0
        %3030 = vmatprep.subr.mxu0 0.0
        %3031 = vmatpush1.msra.mxu0 0.0
        %3032 = vmatprep.subr.mxu0 0.0
        %3033 = vmatpush1.msra.mxu0 0.0
        %3034 = vmatprep.subr.mxu0 0.0
        %3035 = vmatpush1.msra.mxu0 0.0
        %3036 = vmatprep.subr.mxu0 0.0
        %3037 = vmatpush1.msra.mxu0 0.0
        %3038 = vmatprep.subr.mxu0 0.0
        %3039 = vmatpush1.msra.mxu0 0.0
        %3040 = vmatprep.subr.mxu0 0.0
        %3041 = vmatpush1.msra.mxu0 0.0
        %3042 = vmatprep.subr.mxu0 0.0
        %3043 = vmatpush1.msra.mxu0 0.0
        %3044 = vmatprep.subr.mxu0 0.0
        %3045 = vmatpush1.msra.mxu0 0.0
        %3046 = vmatprep.subr.mxu0 0.0
        %3047 = vmatpush1.msra.mxu0 0.0
        %3048 = vmatprep.subr.mxu0 0.0
        %3049 = vmatpush1.msra.mxu0 0.0
        %3050 = vmatprep.mubr.f32.mxu0 0.0
        %3051 = vmatmul.mubr.f32.gmra.mrb[0].mxu0 %v2981
        %v3052 = vpop.f32.mrb[0].mxu0
        %v3053 = vadd.f32 0.0, %v3052
        %v3054 = vpop.f32.mrb[0].mxu0
        %3055 = vdwg.mxu0
        %v3056 = vadd.f32 %v2966, %v3053
        %3057 = vrot.lane.b32.xlu0 %v2527, 121
        %v3058 = vpop.permute.xlu0 %3057
        %s3059 = scalar_lea.vmem %s12, 6
        %v3060 = vld [vmem:[%s3059] sm:$0x1]
        %v3062 = vlaneseq
        %v3063 = vshrl.u32 %v3062, 7
        %v3064 = vsub.s32 0, %v3063
        %v3065 = vrot.slane %v3060, %v3064
        %v3067 = vmul.f32 %v3058, %v3065
        %s3068 = scalar_lea.vmem %s9, 48
        %v3069 = vld [vmem:[%s3068] sm:$0xff]
        %v3071 = vsel %vm1598, %v3069, 0
        %v3074 = vsel %vm1602, %v3067, 0
        %3076 = vmatprep.subr.mxu0 0.0
        %3077 = vmatpush1.msra.mxu0 %v3074
        %3078 = vmatprep.subr.mxu0 0.0
        %3079 = vmatpush1.msra.mxu0 0.0
        %3080 = vmatprep.subr.mxu0 0.0
        %3081 = vmatpush1.msra.mxu0 0.0
        %3082 = vmatprep.subr.mxu0 0.0
        %3083 = vmatpush1.msra.mxu0 0.0
        %3084 = vmatprep.subr.mxu0 0.0
        %3085 = vmatpush1.msra.mxu0 0.0
        %3086 = vmatprep.subr.mxu0 0.0
        %3087 = vmatpush1.msra.mxu0 0.0
        %3088 = vmatprep.subr.mxu0 0.0
        %3089 = vmatpush1.msra.mxu0 0.0
        %3090 = vmatprep.subr.mxu0 0.0
        %3091 = vmatpush1.msra.mxu0 0.0
        %3092 = vmatprep.subr.mxu0 0.0
        %3093 = vmatpush1.msra.mxu0 0.0
        %3094 = vmatprep.subr.mxu0 0.0
        %3095 = vmatpush1.msra.mxu0 0.0
        %3096 = vmatprep.subr.mxu0 0.0
        %3097 = vmatpush1.msra.mxu0 0.0
        %3098 = vmatprep.subr.mxu0 0.0
        %3099 = vmatpush1.msra.mxu0 0.0
        %3100 = vmatprep.subr.mxu0 0.0
        %3101 = vmatpush1.msra.mxu0 0.0
        %3102 = vmatprep.subr.mxu0 0.0
        %3103 = vmatpush1.msra.mxu0 0.0
        %3104 = vmatprep.subr.mxu0 0.0
        %3105 = vmatpush1.msra.mxu0 0.0
        %3106 = vmatprep.subr.mxu0 0.0
        %3107 = vmatpush1.msra.mxu0 0.0
        %3108 = vmatprep.subr.mxu0 0.0
        %3109 = vmatpush1.msra.mxu0 0.0
        %3110 = vmatprep.subr.mxu0 0.0
        %3111 = vmatpush1.msra.mxu0 0.0
        %3112 = vmatprep.subr.mxu0 0.0
        %3113 = vmatpush1.msra.mxu0 0.0
        %3114 = vmatprep.subr.mxu0 0.0
        %3115 = vmatpush1.msra.mxu0 0.0
        %3116 = vmatprep.subr.mxu0 0.0
        %3117 = vmatpush1.msra.mxu0 0.0
        %3118 = vmatprep.subr.mxu0 0.0
        %3119 = vmatpush1.msra.mxu0 0.0
        %3120 = vmatprep.subr.mxu0 0.0
        %3121 = vmatpush1.msra.mxu0 0.0
        %3122 = vmatprep.subr.mxu0 0.0
        %3123 = vmatpush1.msra.mxu0 0.0
        %3124 = vmatprep.subr.mxu0 0.0
        %3125 = vmatpush1.msra.mxu0 0.0
        %3126 = vmatprep.subr.mxu0 0.0
        %3127 = vmatpush1.msra.mxu0 0.0
        %3128 = vmatprep.subr.mxu0 0.0
        %3129 = vmatpush1.msra.mxu0 0.0
        %3130 = vmatprep.subr.mxu0 0.0
        %3131 = vmatpush1.msra.mxu0 0.0
        %3132 = vmatprep.subr.mxu0 0.0
        %3133 = vmatpush1.msra.mxu0 0.0
        %3134 = vmatprep.subr.mxu0 0.0
        %3135 = vmatpush1.msra.mxu0 0.0
        %3136 = vmatprep.subr.mxu0 0.0
        %3137 = vmatpush1.msra.mxu0 0.0
        %3138 = vmatprep.subr.mxu0 0.0
        %3139 = vmatpush1.msra.mxu0 0.0
        %3140 = vmatprep.mubr.f32.mxu0 0.0
        %3141 = vmatmul.mubr.f32.gmra.mrb[0].mxu0 %v3071
        %v3142 = vpop.f32.mrb[0].mxu0
        %v3143 = vadd.f32 0.0, %v3142
        %v3144 = vpop.f32.mrb[0].mxu0
        %3145 = vdwg.mxu0
        %v3146 = vadd.f32 %v3056, %v3143
        %3147 = vrot.lane.b32.xlu0 %v2527, 120
        %v3148 = vpop.permute.xlu0 %3147
        %s3149 = scalar_lea.vmem %s12, 7
        %v3150 = vld [vmem:[%s3149] sm:$0x1]
        %v3152 = vlaneseq
        %v3153 = vshrl.u32 %v3152, 7
        %v3154 = vsub.s32 0, %v3153
        %v3155 = vrot.slane %v3150, %v3154
        %v3157 = vmul.f32 %v3148, %v3155
        %s3158 = scalar_lea.vmem %s9, 56
        %v3159 = vld [vmem:[%s3158] sm:$0xff]
        %v3161 = vsel %vm1598, %v3159, 0
        %v3164 = vsel %vm1602, %v3157, 0
        %3166 = vmatprep.subr.mxu0 0.0
        %3167 = vmatpush1.msra.mxu0 %v3164
        %3168 = vmatprep.subr.mxu0 0.0
        %3169 = vmatpush1.msra.mxu0 0.0
        %3170 = vmatprep.subr.mxu0 0.0
        %3171 = vmatpush1.msra.mxu0 0.0
        %3172 = vmatprep.subr.mxu0 0.0
        %3173 = vmatpush1.msra.mxu0 0.0
        %3174 = vmatprep.subr.mxu0 0.0
        %3175 = vmatpush1.msra.mxu0 0.0
        %3176 = vmatprep.subr.mxu0 0.0
        %3177 = vmatpush1.msra.mxu0 0.0
        %3178 = vmatprep.subr.mxu0 0.0
        %3179 = vmatpush1.msra.mxu0 0.0
        %3180 = vmatprep.subr.mxu0 0.0
        %3181 = vmatpush1.msra.mxu0 0.0
        %3182 = vmatprep.subr.mxu0 0.0
        %3183 = vmatpush1.msra.mxu0 0.0
        %3184 = vmatprep.subr.mxu0 0.0
        %3185 = vmatpush1.msra.mxu0 0.0
        %3186 = vmatprep.subr.mxu0 0.0
        %3187 = vmatpush1.msra.mxu0 0.0
        %3188 = vmatprep.subr.mxu0 0.0
        %3189 = vmatpush1.msra.mxu0 0.0
        %3190 = vmatprep.subr.mxu0 0.0
        %3191 = vmatpush1.msra.mxu0 0.0
        %3192 = vmatprep.subr.mxu0 0.0
        %3193 = vmatpush1.msra.mxu0 0.0
        %3194 = vmatprep.subr.mxu0 0.0
        %3195 = vmatpush1.msra.mxu0 0.0
        %3196 = vmatprep.subr.mxu0 0.0
        %3197 = vmatpush1.msra.mxu0 0.0
        %3198 = vmatprep.subr.mxu0 0.0
        %3199 = vmatpush1.msra.mxu0 0.0
        %3200 = vmatprep.subr.mxu0 0.0
        %3201 = vmatpush1.msra.mxu0 0.0
        %3202 = vmatprep.subr.mxu0 0.0
        %3203 = vmatpush1.msra.mxu0 0.0
        %3204 = vmatprep.subr.mxu0 0.0
        %3205 = vmatpush1.msra.mxu0 0.0
        %3206 = vmatprep.subr.mxu0 0.0
        %3207 = vmatpush1.msra.mxu0 0.0
        %3208 = vmatprep.subr.mxu0 0.0
        %3209 = vmatpush1.msra.mxu0 0.0
        %3210 = vmatprep.subr.mxu0 0.0
        %3211 = vmatpush1.msra.mxu0 0.0
        %3212 = vmatprep.subr.mxu0 0.0
        %3213 = vmatpush1.msra.mxu0 0.0
        %3214 = vmatprep.subr.mxu0 0.0
        %3215 = vmatpush1.msra.mxu0 0.0
        %3216 = vmatprep.subr.mxu0 0.0
        %3217 = vmatpush1.msra.mxu0 0.0
        %3218 = vmatprep.subr.mxu0 0.0
        %3219 = vmatpush1.msra.mxu0 0.0
        %3220 = vmatprep.subr.mxu0 0.0
        %3221 = vmatpush1.msra.mxu0 0.0
        %3222 = vmatprep.subr.mxu0 0.0
        %3223 = vmatpush1.msra.mxu0 0.0
        %3224 = vmatprep.subr.mxu0 0.0
        %3225 = vmatpush1.msra.mxu0 0.0
        %3226 = vmatprep.subr.mxu0 0.0
        %3227 = vmatpush1.msra.mxu0 0.0
        %3228 = vmatprep.subr.mxu0 0.0
        %3229 = vmatpush1.msra.mxu0 0.0
        %3230 = vmatprep.mubr.f32.mxu0 0.0
        %3231 = vmatmul.mubr.f32.gmra.mrb[0].mxu0 %v3161
        %v3232 = vpop.f32.mrb[0].mxu0
        %v3233 = vadd.f32 0.0, %v3232
        %v3234 = vpop.f32.mrb[0].mxu0
        %3235 = vdwg.mxu0
        %v3236 = vadd.f32 %v3146, %v3233
        %3237 = vrot.lane.b32.xlu0 %v2527, 119
        %v3238 = vpop.permute.xlu0 %3237
        %s3239 = scalar_lea.vmem %s12, 8
        %v3240 = vld [vmem:[%s3239] sm:$0x1]
        %v3242 = vlaneseq
        %v3243 = vshrl.u32 %v3242, 7
        %v3244 = vsub.s32 0, %v3243
        %v3245 = vrot.slane %v3240, %v3244
        %v3247 = vmul.f32 %v3238, %v3245
        %s3248 = scalar_lea.vmem %s9, 64
        %v3249 = vld [vmem:[%s3248] sm:$0xff]
        %v3251 = vsel %vm1598, %v3249, 0
        %v3254 = vsel %vm1602, %v3247, 0
        %3256 = vmatprep.subr.mxu0 0.0
        %3257 = vmatpush1.msra.mxu0 %v3254
        %3258 = vmatprep.subr.mxu0 0.0
        %3259 = vmatpush1.msra.mxu0 0.0
        %3260 = vmatprep.subr.mxu0 0.0
        %3261 = vmatpush1.msra.mxu0 0.0
        %3262 = vmatprep.subr.mxu0 0.0
        %3263 = vmatpush1.msra.mxu0 0.0
        %3264 = vmatprep.subr.mxu0 0.0
        %3265 = vmatpush1.msra.mxu0 0.0
        %3266 = vmatprep.subr.mxu0 0.0
        %3267 = vmatpush1.msra.mxu0 0.0
        %3268 = vmatprep.subr.mxu0 0.0
        %3269 = vmatpush1.msra.mxu0 0.0
        %3270 = vmatprep.subr.mxu0 0.0
        %3271 = vmatpush1.msra.mxu0 0.0
        %3272 = vmatprep.subr.mxu0 0.0
        %3273 = vmatpush1.msra.mxu0 0.0
        %3274 = vmatprep.subr.mxu0 0.0
        %3275 = vmatpush1.msra.mxu0 0.0
        %3276 = vmatprep.subr.mxu0 0.0
        %3277 = vmatpush1.msra.mxu0 0.0
        %3278 = vmatprep.subr.mxu0 0.0
        %3279 = vmatpush1.msra.mxu0 0.0
        %3280 = vmatprep.subr.mxu0 0.0
        %3281 = vmatpush1.msra.mxu0 0.0
        %3282 = vmatprep.subr.mxu0 0.0
        %3283 = vmatpush1.msra.mxu0 0.0
        %3284 = vmatprep.subr.mxu0 0.0
        %3285 = vmatpush1.msra.mxu0 0.0
        %3286 = vmatprep.subr.mxu0 0.0
        %3287 = vmatpush1.msra.mxu0 0.0
        %3288 = vmatprep.subr.mxu0 0.0
        %3289 = vmatpush1.msra.mxu0 0.0
        %3290 = vmatprep.subr.mxu0 0.0
        %3291 = vmatpush1.msra.mxu0 0.0
        %3292 = vmatprep.subr.mxu0 0.0
        %3293 = vmatpush1.msra.mxu0 0.0
        %3294 = vmatprep.subr.mxu0 0.0
        %3295 = vmatpush1.msra.mxu0 0.0
        %3296 = vmatprep.subr.mxu0 0.0
        %3297 = vmatpush1.msra.mxu0 0.0
        %3298 = vmatprep.subr.mxu0 0.0
        %3299 = vmatpush1.msra.mxu0 0.0
        %3300 = vmatprep.subr.mxu0 0.0
        %3301 = vmatpush1.msra.mxu0 0.0
        %3302 = vmatprep.subr.mxu0 0.0
        %3303 = vmatpush1.msra.mxu0 0.0
        %3304 = vmatprep.subr.mxu0 0.0
        %3305 = vmatpush1.msra.mxu0 0.0
        %3306 = vmatprep.subr.mxu0 0.0
        %3307 = vmatpush1.msra.mxu0 0.0
        %3308 = vmatprep.subr.mxu0 0.0
        %3309 = vmatpush1.msra.mxu0 0.0
        %3310 = vmatprep.subr.mxu0 0.0
        %3311 = vmatpush1.msra.mxu0 0.0
        %3312 = vmatprep.subr.mxu0 0.0
        %3313 = vmatpush1.msra.mxu0 0.0
        %3314 = vmatprep.subr.mxu0 0.0
        %3315 = vmatpush1.msra.mxu0 0.0
        %3316 = vmatprep.subr.mxu0 0.0
        %3317 = vmatpush1.msra.mxu0 0.0
        %3318 = vmatprep.subr.mxu0 0.0
        %3319 = vmatpush1.msra.mxu0 0.0
        %3320 = vmatprep.mubr.f32.mxu0 0.0
        %3321 = vmatmul.mubr.f32.gmra.mrb[0].mxu0 %v3251
        %v3322 = vpop.f32.mrb[0].mxu0
        %v3323 = vadd.f32 0.0, %v3322
        %v3324 = vpop.f32.mrb[0].mxu0
        %3325 = vdwg.mxu0
        %v3326 = vadd.f32 %v3236, %v3323
        %3328 = vset.pattern.permute.xlu0 0
        %3329 = vperm.xlu0 %3328, %v2530
        %v3330 = vpop.permute.xlu0 %3329
        %v3332 = vmul.f32 %v3326, %v3330
        %3334 = vset.pattern.permute.xlu0 0
        %3335 = vperm.xlu0 %3334, %v2531
        %v3336 = vpop.permute.xlu0 %3335
        %v3338 = vadd.f32 %v3332, %v3336
        %v3339 = vmax.f32 %v3338, 0.0
        %v3340 = vld [vmem:[%s13] sm:$0xff]
        %v3341 = vld [vmem:[%s13 + $0x8] sm:$0xff]
        %v3342 = vld [vmem:[%s13 + $0x10] sm:$0xff]
        %v3343 = vld [vmem:[%s13 + $0x18] sm:$0xff]
        %v3344 = vld [vmem:[%s13 + $0x20] sm:$0xff]
        %v3345 = vld [vmem:[%s13 + $0x28] sm:$0xff]
        %v3346 = vld [vmem:[%s13 + $0x30] sm:$0xff]
        %v3347 = vld [vmem:[%s13 + $0x38] sm:$0xff]
        %v3348 = vld [vmem:[%s13 + $0x40] sm:$0xff]
        %v3349 = vld [vmem:[%s13 + $0x48] sm:$0xff]
        %v3350 = vld [vmem:[%s13 + $0x50] sm:$0xff]
        %v3351 = vld [vmem:[%s13 + $0x58] sm:$0xff]
        %v3352 = vld [vmem:[%s13 + $0x60] sm:$0xff]
        %v3353 = vld [vmem:[%s13 + $0x68] sm:$0xff]
        %v3354 = vld [vmem:[%s13 + $0x70] sm:$0xff]
        %v3355 = vld [vmem:[%s13 + $0x78] sm:$0xff]
        %3356 = vrot.lane.b32.xlu0 %v3339, 127
        %v3357 = vpop.permute.xlu0 %3356
        %v3358 = vmax.f32 %v3339, %v3357
        %3359 = vrot.lane.b32.xlu0 %v3358, 120
        %v3360 = vpop.permute.xlu0 %3359
        %v3361 = vmax.f32 %v3358, %v3360
        %3362 = vmatprep.subr.mxu0 0.0
        %3363 = vmatpush1.msra.mxu0 %v3340
        %3364 = vmatprep.subr.mxu0 0.0
        %3365 = vmatpush1.msra.mxu0 %v3341
        %3366 = vmatprep.subr.mxu0 0.0
        %3367 = vmatpush1.msra.mxu0 %v3342
        %3368 = vmatprep.subr.mxu0 0.0
        %3369 = vmatpush1.msra.mxu0 %v3343
        %3370 = vmatprep.subr.mxu0 0.0
        %3371 = vmatpush1.msra.mxu0 %v3344
        %3372 = vmatprep.subr.mxu0 0.0
        %3373 = vmatpush1.msra.mxu0 %v3345
        %3374 = vmatprep.subr.mxu0 0.0
        %3375 = vmatpush1.msra.mxu0 %v3346
        %3376 = vmatprep.subr.mxu0 0.0
        %3377 = vmatpush1.msra.mxu0 %v3347
        %3378 = vmatprep.subr.mxu0 0.0
        %3379 = vmatpush1.msra.mxu0 %v3348
        %3380 = vmatprep.subr.mxu0 0.0
        %3381 = vmatpush1.msra.mxu0 %v3349
        %3382 = vmatprep.subr.mxu0 0.0
        %3383 = vmatpush1.msra.mxu0 %v3350
        %3384 = vmatprep.subr.mxu0 0.0
        %3385 = vmatpush1.msra.mxu0 %v3351
        %3386 = vmatprep.subr.mxu0 0.0
        %3387 = vmatpush1.msra.mxu0 %v3352
        %3388 = vmatprep.subr.mxu0 0.0
        %3389 = vmatpush1.msra.mxu0 %v3353
        %3390 = vmatprep.subr.mxu0 0.0
        %3391 = vmatpush1.msra.mxu0 %v3354
        %3392 = vmatprep.subr.mxu0 0.0
        %3393 = vmatpush1.msra.mxu0 %v3355
        %3394 = vmatprep.subr.mxu0 0.0
        %3395 = vmatpush1.msra.mxu0 0.0
        %3396 = vmatprep.subr.mxu0 0.0
        %3397 = vmatpush1.msra.mxu0 0.0
        %3398 = vmatprep.subr.mxu0 0.0
        %3399 = vmatpush1.msra.mxu0 0.0
        %3400 = vmatprep.subr.mxu0 0.0
        %3401 = vmatpush1.msra.mxu0 0.0
        %3402 = vmatprep.subr.mxu0 0.0
        %3403 = vmatpush1.msra.mxu0 0.0
        %3404 = vmatprep.subr.mxu0 0.0
        %3405 = vmatpush1.msra.mxu0 0.0
        %3406 = vmatprep.subr.mxu0 0.0
        %3407 = vmatpush1.msra.mxu0 0.0
        %3408 = vmatprep.subr.mxu0 0.0
        %3409 = vmatpush1.msra.mxu0 0.0
        %3410 = vmatprep.subr.mxu0 0.0
        %3411 = vmatpush1.msra.mxu0 0.0
        %3412 = vmatprep.subr.mxu0 0.0
        %3413 = vmatpush1.msra.mxu0 0.0
        %3414 = vmatprep.subr.mxu0 0.0
        %3415 = vmatpush1.msra.mxu0 0.0
        %3416 = vmatprep.subr.mxu0 0.0
        %3417 = vmatpush1.msra.mxu0 0.0
        %3418 = vmatprep.subr.mxu0 0.0
        %3419 = vmatpush1.msra.mxu0 0.0
        %3420 = vmatprep.subr.mxu0 0.0
        %3421 = vmatpush1.msra.mxu0 0.0
        %3422 = vmatprep.subr.mxu0 0.0
        %3423 = vmatpush1.msra.mxu0 0.0
        %3424 = vmatprep.subr.mxu0 0.0
        %3425 = vmatpush1.msra.mxu0 0.0
        %3426 = vmatprep.mubr.f32.mxu0 0.0
        %3427 = vmatmul.mubr.f32.gmra.mrb[0].mxu0 %v3361
        %v3428 = vpop.f32.mrb[0].mxu0
        %v3429 = vadd.f32 0.0, %v3428
        %v3430 = vpop.f32.mrb[0].mxu0
        %3431 = vdwg.mxu0
        %v3432 = vld [vmem:[%s15] sm:$0x1]
        %v3433 = vld [vmem:[%s14] sm:$0xff]
        %v3434 = vld [vmem:[%s14 + $0x8] sm:$0xff]
        %vm3435 = vcmask 130048
        %v3437 = vsel %vm3435, %v3429, 0
        %3439 = vmatprep.subr.mxu0 0.0
        %3440 = vmatpush1.msra.mxu0 %v3433
        %3441 = vmatprep.subr.mxu0 0.0
        %3442 = vmatpush1.msra.mxu0 %v3434
        %3443 = vmatprep.subr.mxu0 0.0
        %3444 = vmatpush1.msra.mxu0 0.0
        %3445 = vmatprep.subr.mxu0 0.0
        %3446 = vmatpush1.msra.mxu0 0.0
        %3447 = vmatprep.subr.mxu0 0.0
        %3448 = vmatpush1.msra.mxu0 0.0
        %3449 = vmatprep.subr.mxu0 0.0
        %3450 = vmatpush1.msra.mxu0 0.0
        %3451 = vmatprep.subr.mxu0 0.0
        %3452 = vmatpush1.msra.mxu0 0.0
        %3453 = vmatprep.subr.mxu0 0.0
        %3454 = vmatpush1.msra.mxu0 0.0
        %3455 = vmatprep.subr.mxu0 0.0
        %3456 = vmatpush1.msra.mxu0 0.0
        %3457 = vmatprep.subr.mxu0 0.0
        %3458 = vmatpush1.msra.mxu0 0.0
        %3459 = vmatprep.subr.mxu0 0.0
        %3460 = vmatpush1.msra.mxu0 0.0
        %3461 = vmatprep.subr.mxu0 0.0
        %3462 = vmatpush1.msra.mxu0 0.0
        %3463 = vmatprep.subr.mxu0 0.0
        %3464 = vmatpush1.msra.mxu0 0.0
        %3465 = vmatprep.subr.mxu0 0.0
        %3466 = vmatpush1.msra.mxu0 0.0
        %3467 = vmatprep.subr.mxu0 0.0
        %3468 = vmatpush1.msra.mxu0 0.0
        %3469 = vmatprep.subr.mxu0 0.0
        %3470 = vmatpush1.msra.mxu0 0.0
        %3471 = vmatprep.subr.mxu0 0.0
        %3472 = vmatpush1.msra.mxu0 0.0
        %3473 = vmatprep.subr.mxu0 0.0
        %3474 = vmatpush1.msra.mxu0 0.0
        %3475 = vmatprep.subr.mxu0 0.0
        %3476 = vmatpush1.msra.mxu0 0.0
        %3477 = vmatprep.subr.mxu0 0.0
        %3478 = vmatpush1.msra.mxu0 0.0
        %3479 = vmatprep.subr.mxu0 0.0
        %3480 = vmatpush1.msra.mxu0 0.0
        %3481 = vmatprep.subr.mxu0 0.0
        %3482 = vmatpush1.msra.mxu0 0.0
        %3483 = vmatprep.subr.mxu0 0.0
        %3484 = vmatpush1.msra.mxu0 0.0
        %3485 = vmatprep.subr.mxu0 0.0
        %3486 = vmatpush1.msra.mxu0 0.0
        %3487 = vmatprep.subr.mxu0 0.0
        %3488 = vmatpush1.msra.mxu0 0.0
        %3489 = vmatprep.subr.mxu0 0.0
        %3490 = vmatpush1.msra.mxu0 0.0
        %3491 = vmatprep.subr.mxu0 0.0
        %3492 = vmatpush1.msra.mxu0 0.0
        %3493 = vmatprep.subr.mxu0 0.0
        %3494 = vmatpush1.msra.mxu0 0.0
        %3495 = vmatprep.subr.mxu0 0.0
        %3496 = vmatpush1.msra.mxu0 0.0
        %3497 = vmatprep.subr.mxu0 0.0
        %3498 = vmatpush1.msra.mxu0 0.0
        %3499 = vmatprep.subr.mxu0 0.0
        %3500 = vmatpush1.msra.mxu0 0.0
        %3501 = vmatprep.subr.mxu0 0.0
        %3502 = vmatpush1.msra.mxu0 0.0
        %3503 = vmatprep.mubr.f32.mxu0 0.0
        %3504 = vmatmul.mubr.f32.gmra.mrb[0].mxu0 %v3437
        %v3505 = vpop.f32.mrb[0].mxu0
        %v3506 = vadd.f32 0.0, %v3505
        %v3507 = vpop.f32.mrb[0].mxu0
        %3508 = vdwg.mxu0
        %v3509 = vadd.f32 %v3432, %v3506
        %s3510 = scalar_lea.vmem %s14, 16
        %v3511 = vld [vmem:[%s3510] sm:$0xff]
        %v3512 = vld [vmem:[%s3510 + $0x8] sm:$0xff]
        %v3513 = vrot.slane %v3429, 1
        %v3514 = vsel %vm3435, %v3513, 0
        %3516 = vmatprep.subr.mxu0 0.0
        %3517 = vmatpush1.msra.mxu0 %v3511
        %3518 = vmatprep.subr.mxu0 0.0
        %3519 = vmatpush1.msra.mxu0 %v3512
        %3520 = vmatprep.subr.mxu0 0.0
        %3521 = vmatpush1.msra.mxu0 0.0
        %3522 = vmatprep.subr.mxu0 0.0
        %3523 = vmatpush1.msra.mxu0 0.0
        %3524 = vmatprep.subr.mxu0 0.0
        %3525 = vmatpush1.msra.mxu0 0.0
        %3526 = vmatprep.subr.mxu0 0.0
        %3527 = vmatpush1.msra.mxu0 0.0
        %3528 = vmatprep.subr.mxu0 0.0
        %3529 = vmatpush1.msra.mxu0 0.0
        %3530 = vmatprep.subr.mxu0 0.0
        %3531 = vmatpush1.msra.mxu0 0.0
        %3532 = vmatprep.subr.mxu0 0.0
        %3533 = vmatpush1.msra.mxu0 0.0
        %3534 = vmatprep.subr.mxu0 0.0
        %3535 = vmatpush1.msra.mxu0 0.0
        %3536 = vmatprep.subr.mxu0 0.0
        %3537 = vmatpush1.msra.mxu0 0.0
        %3538 = vmatprep.subr.mxu0 0.0
        %3539 = vmatpush1.msra.mxu0 0.0
        %3540 = vmatprep.subr.mxu0 0.0
        %3541 = vmatpush1.msra.mxu0 0.0
        %3542 = vmatprep.subr.mxu0 0.0
        %3543 = vmatpush1.msra.mxu0 0.0
        %3544 = vmatprep.subr.mxu0 0.0
        %3545 = vmatpush1.msra.mxu0 0.0
        %3546 = vmatprep.subr.mxu0 0.0
        %3547 = vmatpush1.msra.mxu0 0.0
        %3548 = vmatprep.subr.mxu0 0.0
        %3549 = vmatpush1.msra.mxu0 0.0
        %3550 = vmatprep.subr.mxu0 0.0
        %3551 = vmatpush1.msra.mxu0 0.0
        %3552 = vmatprep.subr.mxu0 0.0
        %3553 = vmatpush1.msra.mxu0 0.0
        %3554 = vmatprep.subr.mxu0 0.0
        %3555 = vmatpush1.msra.mxu0 0.0
        %3556 = vmatprep.subr.mxu0 0.0
        %3557 = vmatpush1.msra.mxu0 0.0
        %3558 = vmatprep.subr.mxu0 0.0
        %3559 = vmatpush1.msra.mxu0 0.0
        %3560 = vmatprep.subr.mxu0 0.0
        %3561 = vmatpush1.msra.mxu0 0.0
        %3562 = vmatprep.subr.mxu0 0.0
        %3563 = vmatpush1.msra.mxu0 0.0
        %3564 = vmatprep.subr.mxu0 0.0
        %3565 = vmatpush1.msra.mxu0 0.0
        %3566 = vmatprep.subr.mxu0 0.0
        %3567 = vmatpush1.msra.mxu0 0.0
        %3568 = vmatprep.subr.mxu0 0.0
        %3569 = vmatpush1.msra.mxu0 0.0
        %3570 = vmatprep.subr.mxu0 0.0
        %3571 = vmatpush1.msra.mxu0 0.0
        %3572 = vmatprep.subr.mxu0 0.0
        %3573 = vmatpush1.msra.mxu0 0.0
        %3574 = vmatprep.subr.mxu0 0.0
        %3575 = vmatpush1.msra.mxu0 0.0
        %3576 = vmatprep.subr.mxu0 0.0
        %3577 = vmatpush1.msra.mxu0 0.0
        %3578 = vmatprep.subr.mxu0 0.0
        %3579 = vmatpush1.msra.mxu0 0.0
        %3580 = vmatprep.mubr.f32.mxu0 0.0
        %3581 = vmatmul.mubr.f32.gmra.mrb[0].mxu0 %v3514
        %v3582 = vpop.f32.mrb[0].mxu0
        %v3583 = vadd.f32 0.0, %v3582
        %v3584 = vpop.f32.mrb[0].mxu0
        %3585 = vdwg.mxu0
        %v3586 = vadd.f32 %v3509, %v3583
        %s3587 = scalar_lea.vmem %s14, 32
        %v3588 = vld [vmem:[%s3587] sm:$0xff]
        %v3589 = vld [vmem:[%s3587 + $0x8] sm:$0xff]
        %v3590 = vrot.slane %v3429, 2
        %v3591 = vsel %vm3435, %v3590, 0
        %3593 = vmatprep.subr.mxu0 0.0
        %3594 = vmatpush1.msra.mxu0 %v3588
        %3595 = vmatprep.subr.mxu0 0.0
        %3596 = vmatpush1.msra.mxu0 %v3589
        %3597 = vmatprep.subr.mxu0 0.0
        %3598 = vmatpush1.msra.mxu0 0.0
        %3599 = vmatprep.subr.mxu0 0.0
        %3600 = vmatpush1.msra.mxu0 0.0
        %3601 = vmatprep.subr.mxu0 0.0
        %3602 = vmatpush1.msra.mxu0 0.0
        %3603 = vmatprep.subr.mxu0 0.0
        %3604 = vmatpush1.msra.mxu0 0.0
        %3605 = vmatprep.subr.mxu0 0.0
        %3606 = vmatpush1.msra.mxu0 0.0
        %3607 = vmatprep.subr.mxu0 0.0
        %3608 = vmatpush1.msra.mxu0 0.0
        %3609 = vmatprep.subr.mxu0 0.0
        %3610 = vmatpush1.msra.mxu0 0.0
        %3611 = vmatprep.subr.mxu0 0.0
        %3612 = vmatpush1.msra.mxu0 0.0
        %3613 = vmatprep.subr.mxu0 0.0
        %3614 = vmatpush1.msra.mxu0 0.0
        %3615 = vmatprep.subr.mxu0 0.0
        %3616 = vmatpush1.msra.mxu0 0.0
        %3617 = vmatprep.subr.mxu0 0.0
        %3618 = vmatpush1.msra.mxu0 0.0
        %3619 = vmatprep.subr.mxu0 0.0
        %3620 = vmatpush1.msra.mxu0 0.0
        %3621 = vmatprep.subr.mxu0 0.0
        %3622 = vmatpush1.msra.mxu0 0.0
        %3623 = vmatprep.subr.mxu0 0.0
        %3624 = vmatpush1.msra.mxu0 0.0
        %3625 = vmatprep.subr.mxu0 0.0
        %3626 = vmatpush1.msra.mxu0 0.0
        %3627 = vmatprep.subr.mxu0 0.0
        %3628 = vmatpush1.msra.mxu0 0.0
        %3629 = vmatprep.subr.mxu0 0.0
        %3630 = vmatpush1.msra.mxu0 0.0
        %3631 = vmatprep.subr.mxu0 0.0
        %3632 = vmatpush1.msra.mxu0 0.0
        %3633 = vmatprep.subr.mxu0 0.0
        %3634 = vmatpush1.msra.mxu0 0.0
        %3635 = vmatprep.subr.mxu0 0.0
        %3636 = vmatpush1.msra.mxu0 0.0
        %3637 = vmatprep.subr.mxu0 0.0
        %3638 = vmatpush1.msra.mxu0 0.0
        %3639 = vmatprep.subr.mxu0 0.0
        %3640 = vmatpush1.msra.mxu0 0.0
        %3641 = vmatprep.subr.mxu0 0.0
        %3642 = vmatpush1.msra.mxu0 0.0
        %3643 = vmatprep.subr.mxu0 0.0
        %3644 = vmatpush1.msra.mxu0 0.0
        %3645 = vmatprep.subr.mxu0 0.0
        %3646 = vmatpush1.msra.mxu0 0.0
        %3647 = vmatprep.subr.mxu0 0.0
        %3648 = vmatpush1.msra.mxu0 0.0
        %3649 = vmatprep.subr.mxu0 0.0
        %3650 = vmatpush1.msra.mxu0 0.0
        %3651 = vmatprep.subr.mxu0 0.0
        %3652 = vmatpush1.msra.mxu0 0.0
        %3653 = vmatprep.subr.mxu0 0.0
        %3654 = vmatpush1.msra.mxu0 0.0
        %3655 = vmatprep.subr.mxu0 0.0
        %3656 = vmatpush1.msra.mxu0 0.0
        %3657 = vmatprep.mubr.f32.mxu0 0.0
        %3658 = vmatmul.mubr.f32.gmra.mrb[0].mxu0 %v3591
        %v3659 = vpop.f32.mrb[0].mxu0
        %v3660 = vadd.f32 0.0, %v3659
        %v3661 = vpop.f32.mrb[0].mxu0
        %3662 = vdwg.mxu0
        %v3663 = vadd.f32 %v3586, %v3660
        %s3664 = scalar_lea.vmem %s14, 48
        %v3665 = vld [vmem:[%s3664] sm:$0xff]
        %v3666 = vld [vmem:[%s3664 + $0x8] sm:$0xff]
        %v3667 = vrot.slane %v3429, 3
        %v3668 = vsel %vm3435, %v3667, 0
        %3670 = vmatprep.subr.mxu0 0.0
        %3671 = vmatpush1.msra.mxu0 %v3665
        %3672 = vmatprep.subr.mxu0 0.0
        %3673 = vmatpush1.msra.mxu0 %v3666
        %3674 = vmatprep.subr.mxu0 0.0
        %3675 = vmatpush1.msra.mxu0 0.0
        %3676 = vmatprep.subr.mxu0 0.0
        %3677 = vmatpush1.msra.mxu0 0.0
        %3678 = vmatprep.subr.mxu0 0.0
        %3679 = vmatpush1.msra.mxu0 0.0
        %3680 = vmatprep.subr.mxu0 0.0
        %3681 = vmatpush1.msra.mxu0 0.0
        %3682 = vmatprep.subr.mxu0 0.0
        %3683 = vmatpush1.msra.mxu0 0.0
        %3684 = vmatprep.subr.mxu0 0.0
        %3685 = vmatpush1.msra.mxu0 0.0
        %3686 = vmatprep.subr.mxu0 0.0
        %3687 = vmatpush1.msra.mxu0 0.0
        %3688 = vmatprep.subr.mxu0 0.0
        %3689 = vmatpush1.msra.mxu0 0.0
        %3690 = vmatprep.subr.mxu0 0.0
        %3691 = vmatpush1.msra.mxu0 0.0
        %3692 = vmatprep.subr.mxu0 0.0
        %3693 = vmatpush1.msra.mxu0 0.0
        %3694 = vmatprep.subr.mxu0 0.0
        %3695 = vmatpush1.msra.mxu0 0.0
        %3696 = vmatprep.subr.mxu0 0.0
        %3697 = vmatpush1.msra.mxu0 0.0
        %3698 = vmatprep.subr.mxu0 0.0
        %3699 = vmatpush1.msra.mxu0 0.0
        %3700 = vmatprep.subr.mxu0 0.0
        %3701 = vmatpush1.msra.mxu0 0.0
        %3702 = vmatprep.subr.mxu0 0.0
        %3703 = vmatpush1.msra.mxu0 0.0
        %3704 = vmatprep.subr.mxu0 0.0
        %3705 = vmatpush1.msra.mxu0 0.0
        %3706 = vmatprep.subr.mxu0 0.0
        %3707 = vmatpush1.msra.mxu0 0.0
        %3708 = vmatprep.subr.mxu0 0.0
        %3709 = vmatpush1.msra.mxu0 0.0
        %3710 = vmatprep.subr.mxu0 0.0
        %3711 = vmatpush1.msra.mxu0 0.0
        %3712 = vmatprep.subr.mxu0 0.0
        %3713 = vmatpush1.msra.mxu0 0.0
        %3714 = vmatprep.subr.mxu0 0.0
        %3715 = vmatpush1.msra.mxu0 0.0
        %3716 = vmatprep.subr.mxu0 0.0
        %3717 = vmatpush1.msra.mxu0 0.0
        %3718 = vmatprep.subr.mxu0 0.0
        %3719 = vmatpush1.msra.mxu0 0.0
        %3720 = vmatprep.subr.mxu0 0.0
        %3721 = vmatpush1.msra.mxu0 0.0
        %3722 = vmatprep.subr.mxu0 0.0
        %3723 = vmatpush1.msra.mxu0 0.0
        %3724 = vmatprep.subr.mxu0 0.0
        %3725 = vmatpush1.msra.mxu0 0.0
        %3726 = vmatprep.subr.mxu0 0.0
        %3727 = vmatpush1.msra.mxu0 0.0
        %3728 = vmatprep.subr.mxu0 0.0
        %3729 = vmatpush1.msra.mxu0 0.0
        %3730 = vmatprep.subr.mxu0 0.0
        %3731 = vmatpush1.msra.mxu0 0.0
        %3732 = vmatprep.subr.mxu0 0.0
        %3733 = vmatpush1.msra.mxu0 0.0
        %3734 = vmatprep.mubr.f32.mxu0 0.0
        %3735 = vmatmul.mubr.f32.gmra.mrb[0].mxu0 %v3668
        %v3736 = vpop.f32.mrb[0].mxu0
        %v3737 = vadd.f32 0.0, %v3736
        %v3738 = vpop.f32.mrb[0].mxu0
        %3739 = vdwg.mxu0
        %v3740 = vadd.f32 %v3663, %v3737
        %s3741 = scalar_lea.vmem %s14, 64
        %v3742 = vld [vmem:[%s3741] sm:$0xff]
        %v3743 = vld [vmem:[%s3741 + $0x8] sm:$0xff]
        %v3744 = vrot.slane %v3429, 4
        %v3745 = vsel %vm3435, %v3744, 0
        %3747 = vmatprep.subr.mxu0 0.0
        %3748 = vmatpush1.msra.mxu0 %v3742
        %3749 = vmatprep.subr.mxu0 0.0
        %3750 = vmatpush1.msra.mxu0 %v3743
        %3751 = vmatprep.subr.mxu0 0.0
        %3752 = vmatpush1.msra.mxu0 0.0
        %3753 = vmatprep.subr.mxu0 0.0
        %3754 = vmatpush1.msra.mxu0 0.0
        %3755 = vmatprep.subr.mxu0 0.0
        %3756 = vmatpush1.msra.mxu0 0.0
        %3757 = vmatprep.subr.mxu0 0.0
        %3758 = vmatpush1.msra.mxu0 0.0
        %3759 = vmatprep.subr.mxu0 0.0
        %3760 = vmatpush1.msra.mxu0 0.0
        %3761 = vmatprep.subr.mxu0 0.0
        %3762 = vmatpush1.msra.mxu0 0.0
        %3763 = vmatprep.subr.mxu0 0.0
        %3764 = vmatpush1.msra.mxu0 0.0
        %3765 = vmatprep.subr.mxu0 0.0
        %3766 = vmatpush1.msra.mxu0 0.0
        %3767 = vmatprep.subr.mxu0 0.0
        %3768 = vmatpush1.msra.mxu0 0.0
        %3769 = vmatprep.subr.mxu0 0.0
        %3770 = vmatpush1.msra.mxu0 0.0
        %3771 = vmatprep.subr.mxu0 0.0
        %3772 = vmatpush1.msra.mxu0 0.0
        %3773 = vmatprep.subr.mxu0 0.0
        %3774 = vmatpush1.msra.mxu0 0.0
        %3775 = vmatprep.subr.mxu0 0.0
        %3776 = vmatpush1.msra.mxu0 0.0
        %3777 = vmatprep.subr.mxu0 0.0
        %3778 = vmatpush1.msra.mxu0 0.0
        %3779 = vmatprep.subr.mxu0 0.0
        %3780 = vmatpush1.msra.mxu0 0.0
        %3781 = vmatprep.subr.mxu0 0.0
        %3782 = vmatpush1.msra.mxu0 0.0
        %3783 = vmatprep.subr.mxu0 0.0
        %3784 = vmatpush1.msra.mxu0 0.0
        %3785 = vmatprep.subr.mxu0 0.0
        %3786 = vmatpush1.msra.mxu0 0.0
        %3787 = vmatprep.subr.mxu0 0.0
        %3788 = vmatpush1.msra.mxu0 0.0
        %3789 = vmatprep.subr.mxu0 0.0
        %3790 = vmatpush1.msra.mxu0 0.0
        %3791 = vmatprep.subr.mxu0 0.0
        %3792 = vmatpush1.msra.mxu0 0.0
        %3793 = vmatprep.subr.mxu0 0.0
        %3794 = vmatpush1.msra.mxu0 0.0
        %3795 = vmatprep.subr.mxu0 0.0
        %3796 = vmatpush1.msra.mxu0 0.0
        %3797 = vmatprep.subr.mxu0 0.0
        %3798 = vmatpush1.msra.mxu0 0.0
        %3799 = vmatprep.subr.mxu0 0.0
        %3800 = vmatpush1.msra.mxu0 0.0
        %3801 = vmatprep.subr.mxu0 0.0
        %3802 = vmatpush1.msra.mxu0 0.0
        %3803 = vmatprep.subr.mxu0 0.0
        %3804 = vmatpush1.msra.mxu0 0.0
        %3805 = vmatprep.subr.mxu0 0.0
        %3806 = vmatpush1.msra.mxu0 0.0
        %3807 = vmatprep.subr.mxu0 0.0
        %3808 = vmatpush1.msra.mxu0 0.0
        %3809 = vmatprep.subr.mxu0 0.0
        %3810 = vmatpush1.msra.mxu0 0.0
        %3811 = vmatprep.mubr.f32.mxu0 0.0
        %3812 = vmatmul.mubr.f32.gmra.mrb[0].mxu0 %v3745
        %v3813 = vpop.f32.mrb[0].mxu0
        %v3814 = vadd.f32 0.0, %v3813
        %v3815 = vpop.f32.mrb[0].mxu0
        %3816 = vdwg.mxu0
        %v3817 = vadd.f32 %v3740, %v3814
        %s3818 = scalar_lea.vmem %s14, 80
        %v3819 = vld [vmem:[%s3818] sm:$0xff]
        %v3820 = vld [vmem:[%s3818 + $0x8] sm:$0xff]
        %v3821 = vrot.slane %v3429, 5
        %v3822 = vsel %vm3435, %v3821, 0
        %3824 = vmatprep.subr.mxu0 0.0
        %3825 = vmatpush1.msra.mxu0 %v3819
        %3826 = vmatprep.subr.mxu0 0.0
        %3827 = vmatpush1.msra.mxu0 %v3820
        %3828 = vmatprep.subr.mxu0 0.0
        %3829 = vmatpush1.msra.mxu0 0.0
        %3830 = vmatprep.subr.mxu0 0.0
        %3831 = vmatpush1.msra.mxu0 0.0
        %3832 = vmatprep.subr.mxu0 0.0
        %3833 = vmatpush1.msra.mxu0 0.0
        %3834 = vmatprep.subr.mxu0 0.0
        %3835 = vmatpush1.msra.mxu0 0.0
        %3836 = vmatprep.subr.mxu0 0.0
        %3837 = vmatpush1.msra.mxu0 0.0
        %3838 = vmatprep.subr.mxu0 0.0
        %3839 = vmatpush1.msra.mxu0 0.0
        %3840 = vmatprep.subr.mxu0 0.0
        %3841 = vmatpush1.msra.mxu0 0.0
        %3842 = vmatprep.subr.mxu0 0.0
        %3843 = vmatpush1.msra.mxu0 0.0
        %3844 = vmatprep.subr.mxu0 0.0
        %3845 = vmatpush1.msra.mxu0 0.0
        %3846 = vmatprep.subr.mxu0 0.0
        %3847 = vmatpush1.msra.mxu0 0.0
        %3848 = vmatprep.subr.mxu0 0.0
        %3849 = vmatpush1.msra.mxu0 0.0
        %3850 = vmatprep.subr.mxu0 0.0
        %3851 = vmatpush1.msra.mxu0 0.0
        %3852 = vmatprep.subr.mxu0 0.0
        %3853 = vmatpush1.msra.mxu0 0.0
        %3854 = vmatprep.subr.mxu0 0.0
        %3855 = vmatpush1.msra.mxu0 0.0
        %3856 = vmatprep.subr.mxu0 0.0
        %3857 = vmatpush1.msra.mxu0 0.0
        %3858 = vmatprep.subr.mxu0 0.0
        %3859 = vmatpush1.msra.mxu0 0.0
        %3860 = vmatprep.subr.mxu0 0.0
        %3861 = vmatpush1.msra.mxu0 0.0
        %3862 = vmatprep.subr.mxu0 0.0
        %3863 = vmatpush1.msra.mxu0 0.0
        %3864 = vmatprep.subr.mxu0 0.0
        %3865 = vmatpush1.msra.mxu0 0.0
        %3866 = vmatprep.subr.mxu0 0.0
        %3867 = vmatpush1.msra.mxu0 0.0
        %3868 = vmatprep.subr.mxu0 0.0
        %3869 = vmatpush1.msra.mxu0 0.0
        %3870 = vmatprep.subr.mxu0 0.0
        %3871 = vmatpush1.msra.mxu0 0.0
        %3872 = vmatprep.subr.mxu0 0.0
        %3873 = vmatpush1.msra.mxu0 0.0
        %3874 = vmatprep.subr.mxu0 0.0
        %3875 = vmatpush1.msra.mxu0 0.0
        %3876 = vmatprep.subr.mxu0 0.0
        %3877 = vmatpush1.msra.mxu0 0.0
        %3878 = vmatprep.subr.mxu0 0.0
        %3879 = vmatpush1.msra.mxu0 0.0
        %3880 = vmatprep.subr.mxu0 0.0
        %3881 = vmatpush1.msra.mxu0 0.0
        %3882 = vmatprep.subr.mxu0 0.0
        %3883 = vmatpush1.msra.mxu0 0.0
        %3884 = vmatprep.subr.mxu0 0.0
        %3885 = vmatpush1.msra.mxu0 0.0
        %3886 = vmatprep.subr.mxu0 0.0
        %3887 = vmatpush1.msra.mxu0 0.0
        %3888 = vmatprep.mubr.f32.mxu0 0.0
        %3889 = vmatmul.mubr.f32.gmra.mrb[0].mxu0 %v3822
        %v3890 = vpop.f32.mrb[0].mxu0
        %v3891 = vadd.f32 0.0, %v3890
        %v3892 = vpop.f32.mrb[0].mxu0
        %3893 = vdwg.mxu0
        %v3894 = vadd.f32 %v3817, %v3891
        %s3895 = scalar_lea.vmem %s14, 96
        %v3896 = vld [vmem:[%s3895] sm:$0xff]
        %v3897 = vld [vmem:[%s3895 + $0x8] sm:$0xff]
        %v3898 = vrot.slane %v3429, 6
        %v3899 = vsel %vm3435, %v3898, 0
        %3901 = vmatprep.subr.mxu0 0.0
        %3902 = vmatpush1.msra.mxu0 %v3896
        %3903 = vmatprep.subr.mxu0 0.0
        %3904 = vmatpush1.msra.mxu0 %v3897
        %3905 = vmatprep.subr.mxu0 0.0
        %3906 = vmatpush1.msra.mxu0 0.0
        %3907 = vmatprep.subr.mxu0 0.0
        %3908 = vmatpush1.msra.mxu0 0.0
        %3909 = vmatprep.subr.mxu0 0.0
        %3910 = vmatpush1.msra.mxu0 0.0
        %3911 = vmatprep.subr.mxu0 0.0
        %3912 = vmatpush1.msra.mxu0 0.0
        %3913 = vmatprep.subr.mxu0 0.0
        %3914 = vmatpush1.msra.mxu0 0.0
        %3915 = vmatprep.subr.mxu0 0.0
        %3916 = vmatpush1.msra.mxu0 0.0
        %3917 = vmatprep.subr.mxu0 0.0
        %3918 = vmatpush1.msra.mxu0 0.0
        %3919 = vmatprep.subr.mxu0 0.0
        %3920 = vmatpush1.msra.mxu0 0.0
        %3921 = vmatprep.subr.mxu0 0.0
        %3922 = vmatpush1.msra.mxu0 0.0
        %3923 = vmatprep.subr.mxu0 0.0
        %3924 = vmatpush1.msra.mxu0 0.0
        %3925 = vmatprep.subr.mxu0 0.0
        %3926 = vmatpush1.msra.mxu0 0.0
        %3927 = vmatprep.subr.mxu0 0.0
        %3928 = vmatpush1.msra.mxu0 0.0
        %3929 = vmatprep.subr.mxu0 0.0
        %3930 = vmatpush1.msra.mxu0 0.0
        %3931 = vmatprep.subr.mxu0 0.0
        %3932 = vmatpush1.msra.mxu0 0.0
        %3933 = vmatprep.subr.mxu0 0.0
        %3934 = vmatpush1.msra.mxu0 0.0
        %3935 = vmatprep.subr.mxu0 0.0
        %3936 = vmatpush1.msra.mxu0 0.0
        %3937 = vmatprep.subr.mxu0 0.0
        %3938 = vmatpush1.msra.mxu0 0.0
        %3939 = vmatprep.subr.mxu0 0.0
        %3940 = vmatpush1.msra.mxu0 0.0
        %3941 = vmatprep.subr.mxu0 0.0
        %3942 = vmatpush1.msra.mxu0 0.0
        %3943 = vmatprep.subr.mxu0 0.0
        %3944 = vmatpush1.msra.mxu0 0.0
        %3945 = vmatprep.subr.mxu0 0.0
        %3946 = vmatpush1.msra.mxu0 0.0
        %3947 = vmatprep.subr.mxu0 0.0
        %3948 = vmatpush1.msra.mxu0 0.0
        %3949 = vmatprep.subr.mxu0 0.0
        %3950 = vmatpush1.msra.mxu0 0.0
        %3951 = vmatprep.subr.mxu0 0.0
        %3952 = vmatpush1.msra.mxu0 0.0
        %3953 = vmatprep.subr.mxu0 0.0
        %3954 = vmatpush1.msra.mxu0 0.0
        %3955 = vmatprep.subr.mxu0 0.0
        %3956 = vmatpush1.msra.mxu0 0.0
        %3957 = vmatprep.subr.mxu0 0.0
        %3958 = vmatpush1.msra.mxu0 0.0
        %3959 = vmatprep.subr.mxu0 0.0
        %3960 = vmatpush1.msra.mxu0 0.0
        %3961 = vmatprep.subr.mxu0 0.0
        %3962 = vmatpush1.msra.mxu0 0.0
        %3963 = vmatprep.subr.mxu0 0.0
        %3964 = vmatpush1.msra.mxu0 0.0
        %3965 = vmatprep.mubr.f32.mxu0 0.0
        %3966 = vmatmul.mubr.f32.gmra.mrb[0].mxu0 %v3899
        %v3967 = vpop.f32.mrb[0].mxu0
        %v3968 = vadd.f32 0.0, %v3967
        %v3969 = vpop.f32.mrb[0].mxu0
        %3970 = vdwg.mxu0
        %v3971 = vadd.f32 %v3894, %v3968
        %s3972 = scalar_lea.vmem %s14, 112
        %v3973 = vld [vmem:[%s3972] sm:$0xff]
        %v3974 = vld [vmem:[%s3972 + $0x8] sm:$0xff]
        %v3975 = vrot.slane %v3429, 7
        %v3976 = vsel %vm3435, %v3975, 0
        %3978 = vmatprep.subr.mxu0 0.0
        %3979 = vmatpush1.msra.mxu0 %v3973
        %3980 = vmatprep.subr.mxu0 0.0
        %3981 = vmatpush1.msra.mxu0 %v3974
        %3982 = vmatprep.subr.mxu0 0.0
        %3983 = vmatpush1.msra.mxu0 0.0
        %3984 = vmatprep.subr.mxu0 0.0
        %3985 = vmatpush1.msra.mxu0 0.0
        %3986 = vmatprep.subr.mxu0 0.0
        %3987 = vmatpush1.msra.mxu0 0.0
        %3988 = vmatprep.subr.mxu0 0.0
        %3989 = vmatpush1.msra.mxu0 0.0
        %3990 = vmatprep.subr.mxu0 0.0
        %3991 = vmatpush1.msra.mxu0 0.0
        %3992 = vmatprep.subr.mxu0 0.0
        %3993 = vmatpush1.msra.mxu0 0.0
        %3994 = vmatprep.subr.mxu0 0.0
        %3995 = vmatpush1.msra.mxu0 0.0
        %3996 = vmatprep.subr.mxu0 0.0
        %3997 = vmatpush1.msra.mxu0 0.0
        %3998 = vmatprep.subr.mxu0 0.0
        %3999 = vmatpush1.msra.mxu0 0.0
        %4000 = vmatprep.subr.mxu0 0.0
        %4001 = vmatpush1.msra.mxu0 0.0
        %4002 = vmatprep.subr.mxu0 0.0
        %4003 = vmatpush1.msra.mxu0 0.0
        %4004 = vmatprep.subr.mxu0 0.0
        %4005 = vmatpush1.msra.mxu0 0.0
        %4006 = vmatprep.subr.mxu0 0.0
        %4007 = vmatpush1.msra.mxu0 0.0
        %4008 = vmatprep.subr.mxu0 0.0
        %4009 = vmatpush1.msra.mxu0 0.0
        %4010 = vmatprep.subr.mxu0 0.0
        %4011 = vmatpush1.msra.mxu0 0.0
        %4012 = vmatprep.subr.mxu0 0.0
        %4013 = vmatpush1.msra.mxu0 0.0
        %4014 = vmatprep.subr.mxu0 0.0
        %4015 = vmatpush1.msra.mxu0 0.0
        %4016 = vmatprep.subr.mxu0 0.0
        %4017 = vmatpush1.msra.mxu0 0.0
        %4018 = vmatprep.subr.mxu0 0.0
        %4019 = vmatpush1.msra.mxu0 0.0
        %4020 = vmatprep.subr.mxu0 0.0
        %4021 = vmatpush1.msra.mxu0 0.0
        %4022 = vmatprep.subr.mxu0 0.0
        %4023 = vmatpush1.msra.mxu0 0.0
        %4024 = vmatprep.subr.mxu0 0.0
        %4025 = vmatpush1.msra.mxu0 0.0
        %4026 = vmatprep.subr.mxu0 0.0
        %4027 = vmatpush1.msra.mxu0 0.0
        %4028 = vmatprep.subr.mxu0 0.0
        %4029 = vmatpush1.msra.mxu0 0.0
        %4030 = vmatprep.subr.mxu0 0.0
        %4031 = vmatpush1.msra.mxu0 0.0
        %4032 = vmatprep.subr.mxu0 0.0
        %4033 = vmatpush1.msra.mxu0 0.0
        %4034 = vmatprep.subr.mxu0 0.0
        %4035 = vmatpush1.msra.mxu0 0.0
        %4036 = vmatprep.subr.mxu0 0.0
        %4037 = vmatpush1.msra.mxu0 0.0
        %4038 = vmatprep.subr.mxu0 0.0
        %4039 = vmatpush1.msra.mxu0 0.0
        %4040 = vmatprep.subr.mxu0 0.0
        %4041 = vmatpush1.msra.mxu0 0.0
        %4042 = vmatprep.mubr.f32.mxu0 0.0
        %4043 = vmatmul.mubr.f32.gmra.mrb[0].mxu0 %v3976
        %v4044 = vpop.f32.mrb[0].mxu0
        %v4045 = vadd.f32 0.0, %v4044
        %v4046 = vpop.f32.mrb[0].mxu0
        %4047 = vdwg.mxu0
        %v4048 = vadd.f32 %v3971, %v4045
        %v4049 = vmax.f32 %v4048, 0.0
        %v4050 = vld [vmem:[%s16] sm:$0xff]
        %v4051 = vld [vmem:[%s16 + $0x8] sm:$0xff]
        %v4052 = vld [vmem:[%s16 + $0x10] sm:$0xff]
        %v4053 = vld [vmem:[%s16 + $0x18] sm:$0xff]
        %v4054 = vld [vmem:[%s17] sm:$0x1]
        %vm4055 = vcmask 261120
        %v4057 = vsel %vm4055, %v4049, 0
        %4059 = vmatprep.subr.mxu0 0.0
        %4060 = vmatpush1.msra.mxu0 %v4050
        %4061 = vmatprep.subr.mxu0 0.0
        %4062 = vmatpush1.msra.mxu0 %v4051
        %4063 = vmatprep.subr.mxu0 0.0
        %4064 = vmatpush1.msra.mxu0 %v4052
        %4065 = vmatprep.subr.mxu0 0.0
        %4066 = vmatpush1.msra.mxu0 %v4053
        %4067 = vmatprep.subr.mxu0 0.0
        %4068 = vmatpush1.msra.mxu0 0.0
        %4069 = vmatprep.subr.mxu0 0.0
        %4070 = vmatpush1.msra.mxu0 0.0
        %4071 = vmatprep.subr.mxu0 0.0
        %4072 = vmatpush1.msra.mxu0 0.0
        %4073 = vmatprep.subr.mxu0 0.0
        %4074 = vmatpush1.msra.mxu0 0.0
        %4075 = vmatprep.subr.mxu0 0.0
        %4076 = vmatpush1.msra.mxu0 0.0
        %4077 = vmatprep.subr.mxu0 0.0
        %4078 = vmatpush1.msra.mxu0 0.0
        %4079 = vmatprep.subr.mxu0 0.0
        %4080 = vmatpush1.msra.mxu0 0.0
        %4081 = vmatprep.subr.mxu0 0.0
        %4082 = vmatpush1.msra.mxu0 0.0
        %4083 = vmatprep.subr.mxu0 0.0
        %4084 = vmatpush1.msra.mxu0 0.0
        %4085 = vmatprep.subr.mxu0 0.0
        %4086 = vmatpush1.msra.mxu0 0.0
        %4087 = vmatprep.subr.mxu0 0.0
        %4088 = vmatpush1.msra.mxu0 0.0
        %4089 = vmatprep.subr.mxu0 0.0
        %4090 = vmatpush1.msra.mxu0 0.0
        %4091 = vmatprep.subr.mxu0 0.0
        %4092 = vmatpush1.msra.mxu0 0.0
        %4093 = vmatprep.subr.mxu0 0.0
        %4094 = vmatpush1.msra.mxu0 0.0
        %4095 = vmatprep.subr.mxu0 0.0
        %4096 = vmatpush1.msra.mxu0 0.0
        %4097 = vmatprep.subr.mxu0 0.0
        %4098 = vmatpush1.msra.mxu0 0.0
        %4099 = vmatprep.subr.mxu0 0.0
        %4100 = vmatpush1.msra.mxu0 0.0
        %4101 = vmatprep.subr.mxu0 0.0
        %4102 = vmatpush1.msra.mxu0 0.0
        %4103 = vmatprep.subr.mxu0 0.0
        %4104 = vmatpush1.msra.mxu0 0.0
        %4105 = vmatprep.subr.mxu0 0.0
        %4106 = vmatpush1.msra.mxu0 0.0
        %4107 = vmatprep.subr.mxu0 0.0
        %4108 = vmatpush1.msra.mxu0 0.0
        %4109 = vmatprep.subr.mxu0 0.0
        %4110 = vmatpush1.msra.mxu0 0.0
        %4111 = vmatprep.subr.mxu0 0.0
        %4112 = vmatpush1.msra.mxu0 0.0
        %4113 = vmatprep.subr.mxu0 0.0
        %4114 = vmatpush1.msra.mxu0 0.0
        %4115 = vmatprep.subr.mxu0 0.0
        %4116 = vmatpush1.msra.mxu0 0.0
        %4117 = vmatprep.subr.mxu0 0.0
        %4118 = vmatpush1.msra.mxu0 0.0
        %4119 = vmatprep.subr.mxu0 0.0
        %4120 = vmatpush1.msra.mxu0 0.0
        %4121 = vmatprep.subr.mxu0 0.0
        %4122 = vmatpush1.msra.mxu0 0.0
        %4123 = vmatprep.mubr.f32.mxu0 0.0
        %4124 = vmatmul.mubr.f32.gmra.mrb[0].mxu0 %v4057
        %v4125 = vpop.f32.mrb[0].mxu0
        %v4126 = vadd.f32 %v4054, %v4125
        %v4127 = vpop.f32.mrb[0].mxu0
        %4128 = vdwg.mxu0
        %v4129 = vmax.f32 %v4126, 0.0
        %v4130 = vld [vmem:[%s18] sm:$0xff]
        %v4131 = vld [vmem:[%s18 + $0x8] sm:$0xff]
        %v4132 = vld [vmem:[%s18 + $0x10] sm:$0xff]
        %v4133 = vld [vmem:[%s18 + $0x18] sm:$0xff]
        %v4134 = vld [vmem:[%s19] sm:$0x1]
        %v4136 = vsel %vm4055, %v4129, 0
        %4138 = vmatprep.subr.mxu0 0.0
        %4139 = vmatpush1.msra.mxu0 %v4130
        %4140 = vmatprep.subr.mxu0 0.0
        %4141 = vmatpush1.msra.mxu0 %v4131
        %4142 = vmatprep.subr.mxu0 0.0
        %4143 = vmatpush1.msra.mxu0 %v4132
        %4144 = vmatprep.subr.mxu0 0.0
        %4145 = vmatpush1.msra.mxu0 %v4133
        %4146 = vmatprep.subr.mxu0 0.0
        %4147 = vmatpush1.msra.mxu0 0.0
        %4148 = vmatprep.subr.mxu0 0.0
        %4149 = vmatpush1.msra.mxu0 0.0
        %4150 = vmatprep.subr.mxu0 0.0
        %4151 = vmatpush1.msra.mxu0 0.0
        %4152 = vmatprep.subr.mxu0 0.0
        %4153 = vmatpush1.msra.mxu0 0.0
        %4154 = vmatprep.subr.mxu0 0.0
        %4155 = vmatpush1.msra.mxu0 0.0
        %4156 = vmatprep.subr.mxu0 0.0
        %4157 = vmatpush1.msra.mxu0 0.0
        %4158 = vmatprep.subr.mxu0 0.0
        %4159 = vmatpush1.msra.mxu0 0.0
        %4160 = vmatprep.subr.mxu0 0.0
        %4161 = vmatpush1.msra.mxu0 0.0
        %4162 = vmatprep.subr.mxu0 0.0
        %4163 = vmatpush1.msra.mxu0 0.0
        %4164 = vmatprep.subr.mxu0 0.0
        %4165 = vmatpush1.msra.mxu0 0.0
        %4166 = vmatprep.subr.mxu0 0.0
        %4167 = vmatpush1.msra.mxu0 0.0
        %4168 = vmatprep.subr.mxu0 0.0
        %4169 = vmatpush1.msra.mxu0 0.0
        %4170 = vmatprep.subr.mxu0 0.0
        %4171 = vmatpush1.msra.mxu0 0.0
        %4172 = vmatprep.subr.mxu0 0.0
        %4173 = vmatpush1.msra.mxu0 0.0
        %4174 = vmatprep.subr.mxu0 0.0
        %4175 = vmatpush1.msra.mxu0 0.0
        %4176 = vmatprep.subr.mxu0 0.0
        %4177 = vmatpush1.msra.mxu0 0.0
        %4178 = vmatprep.subr.mxu0 0.0
        %4179 = vmatpush1.msra.mxu0 0.0
        %4180 = vmatprep.subr.mxu0 0.0
        %4181 = vmatpush1.msra.mxu0 0.0
        %4182 = vmatprep.subr.mxu0 0.0
        %4183 = vmatpush1.msra.mxu0 0.0
        %4184 = vmatprep.subr.mxu0 0.0
        %4185 = vmatpush1.msra.mxu0 0.0
        %4186 = vmatprep.subr.mxu0 0.0
        %4187 = vmatpush1.msra.mxu0 0.0
        %4188 = vmatprep.subr.mxu0 0.0
        %4189 = vmatpush1.msra.mxu0 0.0
        %4190 = vmatprep.subr.mxu0 0.0
        %4191 = vmatpush1.msra.mxu0 0.0
        %4192 = vmatprep.subr.mxu0 0.0
        %4193 = vmatpush1.msra.mxu0 0.0
        %4194 = vmatprep.subr.mxu0 0.0
        %4195 = vmatpush1.msra.mxu0 0.0
        %4196 = vmatprep.subr.mxu0 0.0
        %4197 = vmatpush1.msra.mxu0 0.0
        %4198 = vmatprep.subr.mxu0 0.0
        %4199 = vmatpush1.msra.mxu0 0.0
        %4200 = vmatprep.subr.mxu0 0.0
        %4201 = vmatpush1.msra.mxu0 0.0
        %4202 = vmatprep.mubr.f32.mxu0 0.0
        %4203 = vmatmul.mubr.f32.gmra.mrb[0].mxu0 %v4136
        %v4204 = vpop.f32.mrb[0].mxu0
        %v4205 = vadd.f32 %v4134, %v4204
        %v4206 = vpop.f32.mrb[0].mxu0
        %4207 = vdwg.mxu0
        %vm4208 = vcmask 32768
        %4209 = vst.msk [vmem:[%s621] sm:$0x1] %vm4208, %v4205
        %s4210 = sand.u32 %s467, 1
        %s4211 = scalar_lea.sflag [#allocation3], %s4210
        %s4212 = sand.u32 %s467, 1
        %s4213 = scalar_lea.vmem [#allocation2], %s4212
        // Predicated region
        $region101: #{tpu_custom_call.1} parent=99 // pred_check
          %p4214 = pneg %p477
        $region102: #{tpu_custom_call.1} parent=99 // pred_check_branch
          %4216 = sbr.rel (%p4214) target = $region104
        $region103: #{tpu_custom_call.1} parent=99 // pred_region
          %s4218 = ssub.s32 16, 16
          %4219 = vsyncadd %s4211, %s4218
          %s4220 = smul.addr %s34, 16
          %s4221 = scalar_lea.hbm %s20, %s4220
          %s4223 = sshll.u32 %s4213, 4
          %s4224 = int_to_ptr.vmem [resolvable:$true] %s4223
          %4226 = dma.vmem_to_hbm [thread:$0]  %s4224, 16, %s4221, %s4211
        $region104: #{tpu_custom_call.1} parent=99 // pred_fallthru
          _
      $region100: #{tpu_custom_call.1} parent=5 // pred_fallthru
        _
      %p4227 = scmp.le.s32.totalorder 2, %s29
      // Predicated region
      $region105: #{tpu_custom_call.1} parent=5 // pred_check
        %p4228 = pneg %p4227
      $region106: #{tpu_custom_call.1} parent=5 // pred_check_branch
        %4230 = sbr.rel (%p4228) target = $region108
      $region107: #{tpu_custom_call.1} parent=5 // pred_region
        %s4231 = ssub.s32 %s29, 2
        // Predicated region
        $region109: #{tpu_custom_call.1} parent=107 // pred_check
          %p4232 = pneg %p483
        $region110: #{tpu_custom_call.1} parent=107 // pred_check_branch
          %4234 = sbr.rel (%p4232) target = $region112
        $region111: #{tpu_custom_call.1} parent=107 // pred_region
          %s4235 = sand.u32 %s468, 1
          %s4236 = scalar_lea.sflag [#allocation3], %s4235
          %s4237 = sand.u32 %s468, 1
          %s4238 = scalar_lea.vmem [#allocation2], %s4237
          %4239 = dma.done %s4236, 16
        $region112: #{tpu_custom_call.1} parent=107 // pred_fallthru
          _
      $region108: #{tpu_custom_call.1} parent=5 // pred_fallthru
        _
    $region6: #{tpu_custom_call.1} parent=1 // loop_footer
      %s33 = sadd.s32 1, %s29
    $region7: #{tpu_custom_call.1} parent=1 // loop_footer_branch
      %28 = sbr.rel target = $region3
    $region8: #{tpu_custom_call.1} parent=1 // loop_exit
      _
    %4240 = vsyncpa [#allocation3], 1
    %s4241 = scalar_lea.sflag [#allocation3], 1
    %4242 = vsyncpa %s4241, 1

</llo_original>
